<compile_context>
chip_gen: v5e
topology: v5e:2x2
jax: 0.10.0
libtpu: 0.0.40
codegen_flags: <defaults>
</compile_context>

<pallas_src>
import functools

import jax
import jax.numpy as jnp
from jax.experimental import pallas as pl
from jax.experimental.pallas import tpu as pltpu


def _sigmoid(x):
    return 1.0 / (1.0 + jnp.exp(-x))


# --------------------------------------------------------------------------
# Fused kernel: prelude (residual + LayerNorm + half-swap) + one Mamba block
# --------------------------------------------------------------------------
def _token_swap_mamba_kernel(
        # activations (B*N, C) + LayerNorm params
        under_ref, over_ref, ures_ref, ores_ref,
        w1_ref, b1_ref, w2_ref, b2_ref,
        # hoisted constant selection matrices
        rrep_ref, esel_ref, qsum_ref, shift_ref,
        # per-stream Mamba weights (stream axis squeezed by BlockSpec)
        win_ref, wconv_ref, bconv_ref, wbig_ref, bdt_ref, aneg_ref, dD_ref,
        wout_ref,
        # outputs
        swap_ref, res_ref,
        # scratch
        h_all_ref,
        *, d_inner, d_state, d_conv, seq_len, batch, half):
    s = pl.program_id(0)                 # 0 = under stream, 1 = over stream
    f32 = jnp.float32
    cdt = win_ref.dtype                  # MXU operand dtype (f32 or bf16)
    BN = batch * seq_len
    BS = batch * d_state                 # rows per time step in the folded scan

    # ---------------- prelude: residual + WithBias LayerNorm + half swap ------
    u_res = under_ref[...] + ures_ref[...]                      # (BN, C)
    o_res = over_ref[...] + ores_ref[...]

    res_ref[...] = jnp.where(s == 0, u_res, o_res).astype(res_ref.dtype)

    def layernorm(x, w, b):
        mu = jnp.mean(x, axis=-1, keepdims=True)
        var = jnp.mean((x - mu) ** 2, axis=-1, keepdims=True)   # unbiased=False
        return (x - mu) * jax.lax.rsqrt(var + 1e-5) * w + b

    u_n = layernorm(u_res, w1_ref[...], b1_ref[...])
    o_n = layernorm(o_res, w2_ref[...], b2_ref[...])

    # channel half-swap as a lane-mask select (keeps the XLU out of it)
    lane = jax.lax.broadcasted_iota(jnp.int32, u_n.shape, 1)
    take_other = jnp.logical_xor(lane < half, s == 1)
    x_in = jnp.where(take_other, o_n, u_n)                      # (BN, C)

    # ---------------- Mamba block of stream s ---------------------------------
    xz = jnp.dot(x_in.astype(cdt), win_ref[...],
                 preferred_element_type=f32)                    # (BN, 2*d_inner)
    xs = xz[:, :d_inner]
    z = xz[:, d_inner:]

    # causal depthwise conv1d: the d_conv-1 causal shifts come from one
    # hoisted 0/1 shift-matrix matmul; slices below are 8-aligned sublane
    # blocks (BN rows each).  Cross-batch leakage is masked inside shift_ref.
    wconv = wconv_ref[...]                                      # (d_conv, d_inner)
    shifted = jnp.dot(shift_ref[...], xs.astype(shift_ref.dtype),
                      preferred_element_type=f32)               # ((d_conv-1)*BN, d_inner)
    conv = bconv_ref[...] + xs * wconv[d_conv - 1:d_conv, :]
    for j in range(1, d_conv):
        conv = conv + (shifted[(j - 1) * BN:j * BN, :]
                       * wconv[d_conv - 1 - j:d_conv - j, :])
    x_act = conv * _sigmoid(conv)                               # (BN, d_inner)

    # fused x_proj + dt_proj: one matmul produces [dt_pre | B | C]
    x_big = jnp.dot(x_act.astype(cdt), wbig_ref[...],
                    preferred_element_type=f32)                 # (BN, d_inner+2*ds)
    dt = x_big[:, :d_inner] + bdt_ref[...]
    dt = jnp.maximum(dt, 0.0) + jnp.log(1.0 + jnp.exp(-jnp.abs(dt)))  # softplus

    # ---------------- selective scan -------------------------------------------
    # Fold (time, batch, state) onto sublanes: row r = (t*B + b)*d_state + n,
    # d_inner on lanes.  All replications are 0/1 selection matmuls on the MXU.
    rhs = jnp.concatenate([dt, dt * x_act, x_big[:, d_inner:]], axis=-1)
    rep = jnp.dot(rrep_ref[...], rhs.astype(rrep_ref.dtype),
                  preferred_element_type=f32)                   # (NR, 2*di+2*ds)
    dt_rep = rep[:, :d_inner]
    dtx_rep = rep[:, d_inner:2 * d_inner]
    esel = esel_ref[...]
    b_col = jnp.sum(rep[:, 2 * d_inner:2 * d_inner + d_state] * esel,
                    axis=-1, keepdims=True)                     # (NR, 1)
    c_col = jnp.sum(rep[:, 2 * d_inner + d_state:] * esel,
                    axis=-1, keepdims=True)                     # (NR, 1)

    # A = -exp(A_log) is precomputed in the wrapper; replicate across time/batch
    a_rep = jnp.dot(esel, aneg_ref[...], preferred_element_type=f32)  # (NR, d_inner)
    dA = jnp.exp(dt_rep * a_rep)                  # one batched exp for the scan
    dBx = dtx_rep * b_col

    h = jnp.zeros((BS, d_inner), f32)
    for t in range(seq_len):                      # N is tiny -> full unroll
        lo = t * BS
        h = dA[lo:lo + BS, :] * h + dBx[lo:lo + BS, :]
        h_all_ref[lo:lo + BS, :] = h              # aligned sublane-block store

    # y[m] = sum_n C[m,n] * h[m,n,:] + D * x_act[m]  (block-sum on the MXU)
    y = jnp.dot(qsum_ref[...],
                (h_all_ref[...] * c_col).astype(qsum_ref.dtype),
                preferred_element_type=f32)                     # (BN, d_inner)
    y = y + x_act * dD_ref[...]

    # SiLU gate + out_proj
    gated = y * (z * _sigmoid(z))
    out = jnp.dot(gated.astype(cdt), wout_ref[...],
                  preferred_element_type=f32)                   # (BN, C)
    swap_ref[...] = out.astype(swap_ref.dtype)


# --------------------------------------------------------------------------
# TokenSwapMamba forward: one fused pallas_call over a (stream,) grid
# --------------------------------------------------------------------------
def token_swap_mamba(under, over, under_res, over_res,
                     ln1_w, ln1_b, ln2_w, ln2_b,
                     under_params, over_params, meta,
                     mxu_dtype=jnp.float32):
    # mxu_dtype=jnp.bfloat16 feeds the v6e/v7x MXU natively (f32 accumulate);
    # default f32 keeps the tight 1e-3/2e-3 reference tolerance.
    B, N, C = under.shape
    d_inner = meta["d_inner"]
    d_state = meta["d_state"]
    d_conv = meta["d_conv"]
    dt_rank = meta["dt_rank"]
    BN = B * N
    NR = BN * d_state
    f32 = jnp.float32

    # ---- fold batch into the sublane/token axis (free bitcast reshape) --------
    under_f, over_f = under.reshape(BN, C), over.reshape(BN, C)
    ures_f, ores_f = under_res.reshape(BN, C), over_res.reshape(BN, C)

    # ---- hoisted constant selection matrices ----------------------------------
    r = jnp.arange(NR)
    t_r = r // (B * d_state)
    b_r = (r // d_state) % B
    n_r = r % d_state
    src = b_r * N + t_r                                          # source row m(r)
    rrep = (src[:, None] == jnp.arange(BN)[None, :]).astype(mxu_dtype)   # (NR, BN)
    esel = (n_r[:, None] == jnp.arange(d_state)[None, :]).astype(mxu_dtype)  # (NR, ds)
    qsum = rrep.T                                                # (BN, NR)

    m_ids = jnp.arange(BN)
    taps = []
    for j in range(1, d_conv):
        tap = ((m_ids[None, :] == m_ids[:, None] - j)
               & ((m_ids % N) >= j)[:, None])                    # causal, per-batch
        taps.append(tap.astype(mxu_dtype))
    shift_mat = jnp.concatenate(taps, axis=0)                    # ((d_conv-1)*BN, BN)

    # ---- per-stream weights in kernel-friendly layout (done once, wrapper) ----
    def prep(p):
        w_dt = p["wx"][:, :dt_rank] @ p["wdt"]                   # pre-compose dt path
        wbig = jnp.concatenate([w_dt, p["wx"][:, dt_rank:]], axis=-1)
        return dict(
            win=p["win"].astype(mxu_dtype),                      # (C, 2*d_inner)
            wconv=p["wconv"].T.astype(f32),                      # (d_conv, d_inner)
            bconv=p["bconv"].astype(f32),
            wbig=wbig.astype(mxu_dtype),                         # (d_inner, d_inner+2*ds)
            bdt=p["bdt"].astype(f32),
            aneg=(-jnp.exp(p["alog"])).T.astype(mxu_dtype),      # (d_state, d_inner)
            dD=p["dD"].astype(f32),
            wout=p["wout"].astype(mxu_dtype),                    # (d_inner, C)
        )

    keys = ("win", "wconv", "bconv", "wbig", "bdt", "aneg", "dD", "wout")
    pu, po = prep(under_params), prep(over_params)
    stacked = [jnp.stack([pu[k], po[k]], axis=0) for k in keys]

    act_spec = pl.BlockSpec((BN, C), lambda s: (0, 0))
    ln_spec = pl.BlockSpec((1, C), lambda s: (0, 0))
    const_spec = lambda a: pl.BlockSpec(a.shape, lambda s: (0, 0))

    in_specs = [act_spec] * 4 + [ln_spec] * 4
    in_specs += [const_spec(rrep), const_spec(esel), const_spec(qsum),
                 const_spec(shift_mat)]
    for w in stacked:
        in_specs.append(
            pl.BlockSpec((None,) + w.shape[1:], lambda s: (s, 0, 0)))

    out_spec = pl.BlockSpec((None, BN, C), lambda s: (s, 0, 0))
    out_sds = jax.ShapeDtypeStruct((2, BN, C), under.dtype)

    kern = functools.partial(
        _token_swap_mamba_kernel,
        d_inner=d_inner, d_state=d_state, d_conv=d_conv,
        seq_len=N, batch=B, half=C // 2)

    swap, resid = pl.pallas_call(
        kern,
        out_shape=(out_sds, out_sds),
        grid=(2,),
        in_specs=in_specs,
        out_specs=(out_spec, out_spec),
        scratch_shapes=[pltpu.VMEM((NR, d_inner), jnp.float32)],
        compiler_params=pltpu.CompilerParams(
            dimension_semantics=("parallel",)),
    )(under_f, over_f, ures_f, ores_f, ln1_w, ln1_b, ln2_w, ln2_b,
      rrep, esel, qsum, shift_mat, *stacked)

    swap = swap.reshape(2, B, N, C)
    resid = resid.reshape(2, B, N, C)
    # under_swap, over_swap, under_residual, over_residual
    return swap[0], swap[1], resid[0], resid[1]


# --------------------------------------------------------------------------
# Deterministic parameter init + plain-JAX reference for validation
# --------------------------------------------------------------------------
def init_mamba_params(key, dim):
    d_state, d_conv, expand = 16, 4, 2
    d_inner = expand * dim
    dt_rank = (dim + 15) // 16
    ks = jax.random.split(key, 7)

    def u(k, shape, scale):
        return jax.random.uniform(k, shape, jnp.float32, -1.0, 1.0) * scale

    params = dict(
        win=u(ks[0], (dim, 2 * d_inner), 0.2),
        wconv=u(ks[1], (d_inner, d_conv), 0.3),
        bconv=u(ks[2], (1, d_inner), 0.1),
        wx=u(ks[3], (d_inner, dt_rank + 2 * d_state), 0.2),
        wdt=u(ks[4], (dt_rank, d_inner), 0.5),
        bdt=u(ks[5], (1, d_inner), 0.1),
        alog=jnp.log(jnp.broadcast_to(
            jnp.arange(1, d_state + 1, dtype=jnp.float32), (d_inner, d_state))),
        dD=jnp.ones((1, d_inner), jnp.float32),
        wout=u(ks[6], (d_inner, dim), 0.2),
    )
    meta = dict(d_inner=d_inner, d_state=d_state, d_conv=d_conv, dt_rank=dt_rank)
    return params, meta


def _mamba_ref(x, p, meta):
    d_inner, d_state = meta["d_inner"], meta["d_state"]
    d_conv, dt_rank = meta["d_conv"], meta["dt_rank"]
    B, N, C = x.shape
    outs = []
    for b in range(B):
        xz = x[b] @ p["win"]
        xs, z = xz[:, :d_inner], xz[:, d_inner:]
        xp = jnp.concatenate([jnp.zeros((d_conv - 1, d_inner)), xs], axis=0)
        conv = jnp.broadcast_to(p["bconv"][0][None, :], (N, d_inner))
        for k in range(d_conv):
            conv = conv + xp[k:k + N, :] * p["wconv"][:, k][None, :]
        x_act = jax.nn.silu(conv)
        x_dbl = x_act @ p["wx"]
        dt_low = x_dbl[:, :dt_rank]
        Bm = x_dbl[:, dt_rank:dt_rank + d_state]
        Cm = x_dbl[:, dt_rank + d_state:]
        dt = jax.nn.softplus(dt_low @ p["wdt"] + p["bdt"][0][None, :])
        A = -jnp.exp(p["alog"])
        Dv = p["dD"][0]
        h = jnp.zeros((d_inner, d_state))
        ys = []
        for t in range(N):
            dt_t = dt[t][:, None]
            h = jnp.exp(dt_t * A) * h + dt_t * Bm[t][None, :] * x_act[t][:, None]
            ys.append((jnp.sum(h * Cm[t][None, :], axis=-1) + Dv * x_act[t])[None, :])
        y = jnp.concatenate(ys, axis=0)
        outs.append((y * jax.nn.silu(z)) @ p["wout"])
    return jnp.stack(outs, axis=0)


def _ref_forward(under, over, ur, orr, w1, b1, w2, b2, pu, po, meta):
    ur2, or2 = under + ur, over + orr

    def ln(x, w, b):
        mu = jnp.mean(x, axis=-1, keepdims=True)
        var = jnp.mean((x - mu) ** 2, axis=-1, keepdims=True)
        return (x - mu) / jnp.sqrt(var + 1e-5) * w[0] + b[0]

    u, o = ln(ur2, w1, b1), ln(or2, w2, b2)
    C = u.shape[-1]
    half = C // 2
    us = jnp.concatenate([o[..., :half], u[..., half:]], axis=-1)
    os_ = jnp.concatenate([u[..., :half], o[..., half:]], axis=-1)
    return _mamba_ref(us, pu, meta), _mamba_ref(os_, po, meta), ur2, or2


# --------------------------------------------------------------------------
if __name__ == "__main__":
    B, N, C = 2, 8, 32

    key = jax.random.PRNGKey(0)
    k_in, k_ln, k_pu, k_po = jax.random.split(key, 4)
    ki = jax.random.split(k_in, 4)
    under = jax.random.normal(ki[0], (B, N, C), jnp.float32)
    over = jax.random.normal(ki[1], (B, N, C), jnp.float32)
    under_res = jax.random.normal(ki[2], (B, N, C), jnp.float32)
    over_res = jax.random.normal(ki[3], (B, N, C), jnp.float32)

    # WithBias LayerNorm params (slightly randomized to exercise scale/bias)
    kl = jax.random.split(k_ln, 4)
    ln1_w = 1.0 + 0.05 * jax.random.normal(kl[0], (1, C), jnp.float32)
    ln1_b = 0.05 * jax.random.normal(kl[1], (1, C), jnp.float32)
    ln2_w = 1.0 + 0.05 * jax.random.normal(kl[2], (1, C), jnp.float32)
    ln2_b = 0.05 * jax.random.normal(kl[3], (1, C), jnp.float32)

    under_params, meta = init_mamba_params(k_pu, C)
    over_params, _ = init_mamba_params(k_po, C)

    outs = token_swap_mamba(under, over, under_res, over_res,
                            ln1_w, ln1_b, ln2_w, ln2_b,
                            under_params, over_params, meta)
    outs = jax.block_until_ready(outs)

    # plain-JAX reference check
    refs = _ref_forward(under, over, under_res, over_res,
                        ln1_w, ln1_b, ln2_w, ln2_b,
                        under_params, over_params, meta)
    for got, ref in zip(outs, refs):
        assert got.shape == ref.shape
        err = float(jnp.max(jnp.abs(got - ref)))
        assert jnp.allclose(got, ref, rtol=1e-3, atol=2e-3), err

    print("KERNEL_OK")
</pallas_src>

<mosaic_0001>
module attributes {stable_mosaic.version = 11 : i64} {
  func.func @_token_swap_mamba_kernel(%arg0: i32, %arg1: memref<16x32xf32, #tpu.memory_space<vmem>>, %arg2: memref<16x32xf32, #tpu.memory_space<vmem>>, %arg3: memref<16x32xf32, #tpu.memory_space<vmem>>, %arg4: memref<16x32xf32, #tpu.memory_space<vmem>>, %arg5: memref<1x32xf32, #tpu.memory_space<vmem>>, %arg6: memref<1x32xf32, #tpu.memory_space<vmem>>, %arg7: memref<1x32xf32, #tpu.memory_space<vmem>>, %arg8: memref<1x32xf32, #tpu.memory_space<vmem>>, %arg9: memref<256x16xf32, #tpu.memory_space<vmem>>, %arg10: memref<256x16xf32, #tpu.memory_space<vmem>>, %arg11: memref<16x256xf32, #tpu.memory_space<vmem>>, %arg12: memref<48x16xf32, #tpu.memory_space<vmem>>, %arg13: memref<1x32x128xf32, #tpu.memory_space<vmem>>, %arg14: memref<1x4x64xf32, #tpu.memory_space<vmem>>, %arg15: memref<1x1x64xf32, #tpu.memory_space<vmem>>, %arg16: memref<1x64x96xf32, #tpu.memory_space<vmem>>, %arg17: memref<1x1x64xf32, #tpu.memory_space<vmem>>, %arg18: memref<1x16x64xf32, #tpu.memory_space<vmem>>, %arg19: memref<1x1x64xf32, #tpu.memory_space<vmem>>, %arg20: memref<1x64x32xf32, #tpu.memory_space<vmem>>, %arg21: memref<1x16x32xf32, #tpu.memory_space<vmem>>, %arg22: memref<1x16x32xf32, #tpu.memory_space<vmem>>, %arg23: memref<256x64xf32, #tpu.memory_space<vmem>>) attributes {dimension_semantics = [#tpu.dimension_semantics<parallel>], iteration_bounds = array<i64: 2>, scalar_prefetch = 0 : i64, scratch_operands = 1 : i64, tpu.core_type = #tpu.core_type<tc>, window_params = [{pipeline_mode = #tpu.pipeline_mode<synchronous>, transform_indices = @transform_0, window_bounds = array<i64: 16, 32>}, {pipeline_mode = #tpu.pipeline_mode<synchronous>, transform_indices = @transform_1, window_bounds = array<i64: 16, 32>}, {pipeline_mode = #tpu.pipeline_mode<synchronous>, transform_indices = @transform_2, window_bounds = array<i64: 16, 32>}, {pipeline_mode = #tpu.pipeline_mode<synchronous>, transform_indices = @transform_3, window_bounds = array<i64: 16, 32>}, {pipeline_mode = #tpu.pipeline_mode<synchronous>, transform_indices = @transform_4, window_bounds = array<i64: 1, 32>}, {pipeline_mode = #tpu.pipeline_mode<synchronous>, transform_indices = @transform_5, window_bounds = array<i64: 1, 32>}, {pipeline_mode = #tpu.pipeline_mode<synchronous>, transform_indices = @transform_6, window_bounds = array<i64: 1, 32>}, {pipeline_mode = #tpu.pipeline_mode<synchronous>, transform_indices = @transform_7, window_bounds = array<i64: 1, 32>}, {pipeline_mode = #tpu.pipeline_mode<synchronous>, transform_indices = @transform_8, window_bounds = array<i64: 256, 16>}, {pipeline_mode = #tpu.pipeline_mode<synchronous>, transform_indices = @transform_9, window_bounds = array<i64: 256, 16>}, {pipeline_mode = #tpu.pipeline_mode<synchronous>, transform_indices = @transform_10, window_bounds = array<i64: 16, 256>}, {pipeline_mode = #tpu.pipeline_mode<synchronous>, transform_indices = @transform_11, window_bounds = array<i64: 48, 16>}, {transform_indices = @transform_12, window_bounds = array<i64: 1, 32, 128>}, {transform_indices = @transform_13, window_bounds = array<i64: 1, 4, 64>}, {transform_indices = @transform_14, window_bounds = array<i64: 1, 1, 64>}, {transform_indices = @transform_15, window_bounds = array<i64: 1, 64, 96>}, {transform_indices = @transform_16, window_bounds = array<i64: 1, 1, 64>}, {transform_indices = @transform_17, window_bounds = array<i64: 1, 16, 64>}, {transform_indices = @transform_18, window_bounds = array<i64: 1, 1, 64>}, {transform_indices = @transform_19, window_bounds = array<i64: 1, 64, 32>}, {transform_indices = @transform_20, window_bounds = array<i64: 1, 16, 32>}, {transform_indices = @transform_21, window_bounds = array<i64: 1, 16, 32>}]} {
    %c0 = arith.constant 0 : index
    %c0_0 = arith.constant 0 : index
    %0 = vector.load %arg1[%c0, %c0_0] : memref<16x32xf32, #tpu.memory_space<vmem>>, vector<16x32xf32>
    %c0_1 = arith.constant 0 : index
    %c0_2 = arith.constant 0 : index
    %1 = vector.load %arg3[%c0_1, %c0_2] : memref<16x32xf32, #tpu.memory_space<vmem>>, vector<16x32xf32>
    %2 = arith.addf %0, %1 : vector<16x32xf32>
    %c0_3 = arith.constant 0 : index
    %c0_4 = arith.constant 0 : index
    %3 = vector.load %arg2[%c0_3, %c0_4] : memref<16x32xf32, #tpu.memory_space<vmem>>, vector<16x32xf32>
    %c0_5 = arith.constant 0 : index
    %c0_6 = arith.constant 0 : index
    %4 = vector.load %arg4[%c0_5, %c0_6] : memref<16x32xf32, #tpu.memory_space<vmem>>, vector<16x32xf32>
    %5 = arith.addf %3, %4 : vector<16x32xf32>
    %c0_i32 = arith.constant 0 : i32
    %6 = arith.cmpi eq, %arg0, %c0_i32 : i32
    %7 = arith.select %6, %2, %5 : vector<16x32xf32>
    %c0_7 = arith.constant 0 : index
    %c0_8 = arith.constant 0 : index
    %c0_9 = arith.constant 0 : index
    %8 = vector.load %arg22[%c0_7, %c0_8, %c0_9] : memref<1x16x32xf32, #tpu.memory_space<vmem>>, vector<1x16x32xf32>
    %9 = vector.shape_cast %8 : vector<1x16x32xf32> to vector<16x32xf32>
    %10 = vector.shape_cast %7 : vector<16x32xf32> to vector<1x16x32xf32>
    tpu.vector_store %arg22[%c0_7, %c0_8, %c0_9], %10 {strides = array<i32>} : memref<1x16x32xf32, #tpu.memory_space<vmem>>, vector<1x16x32xf32>,
    %c0_10 = arith.constant 0 : index
    %c0_11 = arith.constant 0 : index
    %11 = vector.load %arg5[%c0_10, %c0_11] : memref<1x32xf32, #tpu.memory_space<vmem>>, vector<1x32xf32>
    %c0_12 = arith.constant 0 : index
    %c0_13 = arith.constant 0 : index
    %12 = vector.load %arg6[%c0_12, %c0_13] : memref<1x32xf32, #tpu.memory_space<vmem>>, vector<1x32xf32>
    %cst = arith.constant dense<0.000000e+00> : vector<16xf32>
    %13 = vector.multi_reduction <add>, %2, %cst [1] : vector<16x32xf32> to vector<16xf32>
    %14 = vector.shape_cast %13 : vector<16xf32> to vector<16x1xf32>
    %cst_14 = arith.constant 3.200000e+01 : f32
    %15 = vector.broadcast %cst_14 : f32 to vector<16x1xf32>
    %16 = arith.divf %14, %15 : vector<16x1xf32>
    %17 = vector.broadcast %16 : vector<16x1xf32> to vector<16x32xf32>
    %18 = arith.subf %2, %17 : vector<16x32xf32>
    %19 = arith.mulf %18, %18 : vector<16x32xf32>
    %cst_15 = arith.constant dense<0.000000e+00> : vector<16xf32>
    %20 = vector.multi_reduction <add>, %19, %cst_15 [1] : vector<16x32xf32> to vector<16xf32>
    %21 = vector.shape_cast %20 : vector<16xf32> to vector<16x1xf32>
    %cst_16 = arith.constant 3.200000e+01 : f32
    %22 = vector.broadcast %cst_16 : f32 to vector<16x1xf32>
    %23 = arith.divf %21, %22 : vector<16x1xf32>
    %24 = vector.broadcast %16 : vector<16x1xf32> to vector<16x32xf32>
    %25 = arith.subf %2, %24 : vector<16x32xf32>
    %cst_17 = arith.constant 9.99999974E-6 : f32
    %26 = vector.broadcast %cst_17 : f32 to vector<16x1xf32>
    %27 = arith.addf %23, %26 : vector<16x1xf32>
    %28 = math.rsqrt %27 : vector<16x1xf32>
    %29 = vector.broadcast %28 : vector<16x1xf32> to vector<16x32xf32>
    %30 = arith.mulf %25, %29 : vector<16x32xf32>
    %31 = vector.broadcast %11 : vector<1x32xf32> to vector<16x32xf32>
    %32 = arith.mulf %30, %31 : vector<16x32xf32>
    %33 = vector.broadcast %12 : vector<1x32xf32> to vector<16x32xf32>
    %34 = arith.addf %32, %33 : vector<16x32xf32>
    %c0_18 = arith.constant 0 : index
    %c0_19 = arith.constant 0 : index
    %35 = vector.load %arg7[%c0_18, %c0_19] : memref<1x32xf32, #tpu.memory_space<vmem>>, vector<1x32xf32>
    %c0_20 = arith.constant 0 : index
    %c0_21 = arith.constant 0 : index
    %36 = vector.load %arg8[%c0_20, %c0_21] : memref<1x32xf32, #tpu.memory_space<vmem>>, vector<1x32xf32>
    %cst_22 = arith.constant dense<0.000000e+00> : vector<16xf32>
    %37 = vector.multi_reduction <add>, %5, %cst_22 [1] : vector<16x32xf32> to vector<16xf32>
    %38 = vector.shape_cast %37 : vector<16xf32> to vector<16x1xf32>
    %cst_23 = arith.constant 3.200000e+01 : f32
    %39 = vector.broadcast %cst_23 : f32 to vector<16x1xf32>
    %40 = arith.divf %38, %39 : vector<16x1xf32>
    %41 = vector.broadcast %40 : vector<16x1xf32> to vector<16x32xf32>
    %42 = arith.subf %5, %41 : vector<16x32xf32>
    %43 = arith.mulf %42, %42 : vector<16x32xf32>
    %cst_24 = arith.constant dense<0.000000e+00> : vector<16xf32>
    %44 = vector.multi_reduction <add>, %43, %cst_24 [1] : vector<16x32xf32> to vector<16xf32>
    %45 = vector.shape_cast %44 : vector<16xf32> to vector<16x1xf32>
    %cst_25 = arith.constant 3.200000e+01 : f32
    %46 = vector.broadcast %cst_25 : f32 to vector<16x1xf32>
    %47 = arith.divf %45, %46 : vector<16x1xf32>
    %48 = vector.broadcast %40 : vector<16x1xf32> to vector<16x32xf32>
    %49 = arith.subf %5, %48 : vector<16x32xf32>
    %cst_26 = arith.constant 9.99999974E-6 : f32
    %50 = vector.broadcast %cst_26 : f32 to vector<16x1xf32>
    %51 = arith.addf %47, %50 : vector<16x1xf32>
    %52 = math.rsqrt %51 : vector<16x1xf32>
    %53 = vector.broadcast %52 : vector<16x1xf32> to vector<16x32xf32>
    %54 = arith.mulf %49, %53 : vector<16x32xf32>
    %55 = vector.broadcast %35 : vector<1x32xf32> to vector<16x32xf32>
    %56 = arith.mulf %54, %55 : vector<16x32xf32>
    %57 = vector.broadcast %36 : vector<1x32xf32> to vector<16x32xf32>
    %58 = arith.addf %56, %57 : vector<16x32xf32>
    %59 = tpu.iota {dimensions = array<i32: 1>} : vector<16x32xi32>
    %c16_i32 = arith.constant 16 : i32
    %60 = vector.broadcast %c16_i32 : i32 to vector<16x32xi32>
    %61 = arith.cmpi slt, %59, %60 : vector<16x32xi32>
    %c1_i32 = arith.constant 1 : i32
    %62 = arith.cmpi eq, %arg0, %c1_i32 : i32
    %63 = vector.broadcast %62 : i1 to vector<16x32xi1>
    %64 = arith.xori %61, %63 : vector<16x32xi1>
    %65 = arith.select %64, %58, %34 : vector<16x32xi1>, vector<16x32xf32>
    %c0_27 = arith.constant 0 : index
    %c0_28 = arith.constant 0 : index
    %c0_29 = arith.constant 0 : index
    %66 = vector.load %arg13[%c0_27, %c0_28, %c0_29] : memref<1x32x128xf32, #tpu.memory_space<vmem>>, vector<1x32x128xf32>
    %67 = vector.shape_cast %66 : vector<1x32x128xf32> to vector<32x128xf32>
    %cst_30 = arith.constant dense<0.000000e+00> : vector<16x128xf32>
    %68 = tpu.matmul %65, %67, %cst_30 {dimension_numbers = #tpu.dot_dimension_numbers<[1], [0], [0], [1], [0, 0, 1, 1], [], []>} : vector<16x32xf32>, vector<32x128xf32>, vector<16x128xf32> -> vector<16x128xf32>
    %69 = vector.extract_strided_slice %68 {offsets = [0, 0], sizes = [16, 64], strides = [1, 1]} : vector<16x128xf32> to vector<16x64xf32>
    %70 = vector.extract_strided_slice %68 {offsets = [0, 64], sizes = [16, 64], strides = [1, 1]} : vector<16x128xf32> to vector<16x64xf32>
    %c0_31 = arith.constant 0 : index
    %c0_32 = arith.constant 0 : index
    %c0_33 = arith.constant 0 : index
    %71 = vector.load %arg14[%c0_31, %c0_32, %c0_33] : memref<1x4x64xf32, #tpu.memory_space<vmem>>, vector<1x4x64xf32>
    %72 = vector.shape_cast %71 : vector<1x4x64xf32> to vector<4x64xf32>
    %c0_34 = arith.constant 0 : index
    %c0_35 = arith.constant 0 : index
    %73 = vector.load %arg12[%c0_34, %c0_35] : memref<48x16xf32, #tpu.memory_space<vmem>>, vector<48x16xf32>
    %cst_36 = arith.constant dense<0.000000e+00> : vector<48x64xf32>
    %74 = tpu.matmul %73, %69, %cst_36 {dimension_numbers = #tpu.dot_dimension_numbers<[1], [0], [0], [1], [0, 0, 1, 1], [], []>} : vector<48x16xf32>, vector<16x64xf32>, vector<48x64xf32> -> vector<48x64xf32>
    %c0_37 = arith.constant 0 : index
    %c0_38 = arith.constant 0 : index
    %c0_39 = arith.constant 0 : index
    %75 = vector.load %arg15[%c0_37, %c0_38, %c0_39] : memref<1x1x64xf32, #tpu.memory_space<vmem>>, vector<1x1x64xf32>
    %76 = vector.shape_cast %75 : vector<1x1x64xf32> to vector<1x64xf32>
    %77 = vector.extract_strided_slice %72 {offsets = [3, 0], sizes = [1, 64], strides = [1, 1]} : vector<4x64xf32> to vector<1x64xf32>
    %78 = vector.broadcast %77 : vector<1x64xf32> to vector<16x64xf32>
    %79 = arith.mulf %69, %78 : vector<16x64xf32>
    %80 = vector.broadcast %76 : vector<1x64xf32> to vector<16x64xf32>
    %81 = arith.addf %80, %79 : vector<16x64xf32>
    %82 = vector.extract_strided_slice %74 {offsets = [0, 0], sizes = [16, 64], strides = [1, 1]} : vector<48x64xf32> to vector<16x64xf32>
    %83 = vector.extract_strided_slice %72 {offsets = [2, 0], sizes = [1, 64], strides = [1, 1]} : vector<4x64xf32> to vector<1x64xf32>
    %84 = vector.broadcast %83 : vector<1x64xf32> to vector<16x64xf32>
    %85 = arith.mulf %82, %84 : vector<16x64xf32>
    %86 = arith.addf %81, %85 : vector<16x64xf32>
    %87 = vector.extract_strided_slice %74 {offsets = [16, 0], sizes = [16, 64], strides = [1, 1]} : vector<48x64xf32> to vector<16x64xf32>
    %88 = vector.extract_strided_slice %72 {offsets = [1, 0], sizes = [1, 64], strides = [1, 1]} : vector<4x64xf32> to vector<1x64xf32>
    %89 = vector.broadcast %88 : vector<1x64xf32> to vector<16x64xf32>
    %90 = arith.mulf %87, %89 : vector<16x64xf32>
    %91 = arith.addf %86, %90 : vector<16x64xf32>
    %92 = vector.extract_strided_slice %74 {offsets = [32, 0], sizes = [16, 64], strides = [1, 1]} : vector<48x64xf32> to vector<16x64xf32>
    %93 = vector.extract_strided_slice %72 {offsets = [0, 0], sizes = [1, 64], strides = [1, 1]} : vector<4x64xf32> to vector<1x64xf32>
    %94 = vector.broadcast %93 : vector<1x64xf32> to vector<16x64xf32>
    %95 = arith.mulf %92, %94 : vector<16x64xf32>
    %96 = arith.addf %91, %95 : vector<16x64xf32>
    %cst_40 = arith.constant 0.000000e+00 : f32
    %97 = vector.broadcast %cst_40 : f32 to vector<16x64xf32>
    %98 = arith.subf %97, %96 : vector<16x64xf32>
    %99 = math.exp %98 : vector<16x64xf32>
    %cst_41 = arith.constant 1.000000e+00 : f32
    %100 = vector.broadcast %cst_41 : f32 to vector<16x64xf32>
    %101 = arith.addf %100, %99 : vector<16x64xf32>
    %cst_42 = arith.constant 1.000000e+00 : f32
    %102 = vector.broadcast %cst_42 : f32 to vector<16x64xf32>
    %103 = arith.divf %102, %101 : vector<16x64xf32>
    %104 = arith.mulf %96, %103 : vector<16x64xf32>
    %c0_43 = arith.constant 0 : index
    %c0_44 = arith.constant 0 : index
    %c0_45 = arith.constant 0 : index
    %105 = vector.load %arg16[%c0_43, %c0_44, %c0_45] : memref<1x64x96xf32, #tpu.memory_space<vmem>>, vector<1x64x96xf32>
    %106 = vector.shape_cast %105 : vector<1x64x96xf32> to vector<64x96xf32>
    %cst_46 = arith.constant dense<0.000000e+00> : vector<16x96xf32>
    %107 = tpu.matmul %104, %106, %cst_46 {dimension_numbers = #tpu.dot_dimension_numbers<[1], [0], [0], [1], [0, 0, 1, 1], [], []>} : vector<16x64xf32>, vector<64x96xf32>, vector<16x96xf32> -> vector<16x96xf32>
    %108 = vector.extract_strided_slice %107 {offsets = [0, 0], sizes = [16, 64], strides = [1, 1]} : vector<16x96xf32> to vector<16x64xf32>
    %c0_47 = arith.constant 0 : index
    %c0_48 = arith.constant 0 : index
    %c0_49 = arith.constant 0 : index
    %109 = vector.load %arg17[%c0_47, %c0_48, %c0_49] : memref<1x1x64xf32, #tpu.memory_space<vmem>>, vector<1x1x64xf32>
    %110 = vector.shape_cast %109 : vector<1x1x64xf32> to vector<1x64xf32>
    %111 = vector.broadcast %110 : vector<1x64xf32> to vector<16x64xf32>
    %112 = arith.addf %108, %111 : vector<16x64xf32>
    %cst_50 = arith.constant 0.000000e+00 : f32
    %113 = vector.broadcast %cst_50 : f32 to vector<16x64xf32>
    %114 = arith.maximumf %112, %113 : vector<16x64xf32>
    %115 = math.absf %112 : vector<16x64xf32>
    %cst_51 = arith.constant 0.000000e+00 : f32
    %116 = vector.broadcast %cst_51 : f32 to vector<16x64xf32>
    %117 = arith.subf %116, %115 : vector<16x64xf32>
    %118 = math.exp %117 : vector<16x64xf32>
    %cst_52 = arith.constant 1.000000e+00 : f32
    %119 = vector.broadcast %cst_52 : f32 to vector<16x64xf32>
    %120 = arith.addf %119, %118 : vector<16x64xf32>
    %121 = math.log %120 : vector<16x64xf32>
    %122 = arith.addf %114, %121 : vector<16x64xf32>
    %123 = arith.mulf %122, %104 : vector<16x64xf32>
    %124 = vector.extract_strided_slice %107 {offsets = [0, 64], sizes = [16, 32], strides = [1, 1]} : vector<16x96xf32> to vector<16x32xf32>
    %125 = tpu.concatenate %122, %123, %124 in 1 : vector<16x64xf32>, vector<16x64xf32>, vector<16x32xf32> -> vector<16x160xf32>
    %c0_53 = arith.constant 0 : index
    %c0_54 = arith.constant 0 : index
    %126 = vector.load %arg9[%c0_53, %c0_54] : memref<256x16xf32, #tpu.memory_space<vmem>>, vector<256x16xf32>
    %cst_55 = arith.constant dense<0.000000e+00> : vector<256x160xf32>
    %127 = tpu.matmul %126, %125, %cst_55 {dimension_numbers = #tpu.dot_dimension_numbers<[1], [0], [0], [1], [0, 0, 1, 1], [], []>} : vector<256x16xf32>, vector<16x160xf32>, vector<256x160xf32> -> vector<256x160xf32>
    %128 = vector.extract_strided_slice %127 {offsets = [0, 0], sizes = [256, 64], strides = [1, 1]} : vector<256x160xf32> to vector<256x64xf32>
    %129 = vector.extract_strided_slice %127 {offsets = [0, 64], sizes = [256, 64], strides = [1, 1]} : vector<256x160xf32> to vector<256x64xf32>
    %c0_56 = arith.constant 0 : index
    %c0_57 = arith.constant 0 : index
    %130 = vector.load %arg10[%c0_56, %c0_57] : memref<256x16xf32, #tpu.memory_space<vmem>>, vector<256x16xf32>
    %131 = vector.extract_strided_slice %127 {offsets = [0, 128], sizes = [256, 16], strides = [1, 1]} : vector<256x160xf32> to vector<256x16xf32>
    %132 = arith.mulf %131, %130 : vector<256x16xf32>
    %cst_58 = arith.constant dense<0.000000e+00> : vector<256xf32>
    %133 = vector.multi_reduction <add>, %132, %cst_58 [1] : vector<256x16xf32> to vector<256xf32>
    %134 = vector.shape_cast %133 : vector<256xf32> to vector<256x1xf32>
    %135 = vector.extract_strided_slice %127 {offsets = [0, 144], sizes = [256, 16], strides = [1, 1]} : vector<256x160xf32> to vector<256x16xf32>
    %136 = arith.mulf %135, %130 : vector<256x16xf32>
    %cst_59 = arith.constant dense<0.000000e+00> : vector<256xf32>
    %137 = vector.multi_reduction <add>, %136, %cst_59 [1] : vector<256x16xf32> to vector<256xf32>
    %138 = vector.shape_cast %137 : vector<256xf32> to vector<256x1xf32>
    %c0_60 = arith.constant 0 : index
    %c0_61 = arith.constant 0 : index
    %c0_62 = arith.constant 0 : index
    %139 = vector.load %arg18[%c0_60, %c0_61, %c0_62] : memref<1x16x64xf32, #tpu.memory_space<vmem>>, vector<1x16x64xf32>
    %140 = vector.shape_cast %139 : vector<1x16x64xf32> to vector<16x64xf32>
    %cst_63 = arith.constant dense<0.000000e+00> : vector<256x64xf32>
    %141 = tpu.matmul %130, %140, %cst_63 {dimension_numbers = #tpu.dot_dimension_numbers<[1], [0], [0], [1], [0, 0, 1, 1], [], []>} : vector<256x16xf32>, vector<16x64xf32>, vector<256x64xf32> -> vector<256x64xf32>
    %142 = arith.mulf %128, %141 : vector<256x64xf32>
    %143 = math.exp %142 : vector<256x64xf32>
    %144 = vector.broadcast %134 : vector<256x1xf32> to vector<256x64xf32>
    %145 = arith.mulf %129, %144 : vector<256x64xf32>
    %cst_64 = arith.constant 0.000000e+00 : f32
    %146 = vector.broadcast %cst_64 : f32 to vector<32x64xf32>
    %147 = vector.extract_strided_slice %143 {offsets = [0, 0], sizes = [32, 64], strides = [1, 1]} : vector<256x64xf32> to vector<32x64xf32>
    %148 = arith.mulf %147, %146 : vector<32x64xf32>
    %149 = vector.extract_strided_slice %145 {offsets = [0, 0], sizes = [32, 64], strides = [1, 1]} : vector<256x64xf32> to vector<32x64xf32>
    %150 = arith.addf %148, %149 : vector<32x64xf32>
    %c0_65 = arith.constant 0 : index
    %c0_66 = arith.constant 0 : index
    %151 = vector.load %arg23[%c0_65, %c0_66] : memref<256x64xf32, #tpu.memory_space<vmem>>, vector<32x64xf32>
    tpu.vector_store %arg23[%c0_65, %c0_66], %150 {strides = array<i32>} : memref<256x64xf32, #tpu.memory_space<vmem>>, vector<32x64xf32>,
    %152 = vector.extract_strided_slice %143 {offsets = [32, 0], sizes = [32, 64], strides = [1, 1]} : vector<256x64xf32> to vector<32x64xf32>
    %153 = arith.mulf %152, %150 : vector<32x64xf32>
    %154 = vector.extract_strided_slice %145 {offsets = [32, 0], sizes = [32, 64], strides = [1, 1]} : vector<256x64xf32> to vector<32x64xf32>
    %155 = arith.addf %153, %154 : vector<32x64xf32>
    %c32 = arith.constant 32 : index
    %c0_67 = arith.constant 0 : index
    %156 = vector.load %arg23[%c32, %c0_67] : memref<256x64xf32, #tpu.memory_space<vmem>>, vector<32x64xf32>
    tpu.vector_store %arg23[%c32, %c0_67], %155 {strides = array<i32>} : memref<256x64xf32, #tpu.memory_space<vmem>>, vector<32x64xf32>,
    %157 = vector.extract_strided_slice %143 {offsets = [64, 0], sizes = [32, 64], strides = [1, 1]} : vector<256x64xf32> to vector<32x64xf32>
    %158 = arith.mulf %157, %155 : vector<32x64xf32>
    %159 = vector.extract_strided_slice %145 {offsets = [64, 0], sizes = [32, 64], strides = [1, 1]} : vector<256x64xf32> to vector<32x64xf32>
    %160 = arith.addf %158, %159 : vector<32x64xf32>
    %c64 = arith.constant 64 : index
    %c0_68 = arith.constant 0 : index
    %161 = vector.load %arg23[%c64, %c0_68] : memref<256x64xf32, #tpu.memory_space<vmem>>, vector<32x64xf32>
    tpu.vector_store %arg23[%c64, %c0_68], %160 {strides = array<i32>} : memref<256x64xf32, #tpu.memory_space<vmem>>, vector<32x64xf32>,
    %162 = vector.extract_strided_slice %143 {offsets = [96, 0], sizes = [32, 64], strides = [1, 1]} : vector<256x64xf32> to vector<32x64xf32>
    %163 = arith.mulf %162, %160 : vector<32x64xf32>
    %164 = vector.extract_strided_slice %145 {offsets = [96, 0], sizes = [32, 64], strides = [1, 1]} : vector<256x64xf32> to vector<32x64xf32>
    %165 = arith.addf %163, %164 : vector<32x64xf32>
    %c96 = arith.constant 96 : index
    %c0_69 = arith.constant 0 : index
    %166 = vector.load %arg23[%c96, %c0_69] : memref<256x64xf32, #tpu.memory_space<vmem>>, vector<32x64xf32>
    tpu.vector_store %arg23[%c96, %c0_69], %165 {strides = array<i32>} : memref<256x64xf32, #tpu.memory_space<vmem>>, vector<32x64xf32>,
    %167 = vector.extract_strided_slice %143 {offsets = [128, 0], sizes = [32, 64], strides = [1, 1]} : vector<256x64xf32> to vector<32x64xf32>
    %168 = arith.mulf %167, %165 : vector<32x64xf32>
    %169 = vector.extract_strided_slice %145 {offsets = [128, 0], sizes = [32, 64], strides = [1, 1]} : vector<256x64xf32> to vector<32x64xf32>
    %170 = arith.addf %168, %169 : vector<32x64xf32>
    %c128 = arith.constant 128 : index
    %c0_70 = arith.constant 0 : index
    %171 = vector.load %arg23[%c128, %c0_70] : memref<256x64xf32, #tpu.memory_space<vmem>>, vector<32x64xf32>
    tpu.vector_store %arg23[%c128, %c0_70], %170 {strides = array<i32>} : memref<256x64xf32, #tpu.memory_space<vmem>>, vector<32x64xf32>,
    %172 = vector.extract_strided_slice %143 {offsets = [160, 0], sizes = [32, 64], strides = [1, 1]} : vector<256x64xf32> to vector<32x64xf32>
    %173 = arith.mulf %172, %170 : vector<32x64xf32>
    %174 = vector.extract_strided_slice %145 {offsets = [160, 0], sizes = [32, 64], strides = [1, 1]} : vector<256x64xf32> to vector<32x64xf32>
    %175 = arith.addf %173, %174 : vector<32x64xf32>
    %c160 = arith.constant 160 : index
    %c0_71 = arith.constant 0 : index
    %176 = vector.load %arg23[%c160, %c0_71] : memref<256x64xf32, #tpu.memory_space<vmem>>, vector<32x64xf32>
    tpu.vector_store %arg23[%c160, %c0_71], %175 {strides = array<i32>} : memref<256x64xf32, #tpu.memory_space<vmem>>, vector<32x64xf32>,
    %177 = vector.extract_strided_slice %143 {offsets = [192, 0], sizes = [32, 64], strides = [1, 1]} : vector<256x64xf32> to vector<32x64xf32>
    %178 = arith.mulf %177, %175 : vector<32x64xf32>
    %179 = vector.extract_strided_slice %145 {offsets = [192, 0], sizes = [32, 64], strides = [1, 1]} : vector<256x64xf32> to vector<32x64xf32>
    %180 = arith.addf %178, %179 : vector<32x64xf32>
    %c192 = arith.constant 192 : index
    %c0_72 = arith.constant 0 : index
    %181 = vector.load %arg23[%c192, %c0_72] : memref<256x64xf32, #tpu.memory_space<vmem>>, vector<32x64xf32>
    tpu.vector_store %arg23[%c192, %c0_72], %180 {strides = array<i32>} : memref<256x64xf32, #tpu.memory_space<vmem>>, vector<32x64xf32>,
    %182 = vector.extract_strided_slice %143 {offsets = [224, 0], sizes = [32, 64], strides = [1, 1]} : vector<256x64xf32> to vector<32x64xf32>
    %183 = arith.mulf %182, %180 : vector<32x64xf32>
    %184 = vector.extract_strided_slice %145 {offsets = [224, 0], sizes = [32, 64], strides = [1, 1]} : vector<256x64xf32> to vector<32x64xf32>
    %185 = arith.addf %183, %184 : vector<32x64xf32>
    %c224 = arith.constant 224 : index
    %c0_73 = arith.constant 0 : index
    %186 = vector.load %arg23[%c224, %c0_73] : memref<256x64xf32, #tpu.memory_space<vmem>>, vector<32x64xf32>
    tpu.vector_store %arg23[%c224, %c0_73], %185 {strides = array<i32>} : memref<256x64xf32, #tpu.memory_space<vmem>>, vector<32x64xf32>,
    %c0_74 = arith.constant 0 : index
    %c0_75 = arith.constant 0 : index
    %187 = vector.load %arg11[%c0_74, %c0_75] : memref<16x256xf32, #tpu.memory_space<vmem>>, vector<16x256xf32>
    %c0_76 = arith.constant 0 : index
    %c0_77 = arith.constant 0 : index
    %188 = vector.load %arg23[%c0_76, %c0_77] : memref<256x64xf32, #tpu.memory_space<vmem>>, vector<256x64xf32>
    %189 = vector.broadcast %138 : vector<256x1xf32> to vector<256x64xf32>
    %190 = arith.mulf %188, %189 : vector<256x64xf32>
    %cst_78 = arith.constant dense<0.000000e+00> : vector<16x64xf32>
    %191 = tpu.matmul %187, %190, %cst_78 {dimension_numbers = #tpu.dot_dimension_numbers<[1], [0], [0], [1], [0, 0, 1, 1], [], []>} : vector<16x256xf32>, vector<256x64xf32>, vector<16x64xf32> -> vector<16x64xf32>
    %c0_79 = arith.constant 0 : index
    %c0_80 = arith.constant 0 : index
    %c0_81 = arith.constant 0 : index
    %192 = vector.load %arg19[%c0_79, %c0_80, %c0_81] : memref<1x1x64xf32, #tpu.memory_space<vmem>>, vector<1x1x64xf32>
    %193 = vector.shape_cast %192 : vector<1x1x64xf32> to vector<1x64xf32>
    %194 = vector.broadcast %193 : vector<1x64xf32> to vector<16x64xf32>
    %195 = arith.mulf %104, %194 : vector<16x64xf32>
    %196 = arith.addf %191, %195 : vector<16x64xf32>
    %cst_82 = arith.constant 0.000000e+00 : f32
    %197 = vector.broadcast %cst_82 : f32 to vector<16x64xf32>
    %198 = arith.subf %197, %70 : vector<16x64xf32>
    %199 = math.exp %198 : vector<16x64xf32>
    %cst_83 = arith.constant 1.000000e+00 : f32
    %200 = vector.broadcast %cst_83 : f32 to vector<16x64xf32>
    %201 = arith.addf %200, %199 : vector<16x64xf32>
    %cst_84 = arith.constant 1.000000e+00 : f32
    %202 = vector.broadcast %cst_84 : f32 to vector<16x64xf32>
    %203 = arith.divf %202, %201 : vector<16x64xf32>
    %204 = arith.mulf %70, %203 : vector<16x64xf32>
    %205 = arith.mulf %196, %204 : vector<16x64xf32>
    %c0_85 = arith.constant 0 : index
    %c0_86 = arith.constant 0 : index
    %c0_87 = arith.constant 0 : index
    %206 = vector.load %arg20[%c0_85, %c0_86, %c0_87] : memref<1x64x32xf32, #tpu.memory_space<vmem>>, vector<1x64x32xf32>
    %207 = vector.shape_cast %206 : vector<1x64x32xf32> to vector<64x32xf32>
    %cst_88 = arith.constant dense<0.000000e+00> : vector<16x32xf32>
    %208 = tpu.matmul %205, %207, %cst_88 {dimension_numbers = #tpu.dot_dimension_numbers<[1], [0], [0], [1], [0, 0, 1, 1], [], []>} : vector<16x64xf32>, vector<64x32xf32>, vector<16x32xf32> -> vector<16x32xf32>
    %c0_89 = arith.constant 0 : index
    %c0_90 = arith.constant 0 : index
    %c0_91 = arith.constant 0 : index
    %209 = vector.load %arg21[%c0_89, %c0_90, %c0_91] : memref<1x16x32xf32, #tpu.memory_space<vmem>>, vector<1x16x32xf32>
    %210 = vector.shape_cast %209 : vector<1x16x32xf32> to vector<16x32xf32>
    %211 = vector.shape_cast %208 : vector<16x32xf32> to vector<1x16x32xf32>
    tpu.vector_store %arg21[%c0_89, %c0_90, %c0_91], %211 {strides = array<i32>} : memref<1x16x32xf32, #tpu.memory_space<vmem>>, vector<1x16x32xf32>,
    return
  }
  func.func @transform_0(%arg0: i32) -> (i32, i32) {
    %c0_i32 = arith.constant 0 : i32
    %c0_i32_0 = arith.constant 0 : i32
    %c0_i32_1 = arith.constant 0 : i32
    return %c0_i32, %c0_i32_0 : i32, i32
  }
  func.func @transform_1(%arg0: i32) -> (i32, i32) {
    %c0_i32 = arith.constant 0 : i32
    %c0_i32_0 = arith.constant 0 : i32
    %c0_i32_1 = arith.constant 0 : i32
    return %c0_i32, %c0_i32_0 : i32, i32
  }
  func.func @transform_2(%arg0: i32) -> (i32, i32) {
    %c0_i32 = arith.constant 0 : i32
    %c0_i32_0 = arith.constant 0 : i32
    %c0_i32_1 = arith.constant 0 : i32
    return %c0_i32, %c0_i32_0 : i32, i32
  }
  func.func @transform_3(%arg0: i32) -> (i32, i32) {
    %c0_i32 = arith.constant 0 : i32
    %c0_i32_0 = arith.constant 0 : i32
    %c0_i32_1 = arith.constant 0 : i32
    return %c0_i32, %c0_i32_0 : i32, i32
  }
  func.func @transform_4(%arg0: i32) -> (i32, i32) {
    %c0_i32 = arith.constant 0 : i32
    %c0_i32_0 = arith.constant 0 : i32
    %c0_i32_1 = arith.constant 0 : i32
    return %c0_i32, %c0_i32_0 : i32, i32
  }
  func.func @transform_5(%arg0: i32) -> (i32, i32) {
    %c0_i32 = arith.constant 0 : i32
    %c0_i32_0 = arith.constant 0 : i32
    %c0_i32_1 = arith.constant 0 : i32
    return %c0_i32, %c0_i32_0 : i32, i32
  }
  func.func @transform_6(%arg0: i32) -> (i32, i32) {
    %c0_i32 = arith.constant 0 : i32
    %c0_i32_0 = arith.constant 0 : i32
    %c0_i32_1 = arith.constant 0 : i32
    return %c0_i32, %c0_i32_0 : i32, i32
  }
  func.func @transform_7(%arg0: i32) -> (i32, i32) {
    %c0_i32 = arith.constant 0 : i32
    %c0_i32_0 = arith.constant 0 : i32
    %c0_i32_1 = arith.constant 0 : i32
    return %c0_i32, %c0_i32_0 : i32, i32
  }
  func.func @transform_8(%arg0: i32) -> (i32, i32) {
    %c0_i32 = arith.constant 0 : i32
    %c0_i32_0 = arith.constant 0 : i32
    %c0_i32_1 = arith.constant 0 : i32
    return %c0_i32, %c0_i32_0 : i32, i32
  }
  func.func @transform_9(%arg0: i32) -> (i32, i32) {
    %c0_i32 = arith.constant 0 : i32
    %c0_i32_0 = arith.constant 0 : i32
    %c0_i32_1 = arith.constant 0 : i32
    return %c0_i32, %c0_i32_0 : i32, i32
  }
  func.func @transform_10(%arg0: i32) -> (i32, i32) {
    %c0_i32 = arith.constant 0 : i32
    %c0_i32_0 = arith.constant 0 : i32
    %c0_i32_1 = arith.constant 0 : i32
    return %c0_i32, %c0_i32_0 : i32, i32
  }
  func.func @transform_11(%arg0: i32) -> (i32, i32) {
    %c0_i32 = arith.constant 0 : i32
    %c0_i32_0 = arith.constant 0 : i32
    %c0_i32_1 = arith.constant 0 : i32
    return %c0_i32, %c0_i32_0 : i32, i32
  }
  func.func @transform_12(%arg0: i32) -> (i32, i32, i32) {
    %c0_i32 = arith.constant 0 : i32
    %c0_i32_0 = arith.constant 0 : i32
    %c0_i32_1 = arith.constant 0 : i32
    return %arg0, %c0_i32, %c0_i32_0 : i32, i32, i32
  }
  func.func @transform_13(%arg0: i32) -> (i32, i32, i32) {
    %c0_i32 = arith.constant 0 : i32
    %c0_i32_0 = arith.constant 0 : i32
    %c0_i32_1 = arith.constant 0 : i32
    return %arg0, %c0_i32, %c0_i32_0 : i32, i32, i32
  }
  func.func @transform_14(%arg0: i32) -> (i32, i32, i32) {
    %c0_i32 = arith.constant 0 : i32
    %c0_i32_0 = arith.constant 0 : i32
    %c0_i32_1 = arith.constant 0 : i32
    return %arg0, %c0_i32, %c0_i32_0 : i32, i32, i32
  }
  func.func @transform_15(%arg0: i32) -> (i32, i32, i32) {
    %c0_i32 = arith.constant 0 : i32
    %c0_i32_0 = arith.constant 0 : i32
    %c0_i32_1 = arith.constant 0 : i32
    return %arg0, %c0_i32, %c0_i32_0 : i32, i32, i32
  }
  func.func @transform_16(%arg0: i32) -> (i32, i32, i32) {
    %c0_i32 = arith.constant 0 : i32
    %c0_i32_0 = arith.constant 0 : i32
    %c0_i32_1 = arith.constant 0 : i32
    return %arg0, %c0_i32, %c0_i32_0 : i32, i32, i32
  }
  func.func @transform_17(%arg0: i32) -> (i32, i32, i32) {
    %c0_i32 = arith.constant 0 : i32
    %c0_i32_0 = arith.constant 0 : i32
    %c0_i32_1 = arith.constant 0 : i32
    return %arg0, %c0_i32, %c0_i32_0 : i32, i32, i32
  }
  func.func @transform_18(%arg0: i32) -> (i32, i32, i32) {
    %c0_i32 = arith.constant 0 : i32
    %c0_i32_0 = arith.constant 0 : i32
    %c0_i32_1 = arith.constant 0 : i32
    return %arg0, %c0_i32, %c0_i32_0 : i32, i32, i32
  }
  func.func @transform_19(%arg0: i32) -> (i32, i32, i32) {
    %c0_i32 = arith.constant 0 : i32
    %c0_i32_0 = arith.constant 0 : i32
    %c0_i32_1 = arith.constant 0 : i32
    return %arg0, %c0_i32, %c0_i32_0 : i32, i32, i32
  }
  func.func @transform_20(%arg0: i32) -> (i32, i32, i32) {
    %c0_i32 = arith.constant 0 : i32
    %c0_i32_0 = arith.constant 0 : i32
    %c0_i32_1 = arith.constant 0 : i32
    return %arg0, %c0_i32, %c0_i32_0 : i32, i32, i32
  }
  func.func @transform_21(%arg0: i32) -> (i32, i32, i32) {
    %c0_i32 = arith.constant 0 : i32
    %c0_i32_0 = arith.constant 0 : i32
    %c0_i32_1 = arith.constant 0 : i32
    return %arg0, %c0_i32, %c0_i32_0 : i32, i32, i32
  }
}

</mosaic_0001>

<llo_original>
// kernel: tpu_custom_call.1
$region0: #{tpu_custom_call.1}
  #allocation0 [shape = 'u32[]', space=smem, size = 0x4, offset = 0x4, fixed_abs, tag = 'smem constant byte address 0x4 - core index']
  #allocation1 [shape = 'u32[72,128]{1,0:T(1,128)}', space=vmem, size = 0x9000, scoped, tag = 'internal scratch']
  #allocation2 [shape = 'f32[256,64]{1,0:T(8,128)}', space=vmem, size = 0x20000, scoped, tag = 'scratch operand']
  %s0 = inlined_call_operand.vmem [shape: f32[16,32], index: 0, kind: input, shape index: {}]
  %s1 = inlined_call_operand.vmem [shape: f32[16,32], index: 1, kind: input, shape index: {}]
  %s2 = inlined_call_operand.vmem [shape: f32[16,32], index: 2, kind: input, shape index: {}]
  %s3 = inlined_call_operand.vmem [shape: f32[16,32], index: 3, kind: input, shape index: {}]
  %s4 = inlined_call_operand.vmem [shape: f32[1,32], index: 4, kind: input, shape index: {}]
  %s5 = inlined_call_operand.vmem [shape: f32[1,32], index: 5, kind: input, shape index: {}]
  %s6 = inlined_call_operand.vmem [shape: f32[1,32], index: 6, kind: input, shape index: {}]
  %s7 = inlined_call_operand.vmem [shape: f32[1,32], index: 7, kind: input, shape index: {}]
  %s8 = inlined_call_operand.vmem [shape: f32[256,16], index: 8, kind: input, shape index: {}]
  %s9 = inlined_call_operand.vmem [shape: f32[256,16], index: 9, kind: input, shape index: {}]
  %s10 = inlined_call_operand.vmem [shape: f32[16,256], index: 10, kind: input, shape index: {}]
  %s11 = inlined_call_operand.vmem [shape: f32[48,16], index: 11, kind: input, shape index: {}]
  %s12 = inlined_call_operand.vmem [shape: f32[2,32,128], index: 12, kind: input, shape index: {}]
  %s13 = inlined_call_operand.vmem [shape: f32[2,4,64], index: 13, kind: input, shape index: {}]
  %s14 = inlined_call_operand.vmem [shape: f32[2,1,64], index: 14, kind: input, shape index: {}]
  %s15 = inlined_call_operand.vmem [shape: f32[2,64,96], index: 15, kind: input, shape index: {}]
  %s16 = inlined_call_operand.vmem [shape: f32[2,1,64], index: 16, kind: input, shape index: {}]
  %s17 = inlined_call_operand.vmem [shape: f32[2,16,64], index: 17, kind: input, shape index: {}]
  %s18 = inlined_call_operand.vmem [shape: f32[2,1,64], index: 18, kind: input, shape index: {}]
  %s19 = inlined_call_operand.vmem [shape: f32[2,64,32], index: 19, kind: input, shape index: {}]
  %s20 = inlined_call_operand.hbm [shape: f32[2,16,32], index: 20, kind: output, shape index: {0}]
  %s21 = inlined_call_operand.hbm [shape: f32[2,16,32], index: 21, kind: output, shape index: {1}]
  %22 = xla_tuple %s20, %s21
  %s23 = sld [smem:[#allocation0]]
  $region121: #{tpu_custom_call.1} parent=0
    _
  %s25 = ssub.s32 1, %s23
  %s26 = scalar_select 0, %s25, %s23
  $region1: #{tpu_custom_call.1} parent=0
    #allocation3 [shape = 'u8[16384]{0}', space=vmem, size = 0x4000, scoped, tag = 'output window, operand 0']
    #allocation4 [shape = 's32[2]{0}', space=sflag, size = 0x8, scoped, tag = 'scoped memory for tpu_custom_call.1']
    #allocation5 [shape = 'u8[16384]{0}', space=vmem, size = 0x4000, scoped, tag = 'output window, operand 1']
    #allocation6 [shape = 's32[2]{0}', space=sflag, size = 0x8, scoped, tag = 'scoped memory for tpu_custom_call.1']
    %27 = vsyncpa [#allocation4], 0
    %s28 = scalar_lea.sflag [#allocation4], 1
    %29 = vsyncpa %s28, 0
    %30 = vsyncpa [#allocation6], 0
    %s31 = scalar_lea.sflag [#allocation6], 1
    %32 = vsyncpa %s31, 0
    loop: start=0, step=1, limit=4
    $region2: #{tpu_custom_call.1} parent=1 // loop_pre_header
      _
    $region3: #{tpu_custom_call.1} parent=1 // loop_header
      %s34 = sphi 0, %s38
      %p35 = scmp.ge.s32.totalorder %s34, 4
      %s42 = sphi 0, %s42
      %s44 = sphi 0, %s42
      %s45 = sphi 0, %s44
      %s59 = sphi 0, %s45
      %s63 = sphi 0, %s63
      %s65 = sphi 0, %s63
      %s66 = sphi 0, %s65
      %s80 = sphi 0, %s66
      %s84 = sphi 0, %s84
      %s86 = sphi 0, %s84
      %s87 = sphi 0, %s86
      %s101 = sphi 0, %s87
      %s105 = sphi 0, %s105
      %s107 = sphi 0, %s105
      %s108 = sphi 0, %s107
      %s122 = sphi 0, %s108
      %s126 = sphi 0, %s126
      %s128 = sphi 0, %s126
      %s129 = sphi 0, %s128
      %s143 = sphi 0, %s129
      %s147 = sphi 0, %s147
      %s149 = sphi 0, %s147
      %s150 = sphi 0, %s149
      %s164 = sphi 0, %s150
      %s168 = sphi 0, %s168
      %s170 = sphi 0, %s168
      %s171 = sphi 0, %s170
      %s185 = sphi 0, %s171
      %s189 = sphi 0, %s189
      %s191 = sphi 0, %s189
      %s192 = sphi 0, %s191
      %s206 = sphi 0, %s192
      %s210 = sphi 0, %s210
      %s212 = sphi 0, %s210
      %s213 = sphi 0, %s212
      %s227 = sphi 0, %s213
      %s231 = sphi 0, %s231
      %s233 = sphi 0, %s231
      %s234 = sphi 0, %s233
      %s248 = sphi 0, %s234
      %s252 = sphi 0, %s252
      %s254 = sphi 0, %s252
      %s255 = sphi 0, %s254
      %s269 = sphi 0, %s255
      %s273 = sphi 0, %s273
      %s275 = sphi 0, %s273
      %s276 = sphi 0, %s275
      %s290 = sphi 0, %s276
      %s296 = sphi 0, %s298
      %s299 = sphi 0, %s296
      %s300 = sphi 0, %s299
      %s316 = sphi 0, %s300
      %s322 = sphi 0, %s324
      %s325 = sphi 0, %s322
      %s326 = sphi 0, %s325
      %s342 = sphi 0, %s326
      %s348 = sphi 0, %s350
      %s351 = sphi 0, %s348
      %s352 = sphi 0, %s351
      %s368 = sphi 0, %s352
      %s374 = sphi 0, %s376
      %s377 = sphi 0, %s374
      %s378 = sphi 0, %s377
      %s394 = sphi 0, %s378
      %s400 = sphi 0, %s402
      %s403 = sphi 0, %s400
      %s404 = sphi 0, %s403
      %s420 = sphi 0, %s404
      %s426 = sphi 0, %s428
      %s429 = sphi 0, %s426
      %s430 = sphi 0, %s429
      %s446 = sphi 0, %s430
      %s452 = sphi 0, %s454
      %s455 = sphi 0, %s452
      %s456 = sphi 0, %s455
      %s472 = sphi 0, %s456
      %s478 = sphi 0, %s480
      %s481 = sphi 0, %s478
      %s482 = sphi 0, %s481
      %s498 = sphi 0, %s482
      %s504 = sphi 0, %s506
      %s507 = sphi 0, %s504
      %s508 = sphi 0, %s507
      %s524 = sphi 0, %s508
      %s530 = sphi 0, %s532
      %s533 = sphi 0, %s530
      %s534 = sphi 0, %s533
      %s550 = sphi 0, %s534
    $region4: #{tpu_custom_call.1} parent=1 // loop_header_branch
      %37 = sbr.rel (%p35) target = $region8
    $region5: #{tpu_custom_call.1} parent=1 // loop_body
      %s39 = ssub.s32 %s34, 1
      %s40 = ssub.s32 %s34, 2
      %s41 = sadd.s32 %s34, 1
      %s43 = sadd.s32 %s42, 1
      %p46 = scmp.eq.s32.totalorder %s34, 1
      %p47 = scmp.ne.s32.totalorder %s42, %s44
      %p48 = scmp.eq.s32.totalorder %s34, 0
      %p49 = por %p47, %p48
      %p50 = scmp.ne.s32.totalorder %s42, %s44
      %p51 = scmp.eq.s32.totalorder %s39, 1
      %p52 = por %p50, %p51
      %p53 = scmp.ne.s32.totalorder %s44, %s45
      %p54 = scmp.eq.s32.totalorder %s39, 0
      %p55 = por %p53, %p54
      %p56 = scmp.ne.s32.totalorder %s44, %s45
      %p57 = scmp.eq.s32.totalorder %s40, 1
      %p58 = por %p56, %p57
      %p60 = scmp.ne.s32.totalorder %s45, %s59
      %p61 = scmp.eq.s32.totalorder %s40, 0
      %p62 = por %p60, %p61
      %s64 = sadd.s32 %s63, 1
      %p67 = scmp.eq.s32.totalorder %s34, 1
      %p68 = scmp.ne.s32.totalorder %s63, %s65
      %p69 = scmp.eq.s32.totalorder %s34, 0
      %p70 = por %p68, %p69
      %p71 = scmp.ne.s32.totalorder %s63, %s65
      %p72 = scmp.eq.s32.totalorder %s39, 1
      %p73 = por %p71, %p72
      %p74 = scmp.ne.s32.totalorder %s65, %s66
      %p75 = scmp.eq.s32.totalorder %s39, 0
      %p76 = por %p74, %p75
      %p77 = scmp.ne.s32.totalorder %s65, %s66
      %p78 = scmp.eq.s32.totalorder %s40, 1
      %p79 = por %p77, %p78
      %p81 = scmp.ne.s32.totalorder %s66, %s80
      %p82 = scmp.eq.s32.totalorder %s40, 0
      %p83 = por %p81, %p82
      %s85 = sadd.s32 %s84, 1
      %p88 = scmp.eq.s32.totalorder %s34, 1
      %p89 = scmp.ne.s32.totalorder %s84, %s86
      %p90 = scmp.eq.s32.totalorder %s34, 0
      %p91 = por %p89, %p90
      %p92 = scmp.ne.s32.totalorder %s84, %s86
      %p93 = scmp.eq.s32.totalorder %s39, 1
      %p94 = por %p92, %p93
      %p95 = scmp.ne.s32.totalorder %s86, %s87
      %p96 = scmp.eq.s32.totalorder %s39, 0
      %p97 = por %p95, %p96
      %p98 = scmp.ne.s32.totalorder %s86, %s87
      %p99 = scmp.eq.s32.totalorder %s40, 1
      %p100 = por %p98, %p99
      %p102 = scmp.ne.s32.totalorder %s87, %s101
      %p103 = scmp.eq.s32.totalorder %s40, 0
      %p104 = por %p102, %p103
      %s106 = sadd.s32 %s105, 1
      %p109 = scmp.eq.s32.totalorder %s34, 1
      %p110 = scmp.ne.s32.totalorder %s105, %s107
      %p111 = scmp.eq.s32.totalorder %s34, 0
      %p112 = por %p110, %p111
      %p113 = scmp.ne.s32.totalorder %s105, %s107
      %p114 = scmp.eq.s32.totalorder %s39, 1
      %p115 = por %p113, %p114
      %p116 = scmp.ne.s32.totalorder %s107, %s108
      %p117 = scmp.eq.s32.totalorder %s39, 0
      %p118 = por %p116, %p117
      %p119 = scmp.ne.s32.totalorder %s107, %s108
      %p120 = scmp.eq.s32.totalorder %s40, 1
      %p121 = por %p119, %p120
      %p123 = scmp.ne.s32.totalorder %s108, %s122
      %p124 = scmp.eq.s32.totalorder %s40, 0
      %p125 = por %p123, %p124
      %s127 = sadd.s32 %s126, 1
      %p130 = scmp.eq.s32.totalorder %s34, 1
      %p131 = scmp.ne.s32.totalorder %s126, %s128
      %p132 = scmp.eq.s32.totalorder %s34, 0
      %p133 = por %p131, %p132
      %p134 = scmp.ne.s32.totalorder %s126, %s128
      %p135 = scmp.eq.s32.totalorder %s39, 1
      %p136 = por %p134, %p135
      %p137 = scmp.ne.s32.totalorder %s128, %s129
      %p138 = scmp.eq.s32.totalorder %s39, 0
      %p139 = por %p137, %p138
      %p140 = scmp.ne.s32.totalorder %s128, %s129
      %p141 = scmp.eq.s32.totalorder %s40, 1
      %p142 = por %p140, %p141
      %p144 = scmp.ne.s32.totalorder %s129, %s143
      %p145 = scmp.eq.s32.totalorder %s40, 0
      %p146 = por %p144, %p145
      %s148 = sadd.s32 %s147, 1
      %p151 = scmp.eq.s32.totalorder %s34, 1
      %p152 = scmp.ne.s32.totalorder %s147, %s149
      %p153 = scmp.eq.s32.totalorder %s34, 0
      %p154 = por %p152, %p153
      %p155 = scmp.ne.s32.totalorder %s147, %s149
      %p156 = scmp.eq.s32.totalorder %s39, 1
      %p157 = por %p155, %p156
      %p158 = scmp.ne.s32.totalorder %s149, %s150
      %p159 = scmp.eq.s32.totalorder %s39, 0
      %p160 = por %p158, %p159
      %p161 = scmp.ne.s32.totalorder %s149, %s150
      %p162 = scmp.eq.s32.totalorder %s40, 1
      %p163 = por %p161, %p162
      %p165 = scmp.ne.s32.totalorder %s150, %s164
      %p166 = scmp.eq.s32.totalorder %s40, 0
      %p167 = por %p165, %p166
      %s169 = sadd.s32 %s168, 1
      %p172 = scmp.eq.s32.totalorder %s34, 1
      %p173 = scmp.ne.s32.totalorder %s168, %s170
      %p174 = scmp.eq.s32.totalorder %s34, 0
      %p175 = por %p173, %p174
      %p176 = scmp.ne.s32.totalorder %s168, %s170
      %p177 = scmp.eq.s32.totalorder %s39, 1
      %p178 = por %p176, %p177
      %p179 = scmp.ne.s32.totalorder %s170, %s171
      %p180 = scmp.eq.s32.totalorder %s39, 0
      %p181 = por %p179, %p180
      %p182 = scmp.ne.s32.totalorder %s170, %s171
      %p183 = scmp.eq.s32.totalorder %s40, 1
      %p184 = por %p182, %p183
      %p186 = scmp.ne.s32.totalorder %s171, %s185
      %p187 = scmp.eq.s32.totalorder %s40, 0
      %p188 = por %p186, %p187
      %s190 = sadd.s32 %s189, 1
      %p193 = scmp.eq.s32.totalorder %s34, 1
      %p194 = scmp.ne.s32.totalorder %s189, %s191
      %p195 = scmp.eq.s32.totalorder %s34, 0
      %p196 = por %p194, %p195
      %p197 = scmp.ne.s32.totalorder %s189, %s191
      %p198 = scmp.eq.s32.totalorder %s39, 1
      %p199 = por %p197, %p198
      %p200 = scmp.ne.s32.totalorder %s191, %s192
      %p201 = scmp.eq.s32.totalorder %s39, 0
      %p202 = por %p200, %p201
      %p203 = scmp.ne.s32.totalorder %s191, %s192
      %p204 = scmp.eq.s32.totalorder %s40, 1
      %p205 = por %p203, %p204
      %p207 = scmp.ne.s32.totalorder %s192, %s206
      %p208 = scmp.eq.s32.totalorder %s40, 0
      %p209 = por %p207, %p208
      %s211 = sadd.s32 %s210, 1
      %p214 = scmp.eq.s32.totalorder %s34, 1
      %p215 = scmp.ne.s32.totalorder %s210, %s212
      %p216 = scmp.eq.s32.totalorder %s34, 0
      %p217 = por %p215, %p216
      %p218 = scmp.ne.s32.totalorder %s210, %s212
      %p219 = scmp.eq.s32.totalorder %s39, 1
      %p220 = por %p218, %p219
      %p221 = scmp.ne.s32.totalorder %s212, %s213
      %p222 = scmp.eq.s32.totalorder %s39, 0
      %p223 = por %p221, %p222
      %p224 = scmp.ne.s32.totalorder %s212, %s213
      %p225 = scmp.eq.s32.totalorder %s40, 1
      %p226 = por %p224, %p225
      %p228 = scmp.ne.s32.totalorder %s213, %s227
      %p229 = scmp.eq.s32.totalorder %s40, 0
      %p230 = por %p228, %p229
      %s232 = sadd.s32 %s231, 1
      %p235 = scmp.eq.s32.totalorder %s34, 1
      %p236 = scmp.ne.s32.totalorder %s231, %s233
      %p237 = scmp.eq.s32.totalorder %s34, 0
      %p238 = por %p236, %p237
      %p239 = scmp.ne.s32.totalorder %s231, %s233
      %p240 = scmp.eq.s32.totalorder %s39, 1
      %p241 = por %p239, %p240
      %p242 = scmp.ne.s32.totalorder %s233, %s234
      %p243 = scmp.eq.s32.totalorder %s39, 0
      %p244 = por %p242, %p243
      %p245 = scmp.ne.s32.totalorder %s233, %s234
      %p246 = scmp.eq.s32.totalorder %s40, 1
      %p247 = por %p245, %p246
      %p249 = scmp.ne.s32.totalorder %s234, %s248
      %p250 = scmp.eq.s32.totalorder %s40, 0
      %p251 = por %p249, %p250
      %s253 = sadd.s32 %s252, 1
      %p256 = scmp.eq.s32.totalorder %s34, 1
      %p257 = scmp.ne.s32.totalorder %s252, %s254
      %p258 = scmp.eq.s32.totalorder %s34, 0
      %p259 = por %p257, %p258
      %p260 = scmp.ne.s32.totalorder %s252, %s254
      %p261 = scmp.eq.s32.totalorder %s39, 1
      %p262 = por %p260, %p261
      %p263 = scmp.ne.s32.totalorder %s254, %s255
      %p264 = scmp.eq.s32.totalorder %s39, 0
      %p265 = por %p263, %p264
      %p266 = scmp.ne.s32.totalorder %s254, %s255
      %p267 = scmp.eq.s32.totalorder %s40, 1
      %p268 = por %p266, %p267
      %p270 = scmp.ne.s32.totalorder %s255, %s269
      %p271 = scmp.eq.s32.totalorder %s40, 0
      %p272 = por %p270, %p271
      %s274 = sadd.s32 %s273, 1
      %p277 = scmp.eq.s32.totalorder %s34, 1
      %p278 = scmp.ne.s32.totalorder %s273, %s275
      %p279 = scmp.eq.s32.totalorder %s34, 0
      %p280 = por %p278, %p279
      %p281 = scmp.ne.s32.totalorder %s273, %s275
      %p282 = scmp.eq.s32.totalorder %s39, 1
      %p283 = por %p281, %p282
      %p284 = scmp.ne.s32.totalorder %s275, %s276
      %p285 = scmp.eq.s32.totalorder %s39, 0
      %p286 = por %p284, %p285
      %p287 = scmp.ne.s32.totalorder %s275, %s276
      %p288 = scmp.eq.s32.totalorder %s40, 1
      %p289 = por %p287, %p288
      %p291 = scmp.ne.s32.totalorder %s276, %s290
      %p292 = scmp.eq.s32.totalorder %s40, 0
      %p293 = por %p291, %p292
      %s294 = ssub.s32 %s34, %s41
      %p295 = scmp.eq.s32.totalorder %s294, 0
      %s297 = sadd.s32 %s296, 1
      %s298 = scalar_select %p295, %s296, %s297
      %p301 = pneg %p295
      %p302 = scmp.eq.s32.totalorder %s34, 1
      %p303 = por %p301, %p302
      %p304 = scmp.ne.s32.totalorder %s296, %s299
      %p305 = scmp.eq.s32.totalorder %s34, 0
      %p306 = por %p304, %p305
      %p307 = scmp.ne.s32.totalorder %s296, %s299
      %p308 = scmp.eq.s32.totalorder %s39, 1
      %p309 = por %p307, %p308
      %p310 = scmp.ne.s32.totalorder %s299, %s300
      %p311 = scmp.eq.s32.totalorder %s39, 0
      %p312 = por %p310, %p311
      %p313 = scmp.ne.s32.totalorder %s299, %s300
      %p314 = scmp.eq.s32.totalorder %s40, 1
      %p315 = por %p313, %p314
      %p317 = scmp.ne.s32.totalorder %s300, %s316
      %p318 = scmp.eq.s32.totalorder %s40, 0
      %p319 = por %p317, %p318
      %s320 = ssub.s32 %s34, %s41
      %p321 = scmp.eq.s32.totalorder %s320, 0
      %s323 = sadd.s32 %s322, 1
      %s324 = scalar_select %p321, %s322, %s323
      %p327 = pneg %p321
      %p328 = scmp.eq.s32.totalorder %s34, 1
      %p329 = por %p327, %p328
      %p330 = scmp.ne.s32.totalorder %s322, %s325
      %p331 = scmp.eq.s32.totalorder %s34, 0
      %p332 = por %p330, %p331
      %p333 = scmp.ne.s32.totalorder %s322, %s325
      %p334 = scmp.eq.s32.totalorder %s39, 1
      %p335 = por %p333, %p334
      %p336 = scmp.ne.s32.totalorder %s325, %s326
      %p337 = scmp.eq.s32.totalorder %s39, 0
      %p338 = por %p336, %p337
      %p339 = scmp.ne.s32.totalorder %s325, %s326
      %p340 = scmp.eq.s32.totalorder %s40, 1
      %p341 = por %p339, %p340
      %p343 = scmp.ne.s32.totalorder %s326, %s342
      %p344 = scmp.eq.s32.totalorder %s40, 0
      %p345 = por %p343, %p344
      %s346 = ssub.s32 %s34, %s41
      %p347 = scmp.eq.s32.totalorder %s346, 0
      %s349 = sadd.s32 %s348, 1
      %s350 = scalar_select %p347, %s348, %s349
      %p353 = pneg %p347
      %p354 = scmp.eq.s32.totalorder %s34, 1
      %p355 = por %p353, %p354
      %p356 = scmp.ne.s32.totalorder %s348, %s351
      %p357 = scmp.eq.s32.totalorder %s34, 0
      %p358 = por %p356, %p357
      %p359 = scmp.ne.s32.totalorder %s348, %s351
      %p360 = scmp.eq.s32.totalorder %s39, 1
      %p361 = por %p359, %p360
      %p362 = scmp.ne.s32.totalorder %s351, %s352
      %p363 = scmp.eq.s32.totalorder %s39, 0
      %p364 = por %p362, %p363
      %p365 = scmp.ne.s32.totalorder %s351, %s352
      %p366 = scmp.eq.s32.totalorder %s40, 1
      %p367 = por %p365, %p366
      %p369 = scmp.ne.s32.totalorder %s352, %s368
      %p370 = scmp.eq.s32.totalorder %s40, 0
      %p371 = por %p369, %p370
      %s372 = ssub.s32 %s34, %s41
      %p373 = scmp.eq.s32.totalorder %s372, 0
      %s375 = sadd.s32 %s374, 1
      %s376 = scalar_select %p373, %s374, %s375
      %p379 = pneg %p373
      %p380 = scmp.eq.s32.totalorder %s34, 1
      %p381 = por %p379, %p380
      %p382 = scmp.ne.s32.totalorder %s374, %s377
      %p383 = scmp.eq.s32.totalorder %s34, 0
      %p384 = por %p382, %p383
      %p385 = scmp.ne.s32.totalorder %s374, %s377
      %p386 = scmp.eq.s32.totalorder %s39, 1
      %p387 = por %p385, %p386
      %p388 = scmp.ne.s32.totalorder %s377, %s378
      %p389 = scmp.eq.s32.totalorder %s39, 0
      %p390 = por %p388, %p389
      %p391 = scmp.ne.s32.totalorder %s377, %s378
      %p392 = scmp.eq.s32.totalorder %s40, 1
      %p393 = por %p391, %p392
      %p395 = scmp.ne.s32.totalorder %s378, %s394
      %p396 = scmp.eq.s32.totalorder %s40, 0
      %p397 = por %p395, %p396
      %s398 = ssub.s32 %s34, %s41
      %p399 = scmp.eq.s32.totalorder %s398, 0
      %s401 = sadd.s32 %s400, 1
      %s402 = scalar_select %p399, %s400, %s401
      %p405 = pneg %p399
      %p406 = scmp.eq.s32.totalorder %s34, 1
      %p407 = por %p405, %p406
      %p408 = scmp.ne.s32.totalorder %s400, %s403
      %p409 = scmp.eq.s32.totalorder %s34, 0
      %p410 = por %p408, %p409
      %p411 = scmp.ne.s32.totalorder %s400, %s403
      %p412 = scmp.eq.s32.totalorder %s39, 1
      %p413 = por %p411, %p412
      %p414 = scmp.ne.s32.totalorder %s403, %s404
      %p415 = scmp.eq.s32.totalorder %s39, 0
      %p416 = por %p414, %p415
      %p417 = scmp.ne.s32.totalorder %s403, %s404
      %p418 = scmp.eq.s32.totalorder %s40, 1
      %p419 = por %p417, %p418
      %p421 = scmp.ne.s32.totalorder %s404, %s420
      %p422 = scmp.eq.s32.totalorder %s40, 0
      %p423 = por %p421, %p422
      %s424 = ssub.s32 %s34, %s41
      %p425 = scmp.eq.s32.totalorder %s424, 0
      %s427 = sadd.s32 %s426, 1
      %s428 = scalar_select %p425, %s426, %s427
      %p431 = pneg %p425
      %p432 = scmp.eq.s32.totalorder %s34, 1
      %p433 = por %p431, %p432
      %p434 = scmp.ne.s32.totalorder %s426, %s429
      %p435 = scmp.eq.s32.totalorder %s34, 0
      %p436 = por %p434, %p435
      %p437 = scmp.ne.s32.totalorder %s426, %s429
      %p438 = scmp.eq.s32.totalorder %s39, 1
      %p439 = por %p437, %p438
      %p440 = scmp.ne.s32.totalorder %s429, %s430
      %p441 = scmp.eq.s32.totalorder %s39, 0
      %p442 = por %p440, %p441
      %p443 = scmp.ne.s32.totalorder %s429, %s430
      %p444 = scmp.eq.s32.totalorder %s40, 1
      %p445 = por %p443, %p444
      %p447 = scmp.ne.s32.totalorder %s430, %s446
      %p448 = scmp.eq.s32.totalorder %s40, 0
      %p449 = por %p447, %p448
      %s450 = ssub.s32 %s34, %s41
      %p451 = scmp.eq.s32.totalorder %s450, 0
      %s453 = sadd.s32 %s452, 1
      %s454 = scalar_select %p451, %s452, %s453
      %p457 = pneg %p451
      %p458 = scmp.eq.s32.totalorder %s34, 1
      %p459 = por %p457, %p458
      %p460 = scmp.ne.s32.totalorder %s452, %s455
      %p461 = scmp.eq.s32.totalorder %s34, 0
      %p462 = por %p460, %p461
      %p463 = scmp.ne.s32.totalorder %s452, %s455
      %p464 = scmp.eq.s32.totalorder %s39, 1
      %p465 = por %p463, %p464
      %p466 = scmp.ne.s32.totalorder %s455, %s456
      %p467 = scmp.eq.s32.totalorder %s39, 0
      %p468 = por %p466, %p467
      %p469 = scmp.ne.s32.totalorder %s455, %s456
      %p470 = scmp.eq.s32.totalorder %s40, 1
      %p471 = por %p469, %p470
      %p473 = scmp.ne.s32.totalorder %s456, %s472
      %p474 = scmp.eq.s32.totalorder %s40, 0
      %p475 = por %p473, %p474
      %s476 = ssub.s32 %s34, %s41
      %p477 = scmp.eq.s32.totalorder %s476, 0
      %s479 = sadd.s32 %s478, 1
      %s480 = scalar_select %p477, %s478, %s479
      %p483 = pneg %p477
      %p484 = scmp.eq.s32.totalorder %s34, 1
      %p485 = por %p483, %p484
      %p486 = scmp.ne.s32.totalorder %s478, %s481
      %p487 = scmp.eq.s32.totalorder %s34, 0
      %p488 = por %p486, %p487
      %p489 = scmp.ne.s32.totalorder %s478, %s481
      %p490 = scmp.eq.s32.totalorder %s39, 1
      %p491 = por %p489, %p490
      %p492 = scmp.ne.s32.totalorder %s481, %s482
      %p493 = scmp.eq.s32.totalorder %s39, 0
      %p494 = por %p492, %p493
      %p495 = scmp.ne.s32.totalorder %s481, %s482
      %p496 = scmp.eq.s32.totalorder %s40, 1
      %p497 = por %p495, %p496
      %p499 = scmp.ne.s32.totalorder %s482, %s498
      %p500 = scmp.eq.s32.totalorder %s40, 0
      %p501 = por %p499, %p500
      %s502 = ssub.s32 %s34, %s41
      %p503 = scmp.eq.s32.totalorder %s502, 0
      %s505 = sadd.s32 %s504, 1
      %s506 = scalar_select %p503, %s504, %s505
      %p509 = pneg %p503
      %p510 = scmp.eq.s32.totalorder %s34, 1
      %p511 = por %p509, %p510
      %p512 = scmp.ne.s32.totalorder %s504, %s507
      %p513 = scmp.eq.s32.totalorder %s34, 0
      %p514 = por %p512, %p513
      %p515 = scmp.ne.s32.totalorder %s504, %s507
      %p516 = scmp.eq.s32.totalorder %s39, 1
      %p517 = por %p515, %p516
      %p518 = scmp.ne.s32.totalorder %s507, %s508
      %p519 = scmp.eq.s32.totalorder %s39, 0
      %p520 = por %p518, %p519
      %p521 = scmp.ne.s32.totalorder %s507, %s508
      %p522 = scmp.eq.s32.totalorder %s40, 1
      %p523 = por %p521, %p522
      %p525 = scmp.ne.s32.totalorder %s508, %s524
      %p526 = scmp.eq.s32.totalorder %s40, 0
      %p527 = por %p525, %p526
      %s528 = ssub.s32 %s34, %s41
      %p529 = scmp.eq.s32.totalorder %s528, 0
      %s531 = sadd.s32 %s530, 1
      %s532 = scalar_select %p529, %s530, %s531
      %p535 = pneg %p529
      %p536 = scmp.eq.s32.totalorder %s34, 1
      %p537 = por %p535, %p536
      %p538 = scmp.ne.s32.totalorder %s530, %s533
      %p539 = scmp.eq.s32.totalorder %s34, 0
      %p540 = por %p538, %p539
      %p541 = scmp.ne.s32.totalorder %s530, %s533
      %p542 = scmp.eq.s32.totalorder %s39, 1
      %p543 = por %p541, %p542
      %p544 = scmp.ne.s32.totalorder %s533, %s534
      %p545 = scmp.eq.s32.totalorder %s39, 0
      %p546 = por %p544, %p545
      %p547 = scmp.ne.s32.totalorder %s533, %s534
      %p548 = scmp.eq.s32.totalorder %s40, 1
      %p549 = por %p547, %p548
      %p551 = scmp.ne.s32.totalorder %s534, %s550
      %p552 = scmp.eq.s32.totalorder %s40, 0
      %p553 = por %p551, %p552
      %p554 = scmp.le.s32.totalorder 1, %s34
      %p555 = scmp.lt.s32.totalorder %s34, 3
      %p556 = pnand %p554, %p555
      %p557 = pneg %p556
      // Predicated region
      $region9: #{tpu_custom_call.1} parent=5 // pred_check
        _
      $region10: #{tpu_custom_call.1} parent=5 // pred_check_branch
        %559 = sbr.rel (%p556) target = $region12
      $region11: #{tpu_custom_call.1} parent=5 // pred_region
        %s560 = ssub.s32 %s34, 1
        // Predicated region
        $region13: #{tpu_custom_call.1} parent=11 // pred_check
          %p561 = pneg %p55
        $region14: #{tpu_custom_call.1} parent=11 // pred_check_branch
          %563 = sbr.rel (%p561) target = $region16
        $region15: #{tpu_custom_call.1} parent=11 // pred_region
          _
        $region16: #{tpu_custom_call.1} parent=11 // pred_fallthru
          _
        // Predicated region
        $region17: #{tpu_custom_call.1} parent=11 // pred_check
          %p564 = pneg %p76
        $region18: #{tpu_custom_call.1} parent=11 // pred_check_branch
          %566 = sbr.rel (%p564) target = $region20
        $region19: #{tpu_custom_call.1} parent=11 // pred_region
          _
        $region20: #{tpu_custom_call.1} parent=11 // pred_fallthru
          _
        // Predicated region
        $region21: #{tpu_custom_call.1} parent=11 // pred_check
          %p567 = pneg %p97
        $region22: #{tpu_custom_call.1} parent=11 // pred_check_branch
          %569 = sbr.rel (%p567) target = $region24
        $region23: #{tpu_custom_call.1} parent=11 // pred_region
          _
        $region24: #{tpu_custom_call.1} parent=11 // pred_fallthru
          _
        // Predicated region
        $region25: #{tpu_custom_call.1} parent=11 // pred_check
          %p570 = pneg %p118
        $region26: #{tpu_custom_call.1} parent=11 // pred_check_branch
          %572 = sbr.rel (%p570) target = $region28
        $region27: #{tpu_custom_call.1} parent=11 // pred_region
          _
        $region28: #{tpu_custom_call.1} parent=11 // pred_fallthru
          _
        // Predicated region
        $region29: #{tpu_custom_call.1} parent=11 // pred_check
          %p573 = pneg %p139
        $region30: #{tpu_custom_call.1} parent=11 // pred_check_branch
          %575 = sbr.rel (%p573) target = $region32
        $region31: #{tpu_custom_call.1} parent=11 // pred_region
          _
        $region32: #{tpu_custom_call.1} parent=11 // pred_fallthru
          _
        // Predicated region
        $region33: #{tpu_custom_call.1} parent=11 // pred_check
          %p576 = pneg %p160
        $region34: #{tpu_custom_call.1} parent=11 // pred_check_branch
          %578 = sbr.rel (%p576) target = $region36
        $region35: #{tpu_custom_call.1} parent=11 // pred_region
          _
        $region36: #{tpu_custom_call.1} parent=11 // pred_fallthru
          _
        // Predicated region
        $region37: #{tpu_custom_call.1} parent=11 // pred_check
          %p579 = pneg %p181
        $region38: #{tpu_custom_call.1} parent=11 // pred_check_branch
          %581 = sbr.rel (%p579) target = $region40
        $region39: #{tpu_custom_call.1} parent=11 // pred_region
          _
        $region40: #{tpu_custom_call.1} parent=11 // pred_fallthru
          _
        // Predicated region
        $region41: #{tpu_custom_call.1} parent=11 // pred_check
          %p582 = pneg %p202
        $region42: #{tpu_custom_call.1} parent=11 // pred_check_branch
          %584 = sbr.rel (%p582) target = $region44
        $region43: #{tpu_custom_call.1} parent=11 // pred_region
          _
        $region44: #{tpu_custom_call.1} parent=11 // pred_fallthru
          _
        // Predicated region
        $region45: #{tpu_custom_call.1} parent=11 // pred_check
          %p585 = pneg %p223
        $region46: #{tpu_custom_call.1} parent=11 // pred_check_branch
          %587 = sbr.rel (%p585) target = $region48
        $region47: #{tpu_custom_call.1} parent=11 // pred_region
          _
        $region48: #{tpu_custom_call.1} parent=11 // pred_fallthru
          _
        // Predicated region
        $region49: #{tpu_custom_call.1} parent=11 // pred_check
          %p588 = pneg %p244
        $region50: #{tpu_custom_call.1} parent=11 // pred_check_branch
          %590 = sbr.rel (%p588) target = $region52
        $region51: #{tpu_custom_call.1} parent=11 // pred_region
          _
        $region52: #{tpu_custom_call.1} parent=11 // pred_fallthru
          _
        // Predicated region
        $region53: #{tpu_custom_call.1} parent=11 // pred_check
          %p591 = pneg %p265
        $region54: #{tpu_custom_call.1} parent=11 // pred_check_branch
          %593 = sbr.rel (%p591) target = $region56
        $region55: #{tpu_custom_call.1} parent=11 // pred_region
          _
        $region56: #{tpu_custom_call.1} parent=11 // pred_fallthru
          _
        // Predicated region
        $region57: #{tpu_custom_call.1} parent=11 // pred_check
          %p594 = pneg %p286
        $region58: #{tpu_custom_call.1} parent=11 // pred_check_branch
          %596 = sbr.rel (%p594) target = $region60
        $region59: #{tpu_custom_call.1} parent=11 // pred_region
          _
        $region60: #{tpu_custom_call.1} parent=11 // pred_fallthru
          _
      $region12: #{tpu_custom_call.1} parent=5 // pred_fallthru
        _
      %p597 = scmp.lt.s32.totalorder %s34, 2
      // Predicated region
      $region61: #{tpu_custom_call.1} parent=5 // pred_check
        %p598 = pneg %p597
      $region62: #{tpu_custom_call.1} parent=5 // pred_check_branch
        %600 = sbr.rel (%p598) target = $region64
      $region63: #{tpu_custom_call.1} parent=5 // pred_region
        // Predicated region
        $region65: #{tpu_custom_call.1} parent=63 // pred_check
          %p601 = pneg %p306
        $region66: #{tpu_custom_call.1} parent=63 // pred_check_branch
          %603 = sbr.rel (%p601) target = $region68
        $region67: #{tpu_custom_call.1} parent=63 // pred_region
          %p604 = scmp.lt.s32.totalorder %s34, 1
          %s605 = scalar_select %p604, %s34, 1
          %s606 = smul.addr %s605, 4
          %s607 = smul.addr %s606, 8
          %s608 = scalar_lea.vmem %s12, %s607
        $region68: #{tpu_custom_call.1} parent=63 // pred_fallthru
          _
        // Predicated region
        $region69: #{tpu_custom_call.1} parent=63 // pred_check
          %p609 = pneg %p332
        $region70: #{tpu_custom_call.1} parent=63 // pred_check_branch
          %611 = sbr.rel (%p609) target = $region72
        $region71: #{tpu_custom_call.1} parent=63 // pred_region
          %p612 = scmp.lt.s32.totalorder %s34, 1
          %s613 = scalar_select %p612, %s34, 1
          %s614 = smul.addr %s613, 4
          %s615 = scalar_lea.vmem %s13, %s614
        $region72: #{tpu_custom_call.1} parent=63 // pred_fallthru
          _
        // Predicated region
        $region73: #{tpu_custom_call.1} parent=63 // pred_check
          %p616 = pneg %p358
        $region74: #{tpu_custom_call.1} parent=63 // pred_check_branch
          %618 = sbr.rel (%p616) target = $region76
        $region75: #{tpu_custom_call.1} parent=63 // pred_region
          %p619 = scmp.lt.s32.totalorder %s34, 1
          %s620 = scalar_select %p619, %s34, 1
          %s621 = scalar_lea.vmem %s14, %s620
        $region76: #{tpu_custom_call.1} parent=63 // pred_fallthru
          _
        // Predicated region
        $region77: #{tpu_custom_call.1} parent=63 // pred_check
          %p622 = pneg %p384
        $region78: #{tpu_custom_call.1} parent=63 // pred_check_branch
          %624 = sbr.rel (%p622) target = $region80
        $region79: #{tpu_custom_call.1} parent=63 // pred_region
          %p625 = scmp.lt.s32.totalorder %s34, 1
          %s626 = scalar_select %p625, %s34, 1
          %s627 = smul.addr %s626, 8
          %s628 = smul.addr %s627, 8
          %s629 = scalar_lea.vmem %s15, %s628
        $region80: #{tpu_custom_call.1} parent=63 // pred_fallthru
          _
        // Predicated region
        $region81: #{tpu_custom_call.1} parent=63 // pred_check
          %p630 = pneg %p410
        $region82: #{tpu_custom_call.1} parent=63 // pred_check_branch
          %632 = sbr.rel (%p630) target = $region84
        $region83: #{tpu_custom_call.1} parent=63 // pred_region
          %p633 = scmp.lt.s32.totalorder %s34, 1
          %s634 = scalar_select %p633, %s34, 1
          %s635 = scalar_lea.vmem %s16, %s634
        $region84: #{tpu_custom_call.1} parent=63 // pred_fallthru
          _
        // Predicated region
        $region85: #{tpu_custom_call.1} parent=63 // pred_check
          %p636 = pneg %p436
        $region86: #{tpu_custom_call.1} parent=63 // pred_check_branch
          %638 = sbr.rel (%p636) target = $region88
        $region87: #{tpu_custom_call.1} parent=63 // pred_region
          %p639 = scmp.lt.s32.totalorder %s34, 1
          %s640 = scalar_select %p639, %s34, 1
          %s641 = smul.addr %s640, 2
          %s642 = smul.addr %s641, 8
          %s643 = scalar_lea.vmem %s17, %s642
        $region88: #{tpu_custom_call.1} parent=63 // pred_fallthru
          _
        // Predicated region
        $region89: #{tpu_custom_call.1} parent=63 // pred_check
          %p644 = pneg %p462
        $region90: #{tpu_custom_call.1} parent=63 // pred_check_branch
          %646 = sbr.rel (%p644) target = $region92
        $region91: #{tpu_custom_call.1} parent=63 // pred_region
          %p647 = scmp.lt.s32.totalorder %s34, 1
          %s648 = scalar_select %p647, %s34, 1
          %s649 = scalar_lea.vmem %s18, %s648
        $region92: #{tpu_custom_call.1} parent=63 // pred_fallthru
          _
        // Predicated region
        $region93: #{tpu_custom_call.1} parent=63 // pred_check
          %p650 = pneg %p488
        $region94: #{tpu_custom_call.1} parent=63 // pred_check_branch
          %652 = sbr.rel (%p650) target = $region96
        $region95: #{tpu_custom_call.1} parent=63 // pred_region
          %p653 = scmp.lt.s32.totalorder %s34, 1
          %s654 = scalar_select %p653, %s34, 1
          %s655 = smul.addr %s654, 8
          %s656 = smul.addr %s655, 8
          %s657 = scalar_lea.vmem %s19, %s656
        $region96: #{tpu_custom_call.1} parent=63 // pred_fallthru
          _
      $region64: #{tpu_custom_call.1} parent=5 // pred_fallthru
        _
      %p658 = scmp.le.s32.totalorder 1, %s34
      %p659 = scmp.lt.s32.totalorder %s34, 3
      %p660 = pnand %p658, %p659
      %p661 = pneg %p660
      // Predicated region
      $region97: #{tpu_custom_call.1} parent=5 // pred_check
        _
      $region98: #{tpu_custom_call.1} parent=5 // pred_check_branch
        %663 = sbr.rel (%p660) target = $region100
      $region99: #{tpu_custom_call.1} parent=5 // pred_region
        %s664 = ssub.s32 %s34, 1
        %p665 = pneg %p55
        %p666 = pneg %p52
        %p667 = pneg %p76
        %p668 = pneg %p73
        %p669 = pneg %p97
        %p670 = pneg %p94
        %p671 = pneg %p118
        %p672 = pneg %p115
        %p673 = pneg %p139
        %p674 = pneg %p136
        %p675 = pneg %p160
        %p676 = pneg %p157
        %p677 = pneg %p181
        %p678 = pneg %p178
        %p679 = pneg %p202
        %p680 = pneg %p199
        %p681 = pneg %p223
        %p682 = pneg %p220
        %p683 = pneg %p244
        %p684 = pneg %p241
        %p685 = pneg %p265
        %p686 = pneg %p262
        %p687 = pneg %p286
        %p688 = pneg %p283
        %p689 = scmp.lt.s32.totalorder %s39, 1
        %s690 = scalar_select %p689, %s39, 1
        %s691 = smul.addr %s690, 4
        %s692 = smul.addr %s691, 8
        %s693 = scalar_lea.vmem %s12, %s692
        %p694 = pneg %p312
        %p695 = pneg %p309
        %p696 = scmp.lt.s32.totalorder %s39, 1
        %s697 = scalar_select %p696, %s39, 1
        %s698 = smul.addr %s697, 4
        %s699 = scalar_lea.vmem %s13, %s698
        %p700 = pneg %p338
        %p701 = pneg %p335
        %p702 = scmp.lt.s32.totalorder %s39, 1
        %s703 = scalar_select %p702, %s39, 1
        %s704 = scalar_lea.vmem %s14, %s703
        %p705 = pneg %p364
        %p706 = pneg %p361
        %p707 = scmp.lt.s32.totalorder %s39, 1
        %s708 = scalar_select %p707, %s39, 1
        %s709 = smul.addr %s708, 8
        %s710 = smul.addr %s709, 8
        %s711 = scalar_lea.vmem %s15, %s710
        %p712 = pneg %p390
        %p713 = pneg %p387
        %p714 = scmp.lt.s32.totalorder %s39, 1
        %s715 = scalar_select %p714, %s39, 1
        %s716 = scalar_lea.vmem %s16, %s715
        %p717 = pneg %p416
        %p718 = pneg %p413
        %p719 = scmp.lt.s32.totalorder %s39, 1
        %s720 = scalar_select %p719, %s39, 1
        %s721 = smul.addr %s720, 2
        %s722 = smul.addr %s721, 8
        %s723 = scalar_lea.vmem %s17, %s722
        %p724 = pneg %p442
        %p725 = pneg %p439
        %p726 = scmp.lt.s32.totalorder %s39, 1
        %s727 = scalar_select %p726, %s39, 1
        %s728 = scalar_lea.vmem %s18, %s727
        %p729 = pneg %p468
        %p730 = pneg %p465
        %p731 = scmp.lt.s32.totalorder %s39, 1
        %s732 = scalar_select %p731, %s39, 1
        %s733 = smul.addr %s732, 8
        %s734 = smul.addr %s733, 8
        %s735 = scalar_lea.vmem %s19, %s734
        %p736 = pneg %p494
        %p737 = pneg %p491
        %p738 = pneg %p520
        %p739 = pneg %p517
        %s740 = sand.u32 %s507, 1
        %s741 = scalar_lea.sflag [#allocation4], %s740
        %s742 = sand.u32 %s507, 1
        %s743 = smul.addr %s742, 16
        %s744 = scalar_lea.vmem [#allocation3], %s743
        %p745 = pneg %p546
        %p746 = pneg %p543
        %s747 = sand.u32 %s533, 1
        %s748 = scalar_lea.sflag [#allocation6], %s747
        %s749 = sand.u32 %s533, 1
        %s750 = smul.addr %s749, 16
        %s751 = scalar_lea.vmem [#allocation5], %s750
        %p752 = scmp.lt.s32.totalorder %s39, 1
        %s753 = scalar_select %p752, %s39, 1
        %s754 = smul.addr %s753, 4
        %s755 = smul.addr %s754, 8
        %s756 = scalar_lea.vmem %s12, %s755
        %p757 = scmp.lt.s32.totalorder %s39, 1
        %s758 = scalar_select %p757, %s39, 1
        %s759 = smul.addr %s758, 4
        %s760 = scalar_lea.vmem %s13, %s759
        %p761 = scmp.lt.s32.totalorder %s39, 1
        %s762 = scalar_select %p761, %s39, 1
        %s763 = scalar_lea.vmem %s14, %s762
        %p764 = scmp.lt.s32.totalorder %s39, 1
        %s765 = scalar_select %p764, %s39, 1
        %s766 = smul.addr %s765, 8
        %s767 = smul.addr %s766, 8
        %s768 = scalar_lea.vmem %s15, %s767
        %p769 = scmp.lt.s32.totalorder %s39, 1
        %s770 = scalar_select %p769, %s39, 1
        %s771 = scalar_lea.vmem %s16, %s770
        %p772 = scmp.lt.s32.totalorder %s39, 1
        %s773 = scalar_select %p772, %s39, 1
        %s774 = smul.addr %s773, 2
        %s775 = smul.addr %s774, 8
        %s776 = scalar_lea.vmem %s17, %s775
        %p777 = scmp.lt.s32.totalorder %s39, 1
        %s778 = scalar_select %p777, %s39, 1
        %s779 = scalar_lea.vmem %s18, %s778
        %p780 = scmp.lt.s32.totalorder %s39, 1
        %s781 = scalar_select %p780, %s39, 1
        %s782 = smul.addr %s781, 8
        %s783 = smul.addr %s782, 8
        %s784 = scalar_lea.vmem %s19, %s783
        %v785 = vld [vmem:[%s0] sm:$0xff]
        %v786 = vld [vmem:[%s0 + $0x8] sm:$0xff]
        %v787 = vld [vmem:[%s2] sm:$0xff]
        %v788 = vld [vmem:[%s2 + $0x8] sm:$0xff]
        %v789 = vadd.f32 %v785, %v787
        %v790 = vadd.f32 %v786, %v788
        %v791 = vld [vmem:[%s1] sm:$0xff]
        %v792 = vld [vmem:[%s1 + $0x8] sm:$0xff]
        %v793 = vld [vmem:[%s3] sm:$0xff]
        %v794 = vld [vmem:[%s3 + $0x8] sm:$0xff]
        %v795 = vadd.f32 %v791, %v793
        %v796 = vadd.f32 %v792, %v794
        %p797 = scmp.eq.s32.totalorder %s39, 0
        %s798 = scalar_select %p797, 1, 0
        %v799 = vstv %s798
        %vm800 = vcmp.eq.s32.totalorder %v799, 1
        %v801 = vsel %vm800, %v789, %v795
        %v802 = vsel %vm800, %v790, %v796
        %vm803 = vcmask 261120
        %804 = vst.msk [vmem:[%s751] sm:$0xff] %vm803, %v801
        %805 = vst.msk [vmem:[%s751 + $0x8] sm:$0xff] %vm803, %v802
        %v806 = vld [vmem:[%s4] sm:$0x1]
        %v807 = vld [vmem:[%s5] sm:$0x1]
        %v808 = vsel %vm803, %v789, 0.0
        %809 = vadd.xlane.f32.xlu0 %v808
        %v810 = vpop.xlane.xlu0 %809
        %v811 = vsel %vm803, %v790, 0.0
        %812 = vadd.xlane.f32.xlu0 %v811
        %v813 = vpop.xlane.xlu0 %812
        %v814 = vrcp.pop 32.0
        %v815 = vmul.f32 32.0, %v814
        %v816 = vsub.f32 1.0, %v815
        %v817 = vmul.f32 %v814, %v816
        %v818 = vadd.f32 %v814, %v817
        %vm819 = vweird.f32 %v814
        %v820 = vsel %vm819, %v814, %v818
        %v821 = vmul.f32 %v810, %v820
        %v822 = vmul.f32 %v813, %v820
        %v823 = vsub.f32 %v789, %v821
        %v824 = vsub.f32 %v790, %v822
        %v825 = vmul.f32 %v823, %v823
        %v826 = vmul.f32 %v824, %v824
        %v827 = vsel %vm803, %v825, 0.0
        %828 = vadd.xlane.f32.xlu0 %v827
        %v829 = vpop.xlane.xlu0 %828
        %v830 = vsel %vm803, %v826, 0.0
        %831 = vadd.xlane.f32.xlu0 %v830
        %v832 = vpop.xlane.xlu0 %831
        %v833 = vmul.f32 %v829, %v820
        %v834 = vmul.f32 %v832, %v820
        %v835 = vadd.f32 %v833, 1e-05
        %v836 = vadd.f32 %v834, 1e-05
        %v837 = vrsqrt.pop %v835
        %v838 = vmul.f32 %v837, %v835
        %v839 = vmul.f32 %v838, %v837
        %v840 = vmul.f32 0.5, %v839
        %v841 = vsub.f32 1.5, %v840
        %v842 = vmul.f32 %v837, %v841
        %vm843 = vweird.f32 %v835
        %vm844 = vweird.f32 %v837
        %vm845 = vmor %vm843, %vm844
        %v846 = vsel %vm845, %v837, %v842
        %v847 = vrsqrt.pop %v836
        %v848 = vmul.f32 %v847, %v836
        %v849 = vmul.f32 %v848, %v847
        %v850 = vmul.f32 0.5, %v849
        %v851 = vsub.f32 1.5, %v850
        %v852 = vmul.f32 %v847, %v851
        %vm853 = vweird.f32 %v836
        %vm854 = vweird.f32 %v847
        %vm855 = vmor %vm853, %vm854
        %v856 = vsel %vm855, %v847, %v852
        %v857 = vmul.f32 %v823, %v846
        %v858 = vmul.f32 %v824, %v856
        %v860 = vperm.slane %v806, 0
        %v862 = vmul.f32 %v857, %v860
        %v863 = vmul.f32 %v858, %v860
        %v865 = vperm.slane %v807, 0
        %v867 = vadd.f32 %v862, %v865
        %v868 = vadd.f32 %v863, %v865
        %v869 = vld [vmem:[%s6] sm:$0x1]
        %v870 = vld [vmem:[%s7] sm:$0x1]
        %v871 = vsel %vm803, %v795, 0.0
        %872 = vadd.xlane.f32.xlu0 %v871
        %v873 = vpop.xlane.xlu0 %872
        %v874 = vsel %vm803, %v796, 0.0
        %875 = vadd.xlane.f32.xlu0 %v874
        %v876 = vpop.xlane.xlu0 %875
        %v877 = vmul.f32 %v873, %v820
        %v878 = vmul.f32 %v876, %v820
        %v879 = vsub.f32 %v795, %v877
        %v880 = vsub.f32 %v796, %v878
        %v881 = vmul.f32 %v879, %v879
        %v882 = vmul.f32 %v880, %v880
        %v883 = vsel %vm803, %v881, 0.0
        %884 = vadd.xlane.f32.xlu0 %v883
        %v885 = vpop.xlane.xlu0 %884
        %v886 = vsel %vm803, %v882, 0.0
        %887 = vadd.xlane.f32.xlu0 %v886
        %v888 = vpop.xlane.xlu0 %887
        %v889 = vmul.f32 %v885, %v820
        %v890 = vmul.f32 %v888, %v820
        %v891 = vadd.f32 %v889, 1e-05
        %v892 = vadd.f32 %v890, 1e-05
        %v893 = vrsqrt.pop %v891
        %v894 = vmul.f32 %v893, %v891
        %v895 = vmul.f32 %v894, %v893
        %v896 = vmul.f32 0.5, %v895
        %v897 = vsub.f32 1.5, %v896
        %v898 = vmul.f32 %v893, %v897
        %vm899 = vweird.f32 %v891
        %vm900 = vweird.f32 %v893
        %vm901 = vmor %vm899, %vm900
        %v902 = vsel %vm901, %v893, %v898
        %v903 = vrsqrt.pop %v892
        %v904 = vmul.f32 %v903, %v892
        %v905 = vmul.f32 %v904, %v903
        %v906 = vmul.f32 0.5, %v905
        %v907 = vsub.f32 1.5, %v906
        %v908 = vmul.f32 %v903, %v907
        %vm909 = vweird.f32 %v892
        %vm910 = vweird.f32 %v903
        %vm911 = vmor %vm909, %vm910
        %v912 = vsel %vm911, %v903, %v908
        %v913 = vmul.f32 %v879, %v902
        %v914 = vmul.f32 %v880, %v912
        %v916 = vperm.slane %v869, 0
        %v918 = vmul.f32 %v913, %v916
        %v919 = vmul.f32 %v914, %v916
        %v921 = vperm.slane %v870, 0
        %v923 = vadd.f32 %v918, %v921
        %v924 = vadd.f32 %v919, %v921
        %v925 = vlaneseq
        %v926 = vand.u32 %v925, 127
        %vm927 = vcmp.lt.s32.totalorder %v926, 16
        %p928 = scmp.eq.s32.totalorder %s39, 1
        %s929 = scalar_select %p928, 1, 0
        %v930 = vstv %s929
        %vm931 = vcmp.eq.s32.totalorder %v930, 1
        %vm932 = vmxor %vm927, %vm931
        %v933 = vsel %vm932, %v923, %v867
        %v934 = vsel %vm932, %v924, %v868
        %v935 = vld [vmem:[%s756] sm:$0xff]
        %v936 = vld [vmem:[%s756 + $0x8] sm:$0xff]
        %v937 = vld [vmem:[%s756 + $0x10] sm:$0xff]
        %v938 = vld [vmem:[%s756 + $0x18] sm:$0xff]
        %v940 = vsel %vm803, %v933, 0
        %v943 = vsel %vm803, %v934, 0
        %945 = vmatpush.msra.mxu0 0.0
        %946 = vmatpush.msra.mxu0 0.0
        %947 = vmatpush.msra.mxu0 0.0
        %948 = vmatpush.msra.mxu0 0.0
        %949 = vmatpush.msra.mxu0 0.0
        %950 = vmatpush.msra.mxu0 0.0
        %951 = vmatpush.msra.mxu0 0.0
        %952 = vmatpush.msra.mxu0 0.0
        %953 = vmatpush.msra.mxu0 0.0
        %954 = vmatpush.msra.mxu0 0.0
        %955 = vmatpush.msra.mxu0 0.0
        %956 = vmatpush.msra.mxu0 0.0
        %957 = vmatpush.msra.mxu0 %v938
        %958 = vmatpush.msra.mxu0 %v937
        %959 = vmatpush.msra.mxu0 %v936
        %960 = vmatpush.msra.mxu0 %v935
        %961 = vmatmul.f32.gmra.mxu0 %v940
        %v962 = vpop.f32.mrf.mxu0
        %v963 = vadd.f32 0.0, %v962
        %964 = vmatmul.f32.gmra.mxu0 %v943
        %v965 = vpop.f32.mrf.mxu0
        %v966 = vadd.f32 0.0, %v965
        %967 = vdwg.mxu0
        %v968 = vld [vmem:[%s760] sm:$0xf]
        %v969 = vld [vmem:[%s11] sm:$0xff]
        %v970 = vld [vmem:[%s11 + $0x8] sm:$0xff]
        %v971 = vld [vmem:[%s11 + $0x10] sm:$0xff]
        %v972 = vld [vmem:[%s11 + $0x18] sm:$0xff]
        %v973 = vld [vmem:[%s11 + $0x20] sm:$0xff]
        %v974 = vld [vmem:[%s11 + $0x28] sm:$0xff]
        %vm975 = vcmask 130048
        %v977 = vsel %vm975, %v969, 0
        %v980 = vsel %vm975, %v970, 0
        %v983 = vsel %vm975, %v971, 0
        %v986 = vsel %vm975, %v972, 0
        %v989 = vsel %vm975, %v973, 0
        %v992 = vsel %vm975, %v974, 0
        %994 = vmatpush.msra.mxu0 0.0
        %995 = vmatpush.msra.mxu0 0.0
        %996 = vmatpush.msra.mxu0 0.0
        %997 = vmatpush.msra.mxu0 0.0
        %998 = vmatpush.msra.mxu0 0.0
        %999 = vmatpush.msra.mxu0 0.0
        %1000 = vmatpush.msra.mxu0 0.0
        %1001 = vmatpush.msra.mxu0 0.0
        %1002 = vmatpush.msra.mxu0 0.0
        %1003 = vmatpush.msra.mxu0 0.0
        %1004 = vmatpush.msra.mxu0 0.0
        %1005 = vmatpush.msra.mxu0 0.0
        %1006 = vmatpush.msra.mxu0 0.0
        %1007 = vmatpush.msra.mxu0 0.0
        %1008 = vmatpush.msra.mxu0 %v966
        %1009 = vmatpush.msra.mxu0 %v963
        %1010 = vmatmul.f32.gmra.mxu0 %v977
        %v1011 = vpop.f32.mrf.mxu0
        %v1012 = vadd.f32 0.0, %v1011
        %1013 = vmatmul.f32.gmra.mxu0 %v980
        %v1014 = vpop.f32.mrf.mxu0
        %v1015 = vadd.f32 0.0, %v1014
        %1016 = vmatmul.f32.gmra.mxu0 %v983
        %v1017 = vpop.f32.mrf.mxu0
        %v1018 = vadd.f32 0.0, %v1017
        %1019 = vmatmul.f32.gmra.mxu0 %v986
        %v1020 = vpop.f32.mrf.mxu0
        %v1021 = vadd.f32 0.0, %v1020
        %1022 = vmatmul.f32.gmra.mxu0 %v989
        %v1023 = vpop.f32.mrf.mxu0
        %v1024 = vadd.f32 0.0, %v1023
        %1025 = vmatmul.f32.gmra.mxu0 %v992
        %v1026 = vpop.f32.mrf.mxu0
        %v1027 = vadd.f32 0.0, %v1026
        %1028 = vdwg.mxu0
        %v1029 = vld [vmem:[%s763] sm:$0x1]
        %v1030 = vperm.slane %v968, 3
        %v1031 = vmul.f32 %v963, %v1030
        %v1032 = vmul.f32 %v966, %v1030
        %v1034 = vperm.slane %v1029, 0
        %v1036 = vadd.f32 %v1034, %v1031
        %v1037 = vadd.f32 %v1034, %v1032
        %v1038 = vperm.slane %v968, 2
        %v1039 = vmul.f32 %v1012, %v1038
        %v1040 = vmul.f32 %v1015, %v1038
        %v1041 = vadd.f32 %v1036, %v1039
        %v1042 = vadd.f32 %v1037, %v1040
        %v1043 = vperm.slane %v968, 1
        %v1044 = vmul.f32 %v1018, %v1043
        %v1045 = vmul.f32 %v1021, %v1043
        %v1046 = vadd.f32 %v1041, %v1044
        %v1047 = vadd.f32 %v1042, %v1045
        %v1048 = vperm.slane %v968, 0
        %v1049 = vmul.f32 %v1024, %v1048
        %v1050 = vmul.f32 %v1027, %v1048
        %v1051 = vadd.f32 %v1046, %v1049
        %v1052 = vadd.f32 %v1047, %v1050
        %v1053 = vsub.f32 0.0, %v1051
        %v1054 = vsub.f32 0.0, %v1052
        %v1055 = vmul.f32 %v1053, 1.442695
        %v1056 = vpow.pop %v1055
        %v1057 = vmul.f32 %v1054, 1.442695
        %v1058 = vpow.pop %v1057
        %v1059 = vadd.f32 %v1056, 1.0
        %v1060 = vadd.f32 %v1058, 1.0
        %v1061 = vrcp.pop %v1059
        %v1062 = vmul.f32 %v1059, %v1061
        %v1063 = vsub.f32 1.0, %v1062
        %v1064 = vmul.f32 %v1061, %v1063
        %v1065 = vadd.f32 %v1061, %v1064
        %vm1066 = vweird.f32 %v1059
        %vm1067 = vweird.f32 %v1061
        %vm1068 = vmor %vm1066, %vm1067
        %v1069 = vsel %vm1068, %v1061, %v1065
        %v1070 = vand.u32 2147483647, %v1059
        %vm1071 = vcmp.eq.f32.partialorder %v1070, 8.507059e+37
        %v1072 = vand.u32 %v1059, 2147483648
        %v1073 = vor.u32 1.1754944e-38, %v1072
        %v1074 = vsel %vm1071, %v1073, %v1069
        %v1075 = vmul.f32 1.0, %v1074
        %v1076 = vrcp.pop %v1060
        %v1077 = vmul.f32 %v1060, %v1076
        %v1078 = vsub.f32 1.0, %v1077
        %v1079 = vmul.f32 %v1076, %v1078
        %v1080 = vadd.f32 %v1076, %v1079
        %vm1081 = vweird.f32 %v1060
        %vm1082 = vweird.f32 %v1076
        %vm1083 = vmor %vm1081, %vm1082
        %v1084 = vsel %vm1083, %v1076, %v1080
        %v1085 = vand.u32 2147483647, %v1060
        %vm1086 = vcmp.eq.f32.partialorder %v1085, 8.507059e+37
        %v1087 = vand.u32 %v1060, 2147483648
        %v1088 = vor.u32 1.1754944e-38, %v1087
        %v1089 = vsel %vm1086, %v1088, %v1084
        %v1090 = vmul.f32 1.0, %v1089
        %v1091 = vmul.f32 %v1051, %v1075
        %v1092 = vmul.f32 %v1052, %v1090
        %v1093 = vld [vmem:[%s768] sm:$0xff]
        %v1094 = vld [vmem:[%s768 + $0x8] sm:$0xff]
        %v1095 = vld [vmem:[%s768 + $0x10] sm:$0xff]
        %v1096 = vld [vmem:[%s768 + $0x18] sm:$0xff]
        %v1097 = vld [vmem:[%s768 + $0x20] sm:$0xff]
        %v1098 = vld [vmem:[%s768 + $0x28] sm:$0xff]
        %v1099 = vld [vmem:[%s768 + $0x30] sm:$0xff]
        %v1100 = vld [vmem:[%s768 + $0x38] sm:$0xff]
        %vm1101 = vcmask 523264
        %v1103 = vsel %vm1101, %v1091, 0
        %v1106 = vsel %vm1101, %v1092, 0
        %1108 = vmatpush.msra.mxu0 0.0
        %1109 = vmatpush.msra.mxu0 0.0
        %1110 = vmatpush.msra.mxu0 0.0
        %1111 = vmatpush.msra.mxu0 0.0
        %1112 = vmatpush.msra.mxu0 0.0
        %1113 = vmatpush.msra.mxu0 0.0
        %1114 = vmatpush.msra.mxu0 0.0
        %1115 = vmatpush.msra.mxu0 0.0
        %1116 = vmatpush.msra.mxu0 %v1100
        %1117 = vmatpush.msra.mxu0 %v1099
        %1118 = vmatpush.msra.mxu0 %v1098
        %1119 = vmatpush.msra.mxu0 %v1097
        %1120 = vmatpush.msra.mxu0 %v1096
        %1121 = vmatpush.msra.mxu0 %v1095
        %1122 = vmatpush.msra.mxu0 %v1094
        %1123 = vmatpush.msra.mxu0 %v1093
        %1124 = vmatmul.f32.gmra.mxu0 %v1103
        %v1125 = vpop.f32.mrf.mxu0
        %v1126 = vadd.f32 0.0, %v1125
        %1127 = vmatmul.f32.gmra.mxu0 %v1106
        %v1128 = vpop.f32.mrf.mxu0
        %v1129 = vadd.f32 0.0, %v1128
        %1130 = vdwg.mxu0
        %v1131 = vld [vmem:[%s771] sm:$0x1]
        %v1133 = vperm.slane %v1131, 0
        %v1135 = vadd.f32 %v1126, %v1133
        %v1136 = vadd.f32 %v1129, %v1133
        %v1137 = vmax.f32 %v1135, 0.0
        %v1138 = vmax.f32 %v1136, 0.0
        %v1139 = vand.u32 2147483647, %v1135
        %v1140 = vand.u32 2147483647, %v1136
        %v1141 = vsub.f32 0.0, %v1139
        %v1142 = vsub.f32 0.0, %v1140
        %v1143 = vmul.f32 %v1141, 1.442695
        %v1144 = vpow.pop %v1143
        %v1145 = vmul.f32 %v1142, 1.442695
        %v1146 = vpow.pop %v1145
        %v1147 = vadd.f32 %v1144, 1.0
        %v1148 = vadd.f32 %v1146, 1.0
        %v1149 = vlog2.pop %v1147
        %v1150 = vmul.f32 %v1149, 0.6931472
        %v1151 = vlog2.pop %v1148
        %v1152 = vmul.f32 %v1151, 0.6931472
        %v1153 = vadd.f32 %v1137, %v1150
        %v1154 = vadd.f32 %v1138, %v1152
        %v1155 = vmul.f32 %v1153, %v1091
        %v1156 = vmul.f32 %v1154, %v1092
        %1159 = vrot.lane.b32.xlu0 %v1155, 64
        %v1160 = vpop.permute.xlu0 %1159
        %1161 = vrot.lane.b32.xlu0 %v1156, 64
        %v1162 = vpop.permute.xlu0 %1161
        %1167 = vrot.lane.b32.xlu0 %v1126, 64
        %v1168 = vpop.permute.xlu0 %1167
        %1169 = vrot.lane.b32.xlu0 %v1129, 64
        %v1170 = vpop.permute.xlu0 %1169
        %v1173 = vsel %vm1101, %v1153, %v1160
        %v1174 = vsel %vm1101, %v1154, %v1162
        %v1175 = vld [vmem:[%s8] sm:$0xff]
        %v1176 = vld [vmem:[%s8 + $0x8] sm:$0xff]
        %v1177 = vld [vmem:[%s8 + $0x10] sm:$0xff]
        %v1178 = vld [vmem:[%s8 + $0x18] sm:$0xff]
        %v1179 = vld [vmem:[%s8 + $0x20] sm:$0xff]
        %v1180 = vld [vmem:[%s8 + $0x28] sm:$0xff]
        %v1181 = vld [vmem:[%s8 + $0x30] sm:$0xff]
        %v1182 = vld [vmem:[%s8 + $0x38] sm:$0xff]
        %v1183 = vld [vmem:[%s8 + $0x40] sm:$0xff]
        %v1184 = vld [vmem:[%s8 + $0x48] sm:$0xff]
        %v1185 = vld [vmem:[%s8 + $0x50] sm:$0xff]
        %v1186 = vld [vmem:[%s8 + $0x58] sm:$0xff]
        %v1187 = vld [vmem:[%s8 + $0x60] sm:$0xff]
        %v1188 = vld [vmem:[%s8 + $0x68] sm:$0xff]
        %v1189 = vld [vmem:[%s8 + $0x70] sm:$0xff]
        %v1190 = vld [vmem:[%s8 + $0x78] sm:$0xff]
        %v1191 = vld [vmem:[%s8 + $0x80] sm:$0xff]
        %v1192 = vld [vmem:[%s8 + $0x88] sm:$0xff]
        %v1193 = vld [vmem:[%s8 + $0x90] sm:$0xff]
        %v1194 = vld [vmem:[%s8 + $0x98] sm:$0xff]
        %v1195 = vld [vmem:[%s8 + $0xa0] sm:$0xff]
        %v1196 = vld [vmem:[%s8 + $0xa8] sm:$0xff]
        %v1197 = vld [vmem:[%s8 + $0xb0] sm:$0xff]
        %v1198 = vld [vmem:[%s8 + $0xb8] sm:$0xff]
        %v1199 = vld [vmem:[%s8 + $0xc0] sm:$0xff]
        %v1200 = vld [vmem:[%s8 + $0xc8] sm:$0xff]
        %v1201 = vld [vmem:[%s8 + $0xd0] sm:$0xff]
        %v1202 = vld [vmem:[%s8 + $0xd8] sm:$0xff]
        %v1203 = vld [vmem:[%s8 + $0xe0] sm:$0xff]
        %v1204 = vld [vmem:[%s8 + $0xe8] sm:$0xff]
        %v1205 = vld [vmem:[%s8 + $0xf0] sm:$0xff]
        %v1206 = vld [vmem:[%s8 + $0xf8] sm:$0xff]
        %v1208 = vsel %vm975, %v1175, 0
        %v1211 = vsel %vm975, %v1176, 0
        %v1214 = vsel %vm975, %v1177, 0
        %v1217 = vsel %vm975, %v1178, 0
        %v1220 = vsel %vm975, %v1179, 0
        %v1223 = vsel %vm975, %v1180, 0
        %v1226 = vsel %vm975, %v1181, 0
        %v1229 = vsel %vm975, %v1182, 0
        %v1232 = vsel %vm975, %v1183, 0
        %v1235 = vsel %vm975, %v1184, 0
        %v1238 = vsel %vm975, %v1185, 0
        %v1241 = vsel %vm975, %v1186, 0
        %v1244 = vsel %vm975, %v1187, 0
        %v1247 = vsel %vm975, %v1188, 0
        %v1250 = vsel %vm975, %v1189, 0
        %v1253 = vsel %vm975, %v1190, 0
        %v1256 = vsel %vm975, %v1191, 0
        %v1259 = vsel %vm975, %v1192, 0
        %v1262 = vsel %vm975, %v1193, 0
        %v1265 = vsel %vm975, %v1194, 0
        %v1268 = vsel %vm975, %v1195, 0
        %v1271 = vsel %vm975, %v1196, 0
        %v1274 = vsel %vm975, %v1197, 0
        %v1277 = vsel %vm975, %v1198, 0
        %v1280 = vsel %vm975, %v1199, 0
        %v1283 = vsel %vm975, %v1200, 0
        %v1286 = vsel %vm975, %v1201, 0
        %v1289 = vsel %vm975, %v1202, 0
        %v1292 = vsel %vm975, %v1203, 0
        %v1295 = vsel %vm975, %v1204, 0
        %v1298 = vsel %vm975, %v1205, 0
        %v1301 = vsel %vm975, %v1206, 0
        %1303 = vmatpush.msra.mxu0 0.0
        %1304 = vmatpush.msra.mxu0 0.0
        %1305 = vmatpush.msra.mxu0 0.0
        %1306 = vmatpush.msra.mxu0 0.0
        %1307 = vmatpush.msra.mxu0 0.0
        %1308 = vmatpush.msra.mxu0 0.0
        %1309 = vmatpush.msra.mxu0 0.0
        %1310 = vmatpush.msra.mxu0 0.0
        %1311 = vmatpush.msra.mxu0 0.0
        %1312 = vmatpush.msra.mxu0 0.0
        %1313 = vmatpush.msra.mxu0 0.0
        %1314 = vmatpush.msra.mxu0 0.0
        %1315 = vmatpush.msra.mxu0 0.0
        %1316 = vmatpush.msra.mxu0 0.0
        %1317 = vmatpush.msra.mxu0 %v1174
        %1318 = vmatpush.msra.mxu0 %v1173
        %1319 = vmatmul.f32.gmra.mxu0 %v1208
        %v1320 = vpop.f32.mrf.mxu0
        %v1321 = vadd.f32 0.0, %v1320
        %1322 = vmatmul.f32.gmra.mxu0 %v1211
        %v1323 = vpop.f32.mrf.mxu0
        %v1324 = vadd.f32 0.0, %v1323
        %1325 = vmatmul.f32.gmra.mxu0 %v1214
        %v1326 = vpop.f32.mrf.mxu0
        %v1327 = vadd.f32 0.0, %v1326
        %1328 = vmatmul.f32.gmra.mxu0 %v1217
        %v1329 = vpop.f32.mrf.mxu0
        %v1330 = vadd.f32 0.0, %v1329
        %1331 = vmatmul.f32.gmra.mxu0 %v1220
        %v1332 = vpop.f32.mrf.mxu0
        %v1333 = vadd.f32 0.0, %v1332
        %1334 = vmatmul.f32.gmra.mxu0 %v1223
        %v1335 = vpop.f32.mrf.mxu0
        %v1336 = vadd.f32 0.0, %v1335
        %1337 = vmatmul.f32.gmra.mxu0 %v1226
        %v1338 = vpop.f32.mrf.mxu0
        %v1339 = vadd.f32 0.0, %v1338
        %1340 = vmatmul.f32.gmra.mxu0 %v1229
        %v1341 = vpop.f32.mrf.mxu0
        %v1342 = vadd.f32 0.0, %v1341
        %1343 = vmatmul.f32.gmra.mxu0 %v1232
        %v1344 = vpop.f32.mrf.mxu0
        %v1345 = vadd.f32 0.0, %v1344
        %1346 = vmatmul.f32.gmra.mxu0 %v1235
        %v1347 = vpop.f32.mrf.mxu0
        %v1348 = vadd.f32 0.0, %v1347
        %1349 = vmatmul.f32.gmra.mxu0 %v1238
        %v1350 = vpop.f32.mrf.mxu0
        %v1351 = vadd.f32 0.0, %v1350
        %1352 = vmatmul.f32.gmra.mxu0 %v1241
        %v1353 = vpop.f32.mrf.mxu0
        %v1354 = vadd.f32 0.0, %v1353
        %1355 = vmatmul.f32.gmra.mxu0 %v1244
        %v1356 = vpop.f32.mrf.mxu0
        %v1357 = vadd.f32 0.0, %v1356
        %1358 = vmatmul.f32.gmra.mxu0 %v1247
        %v1359 = vpop.f32.mrf.mxu0
        %v1360 = vadd.f32 0.0, %v1359
        %1361 = vmatmul.f32.gmra.mxu0 %v1250
        %v1362 = vpop.f32.mrf.mxu0
        %v1363 = vadd.f32 0.0, %v1362
        %1364 = vmatmul.f32.gmra.mxu0 %v1253
        %v1365 = vpop.f32.mrf.mxu0
        %v1366 = vadd.f32 0.0, %v1365
        %1367 = vmatmul.f32.gmra.mxu0 %v1256
        %v1368 = vpop.f32.mrf.mxu0
        %v1369 = vadd.f32 0.0, %v1368
        %1370 = vmatmul.f32.gmra.mxu0 %v1259
        %v1371 = vpop.f32.mrf.mxu0
        %v1372 = vadd.f32 0.0, %v1371
        %1373 = vmatmul.f32.gmra.mxu0 %v1262
        %v1374 = vpop.f32.mrf.mxu0
        %v1375 = vadd.f32 0.0, %v1374
        %1376 = vmatmul.f32.gmra.mxu0 %v1265
        %v1377 = vpop.f32.mrf.mxu0
        %v1378 = vadd.f32 0.0, %v1377
        %1379 = vmatmul.f32.gmra.mxu0 %v1268
        %v1380 = vpop.f32.mrf.mxu0
        %v1381 = vadd.f32 0.0, %v1380
        %1382 = vmatmul.f32.gmra.mxu0 %v1271
        %v1383 = vpop.f32.mrf.mxu0
        %v1384 = vadd.f32 0.0, %v1383
        %1385 = vmatmul.f32.gmra.mxu0 %v1274
        %v1386 = vpop.f32.mrf.mxu0
        %v1387 = vadd.f32 0.0, %v1386
        %1388 = vmatmul.f32.gmra.mxu0 %v1277
        %v1389 = vpop.f32.mrf.mxu0
        %v1390 = vadd.f32 0.0, %v1389
        %1391 = vmatmul.f32.gmra.mxu0 %v1280
        %v1392 = vpop.f32.mrf.mxu0
        %v1393 = vadd.f32 0.0, %v1392
        %1394 = vmatmul.f32.gmra.mxu0 %v1283
        %v1395 = vpop.f32.mrf.mxu0
        %v1396 = vadd.f32 0.0, %v1395
        %1397 = vmatmul.f32.gmra.mxu0 %v1286
        %v1398 = vpop.f32.mrf.mxu0
        %v1399 = vadd.f32 0.0, %v1398
        %1400 = vmatmul.f32.gmra.mxu0 %v1289
        %v1401 = vpop.f32.mrf.mxu0
        %v1402 = vadd.f32 0.0, %v1401
        %1403 = vmatmul.f32.gmra.mxu0 %v1292
        %v1404 = vpop.f32.mrf.mxu0
        %v1405 = vadd.f32 0.0, %v1404
        %1406 = vmatmul.f32.gmra.mxu0 %v1295
        %v1407 = vpop.f32.mrf.mxu0
        %v1408 = vadd.f32 0.0, %v1407
        %1409 = vmatmul.f32.gmra.mxu0 %v1298
        %v1410 = vpop.f32.mrf.mxu0
        %v1411 = vadd.f32 0.0, %v1410
        %1412 = vmatmul.f32.gmra.mxu0 %v1301
        %v1413 = vpop.f32.mrf.mxu0
        %v1414 = vadd.f32 0.0, %v1413
        %1415 = vdwg.mxu0
        %1416 = vmatpush.msra.mxu0 0.0
        %1417 = vmatpush.msra.mxu0 0.0
        %1418 = vmatpush.msra.mxu0 0.0
        %1419 = vmatpush.msra.mxu0 0.0
        %1420 = vmatpush.msra.mxu0 0.0
        %1421 = vmatpush.msra.mxu0 0.0
        %1422 = vmatpush.msra.mxu0 0.0
        %1423 = vmatpush.msra.mxu0 0.0
        %1424 = vmatpush.msra.mxu0 0.0
        %1425 = vmatpush.msra.mxu0 0.0
        %1426 = vmatpush.msra.mxu0 0.0
        %1427 = vmatpush.msra.mxu0 0.0
        %1428 = vmatpush.msra.mxu0 0.0
        %1429 = vmatpush.msra.mxu0 0.0
        %1430 = vmatpush.msra.mxu0 %v1170
        %1431 = vmatpush.msra.mxu0 %v1168
        %1432 = vmatmul.f32.gmra.mxu0 %v1208
        %v1433 = vpop.f32.mrf.mxu0
        %v1434 = vadd.f32 0.0, %v1433
        %1435 = vmatmul.f32.gmra.mxu0 %v1211
        %v1436 = vpop.f32.mrf.mxu0
        %v1437 = vadd.f32 0.0, %v1436
        %1438 = vmatmul.f32.gmra.mxu0 %v1214
        %v1439 = vpop.f32.mrf.mxu0
        %v1440 = vadd.f32 0.0, %v1439
        %1441 = vmatmul.f32.gmra.mxu0 %v1217
        %v1442 = vpop.f32.mrf.mxu0
        %v1443 = vadd.f32 0.0, %v1442
        %1444 = vmatmul.f32.gmra.mxu0 %v1220
        %v1445 = vpop.f32.mrf.mxu0
        %v1446 = vadd.f32 0.0, %v1445
        %1447 = vmatmul.f32.gmra.mxu0 %v1223
        %v1448 = vpop.f32.mrf.mxu0
        %v1449 = vadd.f32 0.0, %v1448
        %1450 = vmatmul.f32.gmra.mxu0 %v1226
        %v1451 = vpop.f32.mrf.mxu0
        %v1452 = vadd.f32 0.0, %v1451
        %1453 = vmatmul.f32.gmra.mxu0 %v1229
        %v1454 = vpop.f32.mrf.mxu0
        %v1455 = vadd.f32 0.0, %v1454
        %1456 = vmatmul.f32.gmra.mxu0 %v1232
        %v1457 = vpop.f32.mrf.mxu0
        %v1458 = vadd.f32 0.0, %v1457
        %1459 = vmatmul.f32.gmra.mxu0 %v1235
        %v1460 = vpop.f32.mrf.mxu0
        %v1461 = vadd.f32 0.0, %v1460
        %1462 = vmatmul.f32.gmra.mxu0 %v1238
        %v1463 = vpop.f32.mrf.mxu0
        %v1464 = vadd.f32 0.0, %v1463
        %1465 = vmatmul.f32.gmra.mxu0 %v1241
        %v1466 = vpop.f32.mrf.mxu0
        %v1467 = vadd.f32 0.0, %v1466
        %1468 = vmatmul.f32.gmra.mxu0 %v1244
        %v1469 = vpop.f32.mrf.mxu0
        %v1470 = vadd.f32 0.0, %v1469
        %1471 = vmatmul.f32.gmra.mxu0 %v1247
        %v1472 = vpop.f32.mrf.mxu0
        %v1473 = vadd.f32 0.0, %v1472
        %1474 = vmatmul.f32.gmra.mxu0 %v1250
        %v1475 = vpop.f32.mrf.mxu0
        %v1476 = vadd.f32 0.0, %v1475
        %1477 = vmatmul.f32.gmra.mxu0 %v1253
        %v1478 = vpop.f32.mrf.mxu0
        %v1479 = vadd.f32 0.0, %v1478
        %1480 = vmatmul.f32.gmra.mxu0 %v1256
        %v1481 = vpop.f32.mrf.mxu0
        %v1482 = vadd.f32 0.0, %v1481
        %1483 = vmatmul.f32.gmra.mxu0 %v1259
        %v1484 = vpop.f32.mrf.mxu0
        %v1485 = vadd.f32 0.0, %v1484
        %1486 = vmatmul.f32.gmra.mxu0 %v1262
        %v1487 = vpop.f32.mrf.mxu0
        %v1488 = vadd.f32 0.0, %v1487
        %1489 = vmatmul.f32.gmra.mxu0 %v1265
        %v1490 = vpop.f32.mrf.mxu0
        %v1491 = vadd.f32 0.0, %v1490
        %1492 = vmatmul.f32.gmra.mxu0 %v1268
        %v1493 = vpop.f32.mrf.mxu0
        %v1494 = vadd.f32 0.0, %v1493
        %1495 = vmatmul.f32.gmra.mxu0 %v1271
        %v1496 = vpop.f32.mrf.mxu0
        %v1497 = vadd.f32 0.0, %v1496
        %1498 = vmatmul.f32.gmra.mxu0 %v1274
        %v1499 = vpop.f32.mrf.mxu0
        %v1500 = vadd.f32 0.0, %v1499
        %1501 = vmatmul.f32.gmra.mxu0 %v1277
        %v1502 = vpop.f32.mrf.mxu0
        %v1503 = vadd.f32 0.0, %v1502
        %1504 = vmatmul.f32.gmra.mxu0 %v1280
        %v1505 = vpop.f32.mrf.mxu0
        %v1506 = vadd.f32 0.0, %v1505
        %1507 = vmatmul.f32.gmra.mxu0 %v1283
        %v1508 = vpop.f32.mrf.mxu0
        %v1509 = vadd.f32 0.0, %v1508
        %1510 = vmatmul.f32.gmra.mxu0 %v1286
        %v1511 = vpop.f32.mrf.mxu0
        %v1512 = vadd.f32 0.0, %v1511
        %1513 = vmatmul.f32.gmra.mxu0 %v1289
        %v1514 = vpop.f32.mrf.mxu0
        %v1515 = vadd.f32 0.0, %v1514
        %1516 = vmatmul.f32.gmra.mxu0 %v1292
        %v1517 = vpop.f32.mrf.mxu0
        %v1518 = vadd.f32 0.0, %v1517
        %1519 = vmatmul.f32.gmra.mxu0 %v1295
        %v1520 = vpop.f32.mrf.mxu0
        %v1521 = vadd.f32 0.0, %v1520
        %1522 = vmatmul.f32.gmra.mxu0 %v1298
        %v1523 = vpop.f32.mrf.mxu0
        %v1524 = vadd.f32 0.0, %v1523
        %1525 = vmatmul.f32.gmra.mxu0 %v1301
        %v1526 = vpop.f32.mrf.mxu0
        %v1527 = vadd.f32 0.0, %v1526
        %1528 = vdwg.mxu0
        %v1529 = vld [vmem:[%s9] sm:$0xff]
        %v1530 = vld [vmem:[%s9 + $0x8] sm:$0xff]
        %v1531 = vld [vmem:[%s9 + $0x10] sm:$0xff]
        %v1532 = vld [vmem:[%s9 + $0x18] sm:$0xff]
        %v1533 = vld [vmem:[%s9 + $0x20] sm:$0xff]
        %v1534 = vld [vmem:[%s9 + $0x28] sm:$0xff]
        %v1535 = vld [vmem:[%s9 + $0x30] sm:$0xff]
        %v1536 = vld [vmem:[%s9 + $0x38] sm:$0xff]
        %v1537 = vld [vmem:[%s9 + $0x40] sm:$0xff]
        %v1538 = vld [vmem:[%s9 + $0x48] sm:$0xff]
        %v1539 = vld [vmem:[%s9 + $0x50] sm:$0xff]
        %v1540 = vld [vmem:[%s9 + $0x58] sm:$0xff]
        %v1541 = vld [vmem:[%s9 + $0x60] sm:$0xff]
        %v1542 = vld [vmem:[%s9 + $0x68] sm:$0xff]
        %v1543 = vld [vmem:[%s9 + $0x70] sm:$0xff]
        %v1544 = vld [vmem:[%s9 + $0x78] sm:$0xff]
        %v1545 = vld [vmem:[%s9 + $0x80] sm:$0xff]
        %v1546 = vld [vmem:[%s9 + $0x88] sm:$0xff]
        %v1547 = vld [vmem:[%s9 + $0x90] sm:$0xff]
        %v1548 = vld [vmem:[%s9 + $0x98] sm:$0xff]
        %v1549 = vld [vmem:[%s9 + $0xa0] sm:$0xff]
        %v1550 = vld [vmem:[%s9 + $0xa8] sm:$0xff]
        %v1551 = vld [vmem:[%s9 + $0xb0] sm:$0xff]
        %v1552 = vld [vmem:[%s9 + $0xb8] sm:$0xff]
        %v1553 = vld [vmem:[%s9 + $0xc0] sm:$0xff]
        %v1554 = vld [vmem:[%s9 + $0xc8] sm:$0xff]
        %v1555 = vld [vmem:[%s9 + $0xd0] sm:$0xff]
        %v1556 = vld [vmem:[%s9 + $0xd8] sm:$0xff]
        %v1557 = vld [vmem:[%s9 + $0xe0] sm:$0xff]
        %v1558 = vld [vmem:[%s9 + $0xe8] sm:$0xff]
        %v1559 = vld [vmem:[%s9 + $0xf0] sm:$0xff]
        %v1560 = vld [vmem:[%s9 + $0xf8] sm:$0xff]
        %v1561 = vmul.f32 %v1434, %v1529
        %v1562 = vmul.f32 %v1437, %v1530
        %v1563 = vmul.f32 %v1440, %v1531
        %v1564 = vmul.f32 %v1443, %v1532
        %v1565 = vmul.f32 %v1446, %v1533
        %v1566 = vmul.f32 %v1449, %v1534
        %v1567 = vmul.f32 %v1452, %v1535
        %v1568 = vmul.f32 %v1455, %v1536
        %v1569 = vmul.f32 %v1458, %v1537
        %v1570 = vmul.f32 %v1461, %v1538
        %v1571 = vmul.f32 %v1464, %v1539
        %v1572 = vmul.f32 %v1467, %v1540
        %v1573 = vmul.f32 %v1470, %v1541
        %v1574 = vmul.f32 %v1473, %v1542
        %v1575 = vmul.f32 %v1476, %v1543
        %v1576 = vmul.f32 %v1479, %v1544
        %v1577 = vmul.f32 %v1482, %v1545
        %v1578 = vmul.f32 %v1485, %v1546
        %v1579 = vmul.f32 %v1488, %v1547
        %v1580 = vmul.f32 %v1491, %v1548
        %v1581 = vmul.f32 %v1494, %v1549
        %v1582 = vmul.f32 %v1497, %v1550
        %v1583 = vmul.f32 %v1500, %v1551
        %v1584 = vmul.f32 %v1503, %v1552
        %v1585 = vmul.f32 %v1506, %v1553
        %v1586 = vmul.f32 %v1509, %v1554
        %v1587 = vmul.f32 %v1512, %v1555
        %v1588 = vmul.f32 %v1515, %v1556
        %v1589 = vmul.f32 %v1518, %v1557
        %v1590 = vmul.f32 %v1521, %v1558
        %v1591 = vmul.f32 %v1524, %v1559
        %v1592 = vmul.f32 %v1527, %v1560
        %v1593 = vsel %vm975, %v1561, 0.0
        %1594 = vadd.xlane.f32.xlu0 %v1593
        %v1595 = vpop.xlane.xlu0 %1594
        %v1596 = vsel %vm975, %v1562, 0.0
        %1597 = vadd.xlane.f32.xlu0 %v1596
        %v1598 = vpop.xlane.xlu0 %1597
        %v1599 = vsel %vm975, %v1563, 0.0
        %1600 = vadd.xlane.f32.xlu0 %v1599
        %v1601 = vpop.xlane.xlu0 %1600
        %v1602 = vsel %vm975, %v1564, 0.0
        %1603 = vadd.xlane.f32.xlu0 %v1602
        %v1604 = vpop.xlane.xlu0 %1603
        %v1605 = vsel %vm975, %v1565, 0.0
        %1606 = vadd.xlane.f32.xlu0 %v1605
        %v1607 = vpop.xlane.xlu0 %1606
        %v1608 = vsel %vm975, %v1566, 0.0
        %1609 = vadd.xlane.f32.xlu0 %v1608
        %v1610 = vpop.xlane.xlu0 %1609
        %v1611 = vsel %vm975, %v1567, 0.0
        %1612 = vadd.xlane.f32.xlu0 %v1611
        %v1613 = vpop.xlane.xlu0 %1612
        %v1614 = vsel %vm975, %v1568, 0.0
        %1615 = vadd.xlane.f32.xlu0 %v1614
        %v1616 = vpop.xlane.xlu0 %1615
        %v1617 = vsel %vm975, %v1569, 0.0
        %1618 = vadd.xlane.f32.xlu0 %v1617
        %v1619 = vpop.xlane.xlu0 %1618
        %v1620 = vsel %vm975, %v1570, 0.0
        %1621 = vadd.xlane.f32.xlu0 %v1620
        %v1622 = vpop.xlane.xlu0 %1621
        %v1623 = vsel %vm975, %v1571, 0.0
        %1624 = vadd.xlane.f32.xlu0 %v1623
        %v1625 = vpop.xlane.xlu0 %1624
        %v1626 = vsel %vm975, %v1572, 0.0
        %1627 = vadd.xlane.f32.xlu0 %v1626
        %v1628 = vpop.xlane.xlu0 %1627
        %v1629 = vsel %vm975, %v1573, 0.0
        %1630 = vadd.xlane.f32.xlu0 %v1629
        %v1631 = vpop.xlane.xlu0 %1630
        %v1632 = vsel %vm975, %v1574, 0.0
        %1633 = vadd.xlane.f32.xlu0 %v1632
        %v1634 = vpop.xlane.xlu0 %1633
        %v1635 = vsel %vm975, %v1575, 0.0
        %1636 = vadd.xlane.f32.xlu0 %v1635
        %v1637 = vpop.xlane.xlu0 %1636
        %v1638 = vsel %vm975, %v1576, 0.0
        %1639 = vadd.xlane.f32.xlu0 %v1638
        %v1640 = vpop.xlane.xlu0 %1639
        %v1641 = vsel %vm975, %v1577, 0.0
        %1642 = vadd.xlane.f32.xlu0 %v1641
        %v1643 = vpop.xlane.xlu0 %1642
        %v1644 = vsel %vm975, %v1578, 0.0
        %1645 = vadd.xlane.f32.xlu0 %v1644
        %v1646 = vpop.xlane.xlu0 %1645
        %v1647 = vsel %vm975, %v1579, 0.0
        %1648 = vadd.xlane.f32.xlu0 %v1647
        %v1649 = vpop.xlane.xlu0 %1648
        %v1650 = vsel %vm975, %v1580, 0.0
        %1651 = vadd.xlane.f32.xlu0 %v1650
        %v1652 = vpop.xlane.xlu0 %1651
        %v1653 = vsel %vm975, %v1581, 0.0
        %1654 = vadd.xlane.f32.xlu0 %v1653
        %v1655 = vpop.xlane.xlu0 %1654
        %v1656 = vsel %vm975, %v1582, 0.0
        %1657 = vadd.xlane.f32.xlu0 %v1656
        %v1658 = vpop.xlane.xlu0 %1657
        %v1659 = vsel %vm975, %v1583, 0.0
        %1660 = vadd.xlane.f32.xlu0 %v1659
        %v1661 = vpop.xlane.xlu0 %1660
        %v1662 = vsel %vm975, %v1584, 0.0
        %1663 = vadd.xlane.f32.xlu0 %v1662
        %v1664 = vpop.xlane.xlu0 %1663
        %v1665 = vsel %vm975, %v1585, 0.0
        %1666 = vadd.xlane.f32.xlu0 %v1665
        %v1667 = vpop.xlane.xlu0 %1666
        %v1668 = vsel %vm975, %v1586, 0.0
        %1669 = vadd.xlane.f32.xlu0 %v1668
        %v1670 = vpop.xlane.xlu0 %1669
        %v1671 = vsel %vm975, %v1587, 0.0
        %1672 = vadd.xlane.f32.xlu0 %v1671
        %v1673 = vpop.xlane.xlu0 %1672
        %v1674 = vsel %vm975, %v1588, 0.0
        %1675 = vadd.xlane.f32.xlu0 %v1674
        %v1676 = vpop.xlane.xlu0 %1675
        %v1677 = vsel %vm975, %v1589, 0.0
        %1678 = vadd.xlane.f32.xlu0 %v1677
        %v1679 = vpop.xlane.xlu0 %1678
        %v1680 = vsel %vm975, %v1590, 0.0
        %1681 = vadd.xlane.f32.xlu0 %v1680
        %v1682 = vpop.xlane.xlu0 %1681
        %v1683 = vsel %vm975, %v1591, 0.0
        %1684 = vadd.xlane.f32.xlu0 %v1683
        %v1685 = vpop.xlane.xlu0 %1684
        %v1686 = vsel %vm975, %v1592, 0.0
        %1687 = vadd.xlane.f32.xlu0 %v1686
        %v1688 = vpop.xlane.xlu0 %1687
        %1721 = vrot.lane.b32.xlu0 %v1529, 16
        %v1722 = vpop.permute.xlu0 %1721
        %1723 = vrot.lane.b32.xlu0 %v1530, 16
        %v1724 = vpop.permute.xlu0 %1723
        %1725 = vrot.lane.b32.xlu0 %v1531, 16
        %v1726 = vpop.permute.xlu0 %1725
        %1727 = vrot.lane.b32.xlu0 %v1532, 16
        %v1728 = vpop.permute.xlu0 %1727
        %1729 = vrot.lane.b32.xlu0 %v1533, 16
        %v1730 = vpop.permute.xlu0 %1729
        %1731 = vrot.lane.b32.xlu0 %v1534, 16
        %v1732 = vpop.permute.xlu0 %1731
        %1733 = vrot.lane.b32.xlu0 %v1535, 16
        %v1734 = vpop.permute.xlu0 %1733
        %1735 = vrot.lane.b32.xlu0 %v1536, 16
        %v1736 = vpop.permute.xlu0 %1735
        %1737 = vrot.lane.b32.xlu0 %v1537, 16
        %v1738 = vpop.permute.xlu0 %1737
        %1739 = vrot.lane.b32.xlu0 %v1538, 16
        %v1740 = vpop.permute.xlu0 %1739
        %1741 = vrot.lane.b32.xlu0 %v1539, 16
        %v1742 = vpop.permute.xlu0 %1741
        %1743 = vrot.lane.b32.xlu0 %v1540, 16
        %v1744 = vpop.permute.xlu0 %1743
        %1745 = vrot.lane.b32.xlu0 %v1541, 16
        %v1746 = vpop.permute.xlu0 %1745
        %1747 = vrot.lane.b32.xlu0 %v1542, 16
        %v1748 = vpop.permute.xlu0 %1747
        %1749 = vrot.lane.b32.xlu0 %v1543, 16
        %v1750 = vpop.permute.xlu0 %1749
        %1751 = vrot.lane.b32.xlu0 %v1544, 16
        %v1752 = vpop.permute.xlu0 %1751
        %1753 = vrot.lane.b32.xlu0 %v1545, 16
        %v1754 = vpop.permute.xlu0 %1753
        %1755 = vrot.lane.b32.xlu0 %v1546, 16
        %v1756 = vpop.permute.xlu0 %1755
        %1757 = vrot.lane.b32.xlu0 %v1547, 16
        %v1758 = vpop.permute.xlu0 %1757
        %1759 = vrot.lane.b32.xlu0 %v1548, 16
        %v1760 = vpop.permute.xlu0 %1759
        %1761 = vrot.lane.b32.xlu0 %v1549, 16
        %v1762 = vpop.permute.xlu0 %1761
        %1763 = vrot.lane.b32.xlu0 %v1550, 16
        %v1764 = vpop.permute.xlu0 %1763
        %1765 = vrot.lane.b32.xlu0 %v1551, 16
        %v1766 = vpop.permute.xlu0 %1765
        %1767 = vrot.lane.b32.xlu0 %v1552, 16
        %v1768 = vpop.permute.xlu0 %1767
        %1769 = vrot.lane.b32.xlu0 %v1553, 16
        %v1770 = vpop.permute.xlu0 %1769
        %1771 = vrot.lane.b32.xlu0 %v1554, 16
        %v1772 = vpop.permute.xlu0 %1771
        %1773 = vrot.lane.b32.xlu0 %v1555, 16
        %v1774 = vpop.permute.xlu0 %1773
        %1775 = vrot.lane.b32.xlu0 %v1556, 16
        %v1776 = vpop.permute.xlu0 %1775
        %1777 = vrot.lane.b32.xlu0 %v1557, 16
        %v1778 = vpop.permute.xlu0 %1777
        %1779 = vrot.lane.b32.xlu0 %v1558, 16
        %v1780 = vpop.permute.xlu0 %1779
        %1781 = vrot.lane.b32.xlu0 %v1559, 16
        %v1782 = vpop.permute.xlu0 %1781
        %1783 = vrot.lane.b32.xlu0 %v1560, 16
        %v1784 = vpop.permute.xlu0 %1783
        %v1817 = vmul.f32 %v1434, %v1722
        %v1818 = vmul.f32 %v1437, %v1724
        %v1819 = vmul.f32 %v1440, %v1726
        %v1820 = vmul.f32 %v1443, %v1728
        %v1821 = vmul.f32 %v1446, %v1730
        %v1822 = vmul.f32 %v1449, %v1732
        %v1823 = vmul.f32 %v1452, %v1734
        %v1824 = vmul.f32 %v1455, %v1736
        %v1825 = vmul.f32 %v1458, %v1738
        %v1826 = vmul.f32 %v1461, %v1740
        %v1827 = vmul.f32 %v1464, %v1742
        %v1828 = vmul.f32 %v1467, %v1744
        %v1829 = vmul.f32 %v1470, %v1746
        %v1830 = vmul.f32 %v1473, %v1748
        %v1831 = vmul.f32 %v1476, %v1750
        %v1832 = vmul.f32 %v1479, %v1752
        %v1833 = vmul.f32 %v1482, %v1754
        %v1834 = vmul.f32 %v1485, %v1756
        %v1835 = vmul.f32 %v1488, %v1758
        %v1836 = vmul.f32 %v1491, %v1760
        %v1837 = vmul.f32 %v1494, %v1762
        %v1838 = vmul.f32 %v1497, %v1764
        %v1839 = vmul.f32 %v1500, %v1766
        %v1840 = vmul.f32 %v1503, %v1768
        %v1841 = vmul.f32 %v1506, %v1770
        %v1842 = vmul.f32 %v1509, %v1772
        %v1843 = vmul.f32 %v1512, %v1774
        %v1844 = vmul.f32 %v1515, %v1776
        %v1845 = vmul.f32 %v1518, %v1778
        %v1846 = vmul.f32 %v1521, %v1780
        %v1847 = vmul.f32 %v1524, %v1782
        %v1848 = vmul.f32 %v1527, %v1784
        %1881 = vrot.lane.b32.xlu0 %v1817, 112
        %v1882 = vpop.permute.xlu0 %1881
        %1883 = vrot.lane.b32.xlu0 %v1818, 112
        %v1884 = vpop.permute.xlu0 %1883
        %1885 = vrot.lane.b32.xlu0 %v1819, 112
        %v1886 = vpop.permute.xlu0 %1885
        %1887 = vrot.lane.b32.xlu0 %v1820, 112
        %v1888 = vpop.permute.xlu0 %1887
        %1889 = vrot.lane.b32.xlu0 %v1821, 112
        %v1890 = vpop.permute.xlu0 %1889
        %1891 = vrot.lane.b32.xlu0 %v1822, 112
        %v1892 = vpop.permute.xlu0 %1891
        %1893 = vrot.lane.b32.xlu0 %v1823, 112
        %v1894 = vpop.permute.xlu0 %1893
        %1895 = vrot.lane.b32.xlu0 %v1824, 112
        %v1896 = vpop.permute.xlu0 %1895
        %1897 = vrot.lane.b32.xlu0 %v1825, 112
        %v1898 = vpop.permute.xlu0 %1897
        %1899 = vrot.lane.b32.xlu0 %v1826, 112
        %v1900 = vpop.permute.xlu0 %1899
        %1901 = vrot.lane.b32.xlu0 %v1827, 112
        %v1902 = vpop.permute.xlu0 %1901
        %1903 = vrot.lane.b32.xlu0 %v1828, 112
        %v1904 = vpop.permute.xlu0 %1903
        %1905 = vrot.lane.b32.xlu0 %v1829, 112
        %v1906 = vpop.permute.xlu0 %1905
        %1907 = vrot.lane.b32.xlu0 %v1830, 112
        %v1908 = vpop.permute.xlu0 %1907
        %1909 = vrot.lane.b32.xlu0 %v1831, 112
        %v1910 = vpop.permute.xlu0 %1909
        %1911 = vrot.lane.b32.xlu0 %v1832, 112
        %v1912 = vpop.permute.xlu0 %1911
        %1913 = vrot.lane.b32.xlu0 %v1833, 112
        %v1914 = vpop.permute.xlu0 %1913
        %1915 = vrot.lane.b32.xlu0 %v1834, 112
        %v1916 = vpop.permute.xlu0 %1915
        %1917 = vrot.lane.b32.xlu0 %v1835, 112
        %v1918 = vpop.permute.xlu0 %1917
        %1919 = vrot.lane.b32.xlu0 %v1836, 112
        %v1920 = vpop.permute.xlu0 %1919
        %1921 = vrot.lane.b32.xlu0 %v1837, 112
        %v1922 = vpop.permute.xlu0 %1921
        %1923 = vrot.lane.b32.xlu0 %v1838, 112
        %v1924 = vpop.permute.xlu0 %1923
        %1925 = vrot.lane.b32.xlu0 %v1839, 112
        %v1926 = vpop.permute.xlu0 %1925
        %1927 = vrot.lane.b32.xlu0 %v1840, 112
        %v1928 = vpop.permute.xlu0 %1927
        %1929 = vrot.lane.b32.xlu0 %v1841, 112
        %v1930 = vpop.permute.xlu0 %1929
        %1931 = vrot.lane.b32.xlu0 %v1842, 112
        %v1932 = vpop.permute.xlu0 %1931
        %1933 = vrot.lane.b32.xlu0 %v1843, 112
        %v1934 = vpop.permute.xlu0 %1933
        %1935 = vrot.lane.b32.xlu0 %v1844, 112
        %v1936 = vpop.permute.xlu0 %1935
        %1937 = vrot.lane.b32.xlu0 %v1845, 112
        %v1938 = vpop.permute.xlu0 %1937
        %1939 = vrot.lane.b32.xlu0 %v1846, 112
        %v1940 = vpop.permute.xlu0 %1939
        %1941 = vrot.lane.b32.xlu0 %v1847, 112
        %v1942 = vpop.permute.xlu0 %1941
        %1943 = vrot.lane.b32.xlu0 %v1848, 112
        %v1944 = vpop.permute.xlu0 %1943
        %v1977 = vsel %vm975, %v1882, 0.0
        %1978 = vadd.xlane.f32.xlu0 %v1977
        %v1979 = vpop.xlane.xlu0 %1978
        %v1980 = vsel %vm975, %v1884, 0.0
        %1981 = vadd.xlane.f32.xlu0 %v1980
        %v1982 = vpop.xlane.xlu0 %1981
        %v1983 = vsel %vm975, %v1886, 0.0
        %1984 = vadd.xlane.f32.xlu0 %v1983
        %v1985 = vpop.xlane.xlu0 %1984
        %v1986 = vsel %vm975, %v1888, 0.0
        %1987 = vadd.xlane.f32.xlu0 %v1986
        %v1988 = vpop.xlane.xlu0 %1987
        %v1989 = vsel %vm975, %v1890, 0.0
        %1990 = vadd.xlane.f32.xlu0 %v1989
        %v1991 = vpop.xlane.xlu0 %1990
        %v1992 = vsel %vm975, %v1892, 0.0
        %1993 = vadd.xlane.f32.xlu0 %v1992
        %v1994 = vpop.xlane.xlu0 %1993
        %v1995 = vsel %vm975, %v1894, 0.0
        %1996 = vadd.xlane.f32.xlu0 %v1995
        %v1997 = vpop.xlane.xlu0 %1996
        %v1998 = vsel %vm975, %v1896, 0.0
        %1999 = vadd.xlane.f32.xlu0 %v1998
        %v2000 = vpop.xlane.xlu0 %1999
        %v2001 = vsel %vm975, %v1898, 0.0
        %2002 = vadd.xlane.f32.xlu0 %v2001
        %v2003 = vpop.xlane.xlu0 %2002
        %v2004 = vsel %vm975, %v1900, 0.0
        %2005 = vadd.xlane.f32.xlu0 %v2004
        %v2006 = vpop.xlane.xlu0 %2005
        %v2007 = vsel %vm975, %v1902, 0.0
        %2008 = vadd.xlane.f32.xlu0 %v2007
        %v2009 = vpop.xlane.xlu0 %2008
        %v2010 = vsel %vm975, %v1904, 0.0
        %2011 = vadd.xlane.f32.xlu0 %v2010
        %v2012 = vpop.xlane.xlu0 %2011
        %v2013 = vsel %vm975, %v1906, 0.0
        %2014 = vadd.xlane.f32.xlu0 %v2013
        %v2015 = vpop.xlane.xlu0 %2014
        %v2016 = vsel %vm975, %v1908, 0.0
        %2017 = vadd.xlane.f32.xlu0 %v2016
        %v2018 = vpop.xlane.xlu0 %2017
        %v2019 = vsel %vm975, %v1910, 0.0
        %2020 = vadd.xlane.f32.xlu0 %v2019
        %v2021 = vpop.xlane.xlu0 %2020
        %v2022 = vsel %vm975, %v1912, 0.0
        %2023 = vadd.xlane.f32.xlu0 %v2022
        %v2024 = vpop.xlane.xlu0 %2023
        %v2025 = vsel %vm975, %v1914, 0.0
        %2026 = vadd.xlane.f32.xlu0 %v2025
        %v2027 = vpop.xlane.xlu0 %2026
        %v2028 = vsel %vm975, %v1916, 0.0
        %2029 = vadd.xlane.f32.xlu0 %v2028
        %v2030 = vpop.xlane.xlu0 %2029
        %v2031 = vsel %vm975, %v1918, 0.0
        %2032 = vadd.xlane.f32.xlu0 %v2031
        %v2033 = vpop.xlane.xlu0 %2032
        %v2034 = vsel %vm975, %v1920, 0.0
        %2035 = vadd.xlane.f32.xlu0 %v2034
        %v2036 = vpop.xlane.xlu0 %2035
        %v2037 = vsel %vm975, %v1922, 0.0
        %2038 = vadd.xlane.f32.xlu0 %v2037
        %v2039 = vpop.xlane.xlu0 %2038
        %v2040 = vsel %vm975, %v1924, 0.0
        %2041 = vadd.xlane.f32.xlu0 %v2040
        %v2042 = vpop.xlane.xlu0 %2041
        %v2043 = vsel %vm975, %v1926, 0.0
        %2044 = vadd.xlane.f32.xlu0 %v2043
        %v2045 = vpop.xlane.xlu0 %2044
        %v2046 = vsel %vm975, %v1928, 0.0
        %2047 = vadd.xlane.f32.xlu0 %v2046
        %v2048 = vpop.xlane.xlu0 %2047
        %v2049 = vsel %vm975, %v1930, 0.0
        %2050 = vadd.xlane.f32.xlu0 %v2049
        %v2051 = vpop.xlane.xlu0 %2050
        %v2052 = vsel %vm975, %v1932, 0.0
        %2053 = vadd.xlane.f32.xlu0 %v2052
        %v2054 = vpop.xlane.xlu0 %2053
        %v2055 = vsel %vm975, %v1934, 0.0
        %2056 = vadd.xlane.f32.xlu0 %v2055
        %v2057 = vpop.xlane.xlu0 %2056
        %v2058 = vsel %vm975, %v1936, 0.0
        %2059 = vadd.xlane.f32.xlu0 %v2058
        %v2060 = vpop.xlane.xlu0 %2059
        %v2061 = vsel %vm975, %v1938, 0.0
        %2062 = vadd.xlane.f32.xlu0 %v2061
        %v2063 = vpop.xlane.xlu0 %2062
        %v2064 = vsel %vm975, %v1940, 0.0
        %2065 = vadd.xlane.f32.xlu0 %v2064
        %v2066 = vpop.xlane.xlu0 %2065
        %v2067 = vsel %vm975, %v1942, 0.0
        %2068 = vadd.xlane.f32.xlu0 %v2067
        %v2069 = vpop.xlane.xlu0 %2068
        %v2070 = vsel %vm975, %v1944, 0.0
        %2071 = vadd.xlane.f32.xlu0 %v2070
        %v2072 = vpop.xlane.xlu0 %2071
        %v2073 = vld [vmem:[%s776] sm:$0xff]
        %v2074 = vld [vmem:[%s776 + $0x8] sm:$0xff]
        %v2075 = vsel %vm975, %v1529, 0
        %v2077 = vsel %vm975, %v1530, 0
        %v2079 = vsel %vm975, %v1531, 0
        %v2081 = vsel %vm975, %v1532, 0
        %v2083 = vsel %vm975, %v1533, 0
        %v2085 = vsel %vm975, %v1534, 0
        %v2087 = vsel %vm975, %v1535, 0
        %v2089 = vsel %vm975, %v1536, 0
        %v2091 = vsel %vm975, %v1537, 0
        %v2093 = vsel %vm975, %v1538, 0
        %v2095 = vsel %vm975, %v1539, 0
        %v2097 = vsel %vm975, %v1540, 0
        %v2099 = vsel %vm975, %v1541, 0
        %v2101 = vsel %vm975, %v1542, 0
        %v2103 = vsel %vm975, %v1543, 0
        %v2105 = vsel %vm975, %v1544, 0
        %v2107 = vsel %vm975, %v1545, 0
        %v2109 = vsel %vm975, %v1546, 0
        %v2111 = vsel %vm975, %v1547, 0
        %v2113 = vsel %vm975, %v1548, 0
        %v2115 = vsel %vm975, %v1549, 0
        %v2117 = vsel %vm975, %v1550, 0
        %v2119 = vsel %vm975, %v1551, 0
        %v2121 = vsel %vm975, %v1552, 0
        %v2123 = vsel %vm975, %v1553, 0
        %v2125 = vsel %vm975, %v1554, 0
        %v2127 = vsel %vm975, %v1555, 0
        %v2129 = vsel %vm975, %v1556, 0
        %v2131 = vsel %vm975, %v1557, 0
        %v2133 = vsel %vm975, %v1558, 0
        %v2135 = vsel %vm975, %v1559, 0
        %v2137 = vsel %vm975, %v1560, 0
        %2139 = vmatpush.msra.mxu0 0.0
        %2140 = vmatpush.msra.mxu0 0.0
        %2141 = vmatpush.msra.mxu0 0.0
        %2142 = vmatpush.msra.mxu0 0.0
        %2143 = vmatpush.msra.mxu0 0.0
        %2144 = vmatpush.msra.mxu0 0.0
        %2145 = vmatpush.msra.mxu0 0.0
        %2146 = vmatpush.msra.mxu0 0.0
        %2147 = vmatpush.msra.mxu0 0.0
        %2148 = vmatpush.msra.mxu0 0.0
        %2149 = vmatpush.msra.mxu0 0.0
        %2150 = vmatpush.msra.mxu0 0.0
        %2151 = vmatpush.msra.mxu0 0.0
        %2152 = vmatpush.msra.mxu0 0.0
        %2153 = vmatpush.msra.mxu0 %v2074
        %2154 = vmatpush.msra.mxu0 %v2073
        %2155 = vmatmul.f32.gmra.mxu0 %v2075
        %v2156 = vpop.f32.mrf.mxu0
        %v2157 = vadd.f32 0.0, %v2156
        %2158 = vmatmul.f32.gmra.mxu0 %v2077
        %v2159 = vpop.f32.mrf.mxu0
        %v2160 = vadd.f32 0.0, %v2159
        %2161 = vmatmul.f32.gmra.mxu0 %v2079
        %v2162 = vpop.f32.mrf.mxu0
        %v2163 = vadd.f32 0.0, %v2162
        %2164 = vmatmul.f32.gmra.mxu0 %v2081
        %v2165 = vpop.f32.mrf.mxu0
        %v2166 = vadd.f32 0.0, %v2165
        %2167 = vmatmul.f32.gmra.mxu0 %v2083
        %v2168 = vpop.f32.mrf.mxu0
        %v2169 = vadd.f32 0.0, %v2168
        %2170 = vmatmul.f32.gmra.mxu0 %v2085
        %v2171 = vpop.f32.mrf.mxu0
        %v2172 = vadd.f32 0.0, %v2171
        %2173 = vmatmul.f32.gmra.mxu0 %v2087
        %v2174 = vpop.f32.mrf.mxu0
        %v2175 = vadd.f32 0.0, %v2174
        %2176 = vmatmul.f32.gmra.mxu0 %v2089
        %v2177 = vpop.f32.mrf.mxu0
        %v2178 = vadd.f32 0.0, %v2177
        %2179 = vmatmul.f32.gmra.mxu0 %v2091
        %v2180 = vpop.f32.mrf.mxu0
        %v2181 = vadd.f32 0.0, %v2180
        %2182 = vmatmul.f32.gmra.mxu0 %v2093
        %v2183 = vpop.f32.mrf.mxu0
        %v2184 = vadd.f32 0.0, %v2183
        %2185 = vmatmul.f32.gmra.mxu0 %v2095
        %v2186 = vpop.f32.mrf.mxu0
        %v2187 = vadd.f32 0.0, %v2186
        %2188 = vmatmul.f32.gmra.mxu0 %v2097
        %v2189 = vpop.f32.mrf.mxu0
        %v2190 = vadd.f32 0.0, %v2189
        %2191 = vmatmul.f32.gmra.mxu0 %v2099
        %v2192 = vpop.f32.mrf.mxu0
        %v2193 = vadd.f32 0.0, %v2192
        %2194 = vmatmul.f32.gmra.mxu0 %v2101
        %v2195 = vpop.f32.mrf.mxu0
        %v2196 = vadd.f32 0.0, %v2195
        %2197 = vmatmul.f32.gmra.mxu0 %v2103
        %v2198 = vpop.f32.mrf.mxu0
        %v2199 = vadd.f32 0.0, %v2198
        %2200 = vmatmul.f32.gmra.mxu0 %v2105
        %v2201 = vpop.f32.mrf.mxu0
        %v2202 = vadd.f32 0.0, %v2201
        %2203 = vmatmul.f32.gmra.mxu0 %v2107
        %v2204 = vpop.f32.mrf.mxu0
        %v2205 = vadd.f32 0.0, %v2204
        %2206 = vmatmul.f32.gmra.mxu0 %v2109
        %v2207 = vpop.f32.mrf.mxu0
        %v2208 = vadd.f32 0.0, %v2207
        %2209 = vmatmul.f32.gmra.mxu0 %v2111
        %v2210 = vpop.f32.mrf.mxu0
        %v2211 = vadd.f32 0.0, %v2210
        %2212 = vmatmul.f32.gmra.mxu0 %v2113
        %v2213 = vpop.f32.mrf.mxu0
        %v2214 = vadd.f32 0.0, %v2213
        %2215 = vmatmul.f32.gmra.mxu0 %v2115
        %v2216 = vpop.f32.mrf.mxu0
        %v2217 = vadd.f32 0.0, %v2216
        %2218 = vmatmul.f32.gmra.mxu0 %v2117
        %v2219 = vpop.f32.mrf.mxu0
        %v2220 = vadd.f32 0.0, %v2219
        %2221 = vmatmul.f32.gmra.mxu0 %v2119
        %v2222 = vpop.f32.mrf.mxu0
        %v2223 = vadd.f32 0.0, %v2222
        %2224 = vmatmul.f32.gmra.mxu0 %v2121
        %v2225 = vpop.f32.mrf.mxu0
        %v2226 = vadd.f32 0.0, %v2225
        %2227 = vmatmul.f32.gmra.mxu0 %v2123
        %v2228 = vpop.f32.mrf.mxu0
        %v2229 = vadd.f32 0.0, %v2228
        %2230 = vmatmul.f32.gmra.mxu0 %v2125
        %v2231 = vpop.f32.mrf.mxu0
        %v2232 = vadd.f32 0.0, %v2231
        %2233 = vmatmul.f32.gmra.mxu0 %v2127
        %v2234 = vpop.f32.mrf.mxu0
        %v2235 = vadd.f32 0.0, %v2234
        %2236 = vmatmul.f32.gmra.mxu0 %v2129
        %v2237 = vpop.f32.mrf.mxu0
        %v2238 = vadd.f32 0.0, %v2237
        %2239 = vmatmul.f32.gmra.mxu0 %v2131
        %v2240 = vpop.f32.mrf.mxu0
        %v2241 = vadd.f32 0.0, %v2240
        %2242 = vmatmul.f32.gmra.mxu0 %v2133
        %v2243 = vpop.f32.mrf.mxu0
        %v2244 = vadd.f32 0.0, %v2243
        %2245 = vmatmul.f32.gmra.mxu0 %v2135
        %v2246 = vpop.f32.mrf.mxu0
        %v2247 = vadd.f32 0.0, %v2246
        %2248 = vmatmul.f32.gmra.mxu0 %v2137
        %v2249 = vpop.f32.mrf.mxu0
        %v2250 = vadd.f32 0.0, %v2249
        %2251 = vdwg.mxu0
        %v2252 = vmul.f32 %v1321, %v2157
        %v2253 = vmul.f32 %v1324, %v2160
        %v2254 = vmul.f32 %v1327, %v2163
        %v2255 = vmul.f32 %v1330, %v2166
        %v2256 = vmul.f32 %v1333, %v2169
        %v2257 = vmul.f32 %v1336, %v2172
        %v2258 = vmul.f32 %v1339, %v2175
        %v2259 = vmul.f32 %v1342, %v2178
        %v2260 = vmul.f32 %v1345, %v2181
        %v2261 = vmul.f32 %v1348, %v2184
        %v2262 = vmul.f32 %v1351, %v2187
        %v2263 = vmul.f32 %v1354, %v2190
        %v2264 = vmul.f32 %v1357, %v2193
        %v2265 = vmul.f32 %v1360, %v2196
        %v2266 = vmul.f32 %v1363, %v2199
        %v2267 = vmul.f32 %v1366, %v2202
        %v2268 = vmul.f32 %v1369, %v2205
        %v2269 = vmul.f32 %v1372, %v2208
        %v2270 = vmul.f32 %v1375, %v2211
        %v2271 = vmul.f32 %v1378, %v2214
        %v2272 = vmul.f32 %v1381, %v2217
        %v2273 = vmul.f32 %v1384, %v2220
        %v2274 = vmul.f32 %v1387, %v2223
        %v2275 = vmul.f32 %v1390, %v2226
        %v2276 = vmul.f32 %v1393, %v2229
        %v2277 = vmul.f32 %v1396, %v2232
        %v2278 = vmul.f32 %v1399, %v2235
        %v2279 = vmul.f32 %v1402, %v2238
        %v2280 = vmul.f32 %v1405, %v2241
        %v2281 = vmul.f32 %v1408, %v2244
        %v2282 = vmul.f32 %v1411, %v2247
        %v2283 = vmul.f32 %v1414, %v2250
        %v2284 = vmul.f32 %v2252, 1.442695
        %v2285 = vpow.pop %v2284
        %v2286 = vmul.f32 %v2253, 1.442695
        %v2287 = vpow.pop %v2286
        %v2288 = vmul.f32 %v2254, 1.442695
        %v2289 = vpow.pop %v2288
        %v2290 = vmul.f32 %v2255, 1.442695
        %v2291 = vpow.pop %v2290
        %v2292 = vmul.f32 %v2256, 1.442695
        %v2293 = vpow.pop %v2292
        %v2294 = vmul.f32 %v2257, 1.442695
        %v2295 = vpow.pop %v2294
        %v2296 = vmul.f32 %v2258, 1.442695
        %v2297 = vpow.pop %v2296
        %v2298 = vmul.f32 %v2259, 1.442695
        %v2299 = vpow.pop %v2298
        %v2300 = vmul.f32 %v2260, 1.442695
        %v2301 = vpow.pop %v2300
        %v2302 = vmul.f32 %v2261, 1.442695
        %v2303 = vpow.pop %v2302
        %v2304 = vmul.f32 %v2262, 1.442695
        %v2305 = vpow.pop %v2304
        %v2306 = vmul.f32 %v2263, 1.442695
        %v2307 = vpow.pop %v2306
        %v2308 = vmul.f32 %v2264, 1.442695
        %v2309 = vpow.pop %v2308
        %v2310 = vmul.f32 %v2265, 1.442695
        %v2311 = vpow.pop %v2310
        %v2312 = vmul.f32 %v2266, 1.442695
        %v2313 = vpow.pop %v2312
        %v2314 = vmul.f32 %v2267, 1.442695
        %v2315 = vpow.pop %v2314
        %v2316 = vmul.f32 %v2268, 1.442695
        %v2317 = vpow.pop %v2316
        %v2318 = vmul.f32 %v2269, 1.442695
        %v2319 = vpow.pop %v2318
        %v2320 = vmul.f32 %v2270, 1.442695
        %v2321 = vpow.pop %v2320
        %v2322 = vmul.f32 %v2271, 1.442695
        %v2323 = vpow.pop %v2322
        %v2324 = vmul.f32 %v2272, 1.442695
        %v2325 = vpow.pop %v2324
        %v2326 = vmul.f32 %v2273, 1.442695
        %v2327 = vpow.pop %v2326
        %v2328 = vmul.f32 %v2274, 1.442695
        %v2329 = vpow.pop %v2328
        %v2330 = vmul.f32 %v2275, 1.442695
        %v2331 = vpow.pop %v2330
        %v2332 = vmul.f32 %v2276, 1.442695
        %v2333 = vpow.pop %v2332
        %v2334 = vmul.f32 %v2277, 1.442695
        %v2335 = vpow.pop %v2334
        %v2336 = vmul.f32 %v2278, 1.442695
        %v2337 = vpow.pop %v2336
        %v2338 = vmul.f32 %v2279, 1.442695
        %v2339 = vpow.pop %v2338
        %v2340 = vmul.f32 %v2280, 1.442695
        %v2341 = vpow.pop %v2340
        %v2342 = vmul.f32 %v2281, 1.442695
        %v2343 = vpow.pop %v2342
        %v2344 = vmul.f32 %v2282, 1.442695
        %v2345 = vpow.pop %v2344
        %v2346 = vmul.f32 %v2283, 1.442695
        %v2347 = vpow.pop %v2346
        %v2348 = vmul.f32 %v1321, %v1595
        %v2349 = vmul.f32 %v1324, %v1598
        %v2350 = vmul.f32 %v1327, %v1601
        %v2351 = vmul.f32 %v1330, %v1604
        %v2352 = vmul.f32 %v1333, %v1607
        %v2353 = vmul.f32 %v1336, %v1610
        %v2354 = vmul.f32 %v1339, %v1613
        %v2355 = vmul.f32 %v1342, %v1616
        %v2356 = vmul.f32 %v1345, %v1619
        %v2357 = vmul.f32 %v1348, %v1622
        %v2358 = vmul.f32 %v1351, %v1625
        %v2359 = vmul.f32 %v1354, %v1628
        %v2360 = vmul.f32 %v1357, %v1631
        %v2361 = vmul.f32 %v1360, %v1634
        %v2362 = vmul.f32 %v1363, %v1637
        %v2363 = vmul.f32 %v1366, %v1640
        %v2364 = vmul.f32 %v1369, %v1643
        %v2365 = vmul.f32 %v1372, %v1646
        %v2366 = vmul.f32 %v1375, %v1649
        %v2367 = vmul.f32 %v1378, %v1652
        %v2368 = vmul.f32 %v1381, %v1655
        %v2369 = vmul.f32 %v1384, %v1658
        %v2370 = vmul.f32 %v1387, %v1661
        %v2371 = vmul.f32 %v1390, %v1664
        %v2372 = vmul.f32 %v1393, %v1667
        %v2373 = vmul.f32 %v1396, %v1670
        %v2374 = vmul.f32 %v1399, %v1673
        %v2375 = vmul.f32 %v1402, %v1676
        %v2376 = vmul.f32 %v1405, %v1679
        %v2377 = vmul.f32 %v1408, %v1682
        %v2378 = vmul.f32 %v1411, %v1685
        %v2379 = vmul.f32 %v1414, %v1688
        %v2380 = vmul.f32 %v2285, 0.0
        %v2381 = vmul.f32 %v2287, 0.0
        %v2382 = vmul.f32 %v2289, 0.0
        %v2383 = vmul.f32 %v2291, 0.0
        %2388 = vrot.lane.b32.xlu0 %v2348, 64
        %v2389 = vpop.permute.xlu0 %2388
        %2390 = vrot.lane.b32.xlu0 %v2349, 64
        %v2391 = vpop.permute.xlu0 %2390
        %2392 = vrot.lane.b32.xlu0 %v2350, 64
        %v2393 = vpop.permute.xlu0 %2392
        %2394 = vrot.lane.b32.xlu0 %v2351, 64
        %v2395 = vpop.permute.xlu0 %2394
        %v2400 = vadd.f32 %v2380, %v2389
        %v2401 = vadd.f32 %v2381, %v2391
        %v2402 = vadd.f32 %v2382, %v2393
        %v2403 = vadd.f32 %v2383, %v2395
        %2404 = vst.msk [vmem:[#allocation2] sm:$0xff] %vm1101, %v2400
        %2405 = vst.msk [vmem:[#allocation2 + $0x8] sm:$0xff] %vm1101, %v2401
        %2406 = vst.msk [vmem:[#allocation2 + $0x10] sm:$0xff] %vm1101, %v2402
        %2407 = vst.msk [vmem:[#allocation2 + $0x18] sm:$0xff] %vm1101, %v2403
        %v2408 = vmul.f32 %v2293, %v2400
        %v2409 = vmul.f32 %v2295, %v2401
        %v2410 = vmul.f32 %v2297, %v2402
        %v2411 = vmul.f32 %v2299, %v2403
        %2416 = vrot.lane.b32.xlu0 %v2352, 64
        %v2417 = vpop.permute.xlu0 %2416
        %2418 = vrot.lane.b32.xlu0 %v2353, 64
        %v2419 = vpop.permute.xlu0 %2418
        %2420 = vrot.lane.b32.xlu0 %v2354, 64
        %v2421 = vpop.permute.xlu0 %2420
        %2422 = vrot.lane.b32.xlu0 %v2355, 64
        %v2423 = vpop.permute.xlu0 %2422
        %v2428 = vadd.f32 %v2408, %v2417
        %v2429 = vadd.f32 %v2409, %v2419
        %v2430 = vadd.f32 %v2410, %v2421
        %v2431 = vadd.f32 %v2411, %v2423
        %2432 = vst.msk [vmem:[#allocation2 + $0x20] sm:$0xff] %vm1101, %v2428
        %2433 = vst.msk [vmem:[#allocation2 + $0x28] sm:$0xff] %vm1101, %v2429
        %2434 = vst.msk [vmem:[#allocation2 + $0x30] sm:$0xff] %vm1101, %v2430
        %2435 = vst.msk [vmem:[#allocation2 + $0x38] sm:$0xff] %vm1101, %v2431
        %v2436 = vmul.f32 %v2301, %v2428
        %v2437 = vmul.f32 %v2303, %v2429
        %v2438 = vmul.f32 %v2305, %v2430
        %v2439 = vmul.f32 %v2307, %v2431
        %2444 = vrot.lane.b32.xlu0 %v2356, 64
        %v2445 = vpop.permute.xlu0 %2444
        %2446 = vrot.lane.b32.xlu0 %v2357, 64
        %v2447 = vpop.permute.xlu0 %2446
        %2448 = vrot.lane.b32.xlu0 %v2358, 64
        %v2449 = vpop.permute.xlu0 %2448
        %2450 = vrot.lane.b32.xlu0 %v2359, 64
        %v2451 = vpop.permute.xlu0 %2450
        %v2456 = vadd.f32 %v2436, %v2445
        %v2457 = vadd.f32 %v2437, %v2447
        %v2458 = vadd.f32 %v2438, %v2449
        %v2459 = vadd.f32 %v2439, %v2451
        %2460 = vst.msk [vmem:[#allocation2 + $0x40] sm:$0xff] %vm1101, %v2456
        %2461 = vst.msk [vmem:[#allocation2 + $0x48] sm:$0xff] %vm1101, %v2457
        %2462 = vst.msk [vmem:[#allocation2 + $0x50] sm:$0xff] %vm1101, %v2458
        %2463 = vst.msk [vmem:[#allocation2 + $0x58] sm:$0xff] %vm1101, %v2459
        %v2464 = vmul.f32 %v2309, %v2456
        %v2465 = vmul.f32 %v2311, %v2457
        %v2466 = vmul.f32 %v2313, %v2458
        %v2467 = vmul.f32 %v2315, %v2459
        %2472 = vrot.lane.b32.xlu0 %v2360, 64
        %v2473 = vpop.permute.xlu0 %2472
        %2474 = vrot.lane.b32.xlu0 %v2361, 64
        %v2475 = vpop.permute.xlu0 %2474
        %2476 = vrot.lane.b32.xlu0 %v2362, 64
        %v2477 = vpop.permute.xlu0 %2476
        %2478 = vrot.lane.b32.xlu0 %v2363, 64
        %v2479 = vpop.permute.xlu0 %2478
        %v2484 = vadd.f32 %v2464, %v2473
        %v2485 = vadd.f32 %v2465, %v2475
        %v2486 = vadd.f32 %v2466, %v2477
        %v2487 = vadd.f32 %v2467, %v2479
        %2488 = vst.msk [vmem:[#allocation2 + $0x60] sm:$0xff] %vm1101, %v2484
        %2489 = vst.msk [vmem:[#allocation2 + $0x68] sm:$0xff] %vm1101, %v2485
        %2490 = vst.msk [vmem:[#allocation2 + $0x70] sm:$0xff] %vm1101, %v2486
        %2491 = vst.msk [vmem:[#allocation2 + $0x78] sm:$0xff] %vm1101, %v2487
        %v2492 = vmul.f32 %v2317, %v2484
        %v2493 = vmul.f32 %v2319, %v2485
        %v2494 = vmul.f32 %v2321, %v2486
        %v2495 = vmul.f32 %v2323, %v2487
        %2500 = vrot.lane.b32.xlu0 %v2364, 64
        %v2501 = vpop.permute.xlu0 %2500
        %2502 = vrot.lane.b32.xlu0 %v2365, 64
        %v2503 = vpop.permute.xlu0 %2502
        %2504 = vrot.lane.b32.xlu0 %v2366, 64
        %v2505 = vpop.permute.xlu0 %2504
        %2506 = vrot.lane.b32.xlu0 %v2367, 64
        %v2507 = vpop.permute.xlu0 %2506
        %v2512 = vadd.f32 %v2492, %v2501
        %v2513 = vadd.f32 %v2493, %v2503
        %v2514 = vadd.f32 %v2494, %v2505
        %v2515 = vadd.f32 %v2495, %v2507
        %2516 = vst.msk [vmem:[#allocation2 + $0x80] sm:$0xff] %vm1101, %v2512
        %2517 = vst.msk [vmem:[#allocation2 + $0x88] sm:$0xff] %vm1101, %v2513
        %2518 = vst.msk [vmem:[#allocation2 + $0x90] sm:$0xff] %vm1101, %v2514
        %2519 = vst.msk [vmem:[#allocation2 + $0x98] sm:$0xff] %vm1101, %v2515
        %v2520 = vmul.f32 %v2325, %v2512
        %v2521 = vmul.f32 %v2327, %v2513
        %v2522 = vmul.f32 %v2329, %v2514
        %v2523 = vmul.f32 %v2331, %v2515
        %2528 = vrot.lane.b32.xlu0 %v2368, 64
        %v2529 = vpop.permute.xlu0 %2528
        %2530 = vrot.lane.b32.xlu0 %v2369, 64
        %v2531 = vpop.permute.xlu0 %2530
        %2532 = vrot.lane.b32.xlu0 %v2370, 64
        %v2533 = vpop.permute.xlu0 %2532
        %2534 = vrot.lane.b32.xlu0 %v2371, 64
        %v2535 = vpop.permute.xlu0 %2534
        %v2540 = vadd.f32 %v2520, %v2529
        %v2541 = vadd.f32 %v2521, %v2531
        %v2542 = vadd.f32 %v2522, %v2533
        %v2543 = vadd.f32 %v2523, %v2535
        %2544 = vst.msk [vmem:[#allocation2 + $0xa0] sm:$0xff] %vm1101, %v2540
        %2545 = vst.msk [vmem:[#allocation2 + $0xa8] sm:$0xff] %vm1101, %v2541
        %2546 = vst.msk [vmem:[#allocation2 + $0xb0] sm:$0xff] %vm1101, %v2542
        %2547 = vst.msk [vmem:[#allocation2 + $0xb8] sm:$0xff] %vm1101, %v2543
        %v2548 = vmul.f32 %v2333, %v2540
        %v2549 = vmul.f32 %v2335, %v2541
        %v2550 = vmul.f32 %v2337, %v2542
        %v2551 = vmul.f32 %v2339, %v2543
        %2556 = vrot.lane.b32.xlu0 %v2372, 64
        %v2557 = vpop.permute.xlu0 %2556
        %2558 = vrot.lane.b32.xlu0 %v2373, 64
        %v2559 = vpop.permute.xlu0 %2558
        %2560 = vrot.lane.b32.xlu0 %v2374, 64
        %v2561 = vpop.permute.xlu0 %2560
        %2562 = vrot.lane.b32.xlu0 %v2375, 64
        %v2563 = vpop.permute.xlu0 %2562
        %v2568 = vadd.f32 %v2548, %v2557
        %v2569 = vadd.f32 %v2549, %v2559
        %v2570 = vadd.f32 %v2550, %v2561
        %v2571 = vadd.f32 %v2551, %v2563
        %2572 = vst.msk [vmem:[#allocation2 + $0xc0] sm:$0xff] %vm1101, %v2568
        %2573 = vst.msk [vmem:[#allocation2 + $0xc8] sm:$0xff] %vm1101, %v2569
        %2574 = vst.msk [vmem:[#allocation2 + $0xd0] sm:$0xff] %vm1101, %v2570
        %2575 = vst.msk [vmem:[#allocation2 + $0xd8] sm:$0xff] %vm1101, %v2571
        %v2576 = vmul.f32 %v2341, %v2568
        %v2577 = vmul.f32 %v2343, %v2569
        %v2578 = vmul.f32 %v2345, %v2570
        %v2579 = vmul.f32 %v2347, %v2571
        %2584 = vrot.lane.b32.xlu0 %v2376, 64
        %v2585 = vpop.permute.xlu0 %2584
        %2586 = vrot.lane.b32.xlu0 %v2377, 64
        %v2587 = vpop.permute.xlu0 %2586
        %2588 = vrot.lane.b32.xlu0 %v2378, 64
        %v2589 = vpop.permute.xlu0 %2588
        %2590 = vrot.lane.b32.xlu0 %v2379, 64
        %v2591 = vpop.permute.xlu0 %2590
        %v2596 = vadd.f32 %v2576, %v2585
        %v2597 = vadd.f32 %v2577, %v2587
        %v2598 = vadd.f32 %v2578, %v2589
        %v2599 = vadd.f32 %v2579, %v2591
        %2600 = vst.msk [vmem:[#allocation2 + $0xe0] sm:$0xff] %vm1101, %v2596
        %2601 = vst.msk [vmem:[#allocation2 + $0xe8] sm:$0xff] %vm1101, %v2597
        %2602 = vst.msk [vmem:[#allocation2 + $0xf0] sm:$0xff] %vm1101, %v2598
        %2603 = vst.msk [vmem:[#allocation2 + $0xf8] sm:$0xff] %vm1101, %v2599
        %v2604 = vld [vmem:[%s10] sm:$0xff]
        %v2605 = vld [vmem:[%s10 + $0x8] sm:$0xff]
        %v2606 = vld [vmem:[%s10 + $0x10] sm:$0xff]
        %v2607 = vld [vmem:[%s10 + $0x18] sm:$0xff]
        %v2608 = vld [vmem:[#allocation2] sm:$0xff]
        %v2609 = vld [vmem:[#allocation2 + $0x8] sm:$0xff]
        %v2610 = vld [vmem:[#allocation2 + $0x10] sm:$0xff]
        %v2611 = vld [vmem:[#allocation2 + $0x18] sm:$0xff]
        %v2612 = vld [vmem:[#allocation2 + $0x20] sm:$0xff]
        %v2613 = vld [vmem:[#allocation2 + $0x28] sm:$0xff]
        %v2614 = vld [vmem:[#allocation2 + $0x30] sm:$0xff]
        %v2615 = vld [vmem:[#allocation2 + $0x38] sm:$0xff]
        %v2616 = vld [vmem:[#allocation2 + $0x40] sm:$0xff]
        %v2617 = vld [vmem:[#allocation2 + $0x48] sm:$0xff]
        %v2618 = vld [vmem:[#allocation2 + $0x50] sm:$0xff]
        %v2619 = vld [vmem:[#allocation2 + $0x58] sm:$0xff]
        %v2620 = vld [vmem:[#allocation2 + $0x60] sm:$0xff]
        %v2621 = vld [vmem:[#allocation2 + $0x68] sm:$0xff]
        %v2622 = vld [vmem:[#allocation2 + $0x70] sm:$0xff]
        %v2623 = vld [vmem:[#allocation2 + $0x78] sm:$0xff]
        %v2624 = vld [vmem:[#allocation2 + $0x80] sm:$0xff]
        %v2625 = vld [vmem:[#allocation2 + $0x88] sm:$0xff]
        %v2626 = vld [vmem:[#allocation2 + $0x90] sm:$0xff]
        %v2627 = vld [vmem:[#allocation2 + $0x98] sm:$0xff]
        %v2628 = vld [vmem:[#allocation2 + $0xa0] sm:$0xff]
        %v2629 = vld [vmem:[#allocation2 + $0xa8] sm:$0xff]
        %v2630 = vld [vmem:[#allocation2 + $0xb0] sm:$0xff]
        %v2631 = vld [vmem:[#allocation2 + $0xb8] sm:$0xff]
        %v2632 = vld [vmem:[#allocation2 + $0xc0] sm:$0xff]
        %v2633 = vld [vmem:[#allocation2 + $0xc8] sm:$0xff]
        %v2634 = vld [vmem:[#allocation2 + $0xd0] sm:$0xff]
        %v2635 = vld [vmem:[#allocation2 + $0xd8] sm:$0xff]
        %v2636 = vld [vmem:[#allocation2 + $0xe0] sm:$0xff]
        %v2637 = vld [vmem:[#allocation2 + $0xe8] sm:$0xff]
        %v2638 = vld [vmem:[#allocation2 + $0xf0] sm:$0xff]
        %v2639 = vld [vmem:[#allocation2 + $0xf8] sm:$0xff]
        %v2640 = vmul.f32 %v2608, %v1979
        %v2641 = vmul.f32 %v2609, %v1982
        %v2642 = vmul.f32 %v2610, %v1985
        %v2643 = vmul.f32 %v2611, %v1988
        %v2644 = vmul.f32 %v2612, %v1991
        %v2645 = vmul.f32 %v2613, %v1994
        %v2646 = vmul.f32 %v2614, %v1997
        %v2647 = vmul.f32 %v2615, %v2000
        %v2648 = vmul.f32 %v2616, %v2003
        %v2649 = vmul.f32 %v2617, %v2006
        %v2650 = vmul.f32 %v2618, %v2009
        %v2651 = vmul.f32 %v2619, %v2012
        %v2652 = vmul.f32 %v2620, %v2015
        %v2653 = vmul.f32 %v2621, %v2018
        %v2654 = vmul.f32 %v2622, %v2021
        %v2655 = vmul.f32 %v2623, %v2024
        %v2656 = vmul.f32 %v2624, %v2027
        %v2657 = vmul.f32 %v2625, %v2030
        %v2658 = vmul.f32 %v2626, %v2033
        %v2659 = vmul.f32 %v2627, %v2036
        %v2660 = vmul.f32 %v2628, %v2039
        %v2661 = vmul.f32 %v2629, %v2042
        %v2662 = vmul.f32 %v2630, %v2045
        %v2663 = vmul.f32 %v2631, %v2048
        %v2664 = vmul.f32 %v2632, %v2051
        %v2665 = vmul.f32 %v2633, %v2054
        %v2666 = vmul.f32 %v2634, %v2057
        %v2667 = vmul.f32 %v2635, %v2060
        %v2668 = vmul.f32 %v2636, %v2063
        %v2669 = vmul.f32 %v2637, %v2066
        %v2670 = vmul.f32 %v2638, %v2069
        %v2671 = vmul.f32 %v2639, %v2072
        %v2672 = vld [vmem:[%s779] sm:$0x1]
        %v2674 = vperm.slane %v2672, 0
        %v2676 = vmul.f32 %v1091, %v2674
        %v2677 = vmul.f32 %v1092, %v2674
        %2678 = vmatpush.msra.mxu0 %v2655
        %2679 = vmatpush.msra.mxu0 %v2654
        %2680 = vmatpush.msra.mxu0 %v2653
        %2681 = vmatpush.msra.mxu0 %v2652
        %2682 = vmatpush.msra.mxu0 %v2651
        %2683 = vmatpush.msra.mxu0 %v2650
        %2684 = vmatpush.msra.mxu0 %v2649
        %2685 = vmatpush.msra.mxu0 %v2648
        %2686 = vmatpush.msra.mxu0 %v2647
        %2687 = vmatpush.msra.mxu0 %v2646
        %2688 = vmatpush.msra.mxu0 %v2645
        %2689 = vmatpush.msra.mxu0 %v2644
        %2690 = vmatpush.msra.mxu0 %v2643
        %2691 = vmatpush.msra.mxu0 %v2642
        %2692 = vmatpush.msra.mxu0 %v2641
        %2693 = vmatpush.msra.mxu0 %v2640
        %2694 = vmatmul.f32.gmra.mxu0 %v2604
        %v2695 = vpop.f32.mrf.mxu0
        %v2696 = vadd.f32 %v2676, %v2695
        %2697 = vmatmul.f32.gmra.mxu0 %v2606
        %v2698 = vpop.f32.mrf.mxu0
        %v2699 = vadd.f32 %v2677, %v2698
        %2700 = vdwg.mxu0
        %2701 = vmatpush.msra.mxu0 %v2671
        %2702 = vmatpush.msra.mxu0 %v2670
        %2703 = vmatpush.msra.mxu0 %v2669
        %2704 = vmatpush.msra.mxu0 %v2668
        %2705 = vmatpush.msra.mxu0 %v2667
        %2706 = vmatpush.msra.mxu0 %v2666
        %2707 = vmatpush.msra.mxu0 %v2665
        %2708 = vmatpush.msra.mxu0 %v2664
        %2709 = vmatpush.msra.mxu0 %v2663
        %2710 = vmatpush.msra.mxu0 %v2662
        %2711 = vmatpush.msra.mxu0 %v2661
        %2712 = vmatpush.msra.mxu0 %v2660
        %2713 = vmatpush.msra.mxu0 %v2659
        %2714 = vmatpush.msra.mxu0 %v2658
        %2715 = vmatpush.msra.mxu0 %v2657
        %2716 = vmatpush.msra.mxu0 %v2656
        %2717 = vmatmul.f32.gmra.mxu0 %v2605
        %v2718 = vpop.f32.mrf.mxu0
        %v2719 = vadd.f32 %v2696, %v2718
        %2720 = vmatmul.f32.gmra.mxu0 %v2607
        %v2721 = vpop.f32.mrf.mxu0
        %v2722 = vadd.f32 %v2699, %v2721
        %2723 = vdwg.mxu0
        %v2724 = vsub.f32 0.0, %v963
        %v2725 = vsub.f32 0.0, %v966
        %v2726 = vmul.f32 %v2724, 1.442695
        %v2727 = vpow.pop %v2726
        %v2728 = vmul.f32 %v2725, 1.442695
        %v2729 = vpow.pop %v2728
        %v2730 = vadd.f32 %v2727, 1.0
        %v2731 = vadd.f32 %v2729, 1.0
        %v2732 = vrcp.pop %v2730
        %v2733 = vmul.f32 %v2730, %v2732
        %v2734 = vsub.f32 1.0, %v2733
        %v2735 = vmul.f32 %v2732, %v2734
        %v2736 = vadd.f32 %v2732, %v2735
        %vm2737 = vweird.f32 %v2730
        %vm2738 = vweird.f32 %v2732
        %vm2739 = vmor %vm2737, %vm2738
        %v2740 = vsel %vm2739, %v2732, %v2736
        %v2741 = vand.u32 2147483647, %v2730
        %vm2742 = vcmp.eq.f32.partialorder %v2741, 8.507059e+37
        %v2743 = vand.u32 %v2730, 2147483648
        %v2744 = vor.u32 1.1754944e-38, %v2743
        %v2745 = vsel %vm2742, %v2744, %v2740
        %v2746 = vmul.f32 1.0, %v2745
        %v2747 = vrcp.pop %v2731
        %v2748 = vmul.f32 %v2731, %v2747
        %v2749 = vsub.f32 1.0, %v2748
        %v2750 = vmul.f32 %v2747, %v2749
        %v2751 = vadd.f32 %v2747, %v2750
        %vm2752 = vweird.f32 %v2731
        %vm2753 = vweird.f32 %v2747
        %vm2754 = vmor %vm2752, %vm2753
        %v2755 = vsel %vm2754, %v2747, %v2751
        %v2756 = vand.u32 2147483647, %v2731
        %vm2757 = vcmp.eq.f32.partialorder %v2756, 8.507059e+37
        %v2758 = vand.u32 %v2731, 2147483648
        %v2759 = vor.u32 1.1754944e-38, %v2758
        %v2760 = vsel %vm2757, %v2759, %v2755
        %v2761 = vmul.f32 1.0, %v2760
        %v2762 = vmul.f32 %v963, %v2746
        %v2763 = vmul.f32 %v966, %v2761
        %2766 = vrot.lane.b32.xlu0 %v2762, 64
        %v2767 = vpop.permute.xlu0 %2766
        %2768 = vrot.lane.b32.xlu0 %v2763, 64
        %v2769 = vpop.permute.xlu0 %2768
        %v2772 = vmul.f32 %v2719, %v2767
        %v2773 = vmul.f32 %v2722, %v2769
        %v2774 = vld [vmem:[%s784] sm:$0xff]
        %v2775 = vld [vmem:[%s784 + $0x8] sm:$0xff]
        %v2776 = vld [vmem:[%s784 + $0x10] sm:$0xff]
        %v2777 = vld [vmem:[%s784 + $0x18] sm:$0xff]
        %v2778 = vld [vmem:[%s784 + $0x20] sm:$0xff]
        %v2779 = vld [vmem:[%s784 + $0x28] sm:$0xff]
        %v2780 = vld [vmem:[%s784 + $0x30] sm:$0xff]
        %v2781 = vld [vmem:[%s784 + $0x38] sm:$0xff]
        %v2783 = vsel %vm1101, %v2772, 0
        %v2786 = vsel %vm1101, %v2773, 0
        %2788 = vmatpush.msra.mxu0 0.0
        %2789 = vmatpush.msra.mxu0 0.0
        %2790 = vmatpush.msra.mxu0 0.0
        %2791 = vmatpush.msra.mxu0 0.0
        %2792 = vmatpush.msra.mxu0 0.0
        %2793 = vmatpush.msra.mxu0 0.0
        %2794 = vmatpush.msra.mxu0 0.0
        %2795 = vmatpush.msra.mxu0 0.0
        %2796 = vmatpush.msra.mxu0 %v2781
        %2797 = vmatpush.msra.mxu0 %v2780
        %2798 = vmatpush.msra.mxu0 %v2779
        %2799 = vmatpush.msra.mxu0 %v2778
        %2800 = vmatpush.msra.mxu0 %v2777
        %2801 = vmatpush.msra.mxu0 %v2776
        %2802 = vmatpush.msra.mxu0 %v2775
        %2803 = vmatpush.msra.mxu0 %v2774
        %2804 = vmatmul.f32.gmra.mxu0 %v2783
        %v2805 = vpop.f32.mrf.mxu0
        %v2806 = vadd.f32 0.0, %v2805
        %2807 = vmatmul.f32.gmra.mxu0 %v2786
        %v2808 = vpop.f32.mrf.mxu0
        %v2809 = vadd.f32 0.0, %v2808
        %2810 = vdwg.mxu0
        %2811 = vst.msk [vmem:[%s744] sm:$0xff] %vm803, %v2806
        %2812 = vst.msk [vmem:[%s744 + $0x8] sm:$0xff] %vm803, %v2809
        %s2813 = sand.u32 %s507, 1
        %s2814 = scalar_lea.sflag [#allocation4], %s2813
        %s2815 = sand.u32 %s507, 1
        %s2816 = smul.addr %s2815, 16
        %s2817 = scalar_lea.vmem [#allocation3], %s2816
        %s2818 = sand.u32 %s533, 1
        %s2819 = scalar_lea.sflag [#allocation6], %s2818
        %s2820 = sand.u32 %s533, 1
        %s2821 = smul.addr %s2820, 16
        %s2822 = scalar_lea.vmem [#allocation5], %s2821
        // Predicated region
        $region101: #{tpu_custom_call.1} parent=99 // pred_check
          %p2823 = pneg %p517
        $region102: #{tpu_custom_call.1} parent=99 // pred_check_branch
          %2825 = sbr.rel (%p2823) target = $region104
        $region103: #{tpu_custom_call.1} parent=99 // pred_region
          %2827 = vsyncadd %s2814, 0
          %s2828 = smul.addr %s39, 2
          %s2829 = smul.addr %s2828, 8
          %s2830 = scalar_lea.hbm %s20, %s2829
          %s2831 = sshll.u32 %s2817, 4
          %s2832 = int_to_ptr.vmem [resolvable:$true] %s2831
          %s2833 = sshll.u32 %s2830, 4
          %s2834 = int_to_ptr.hbm [resolvable:$true] %s2833
          %2839 = dma.vmem_to_hbm [thread:$0]  %s2832, 256, %s2834, %s2814, 128, 128, 8
        $region104: #{tpu_custom_call.1} parent=99 // pred_fallthru
          _
        // Predicated region
        $region105: #{tpu_custom_call.1} parent=99 // pred_check
          %p2840 = pneg %p543
        $region106: #{tpu_custom_call.1} parent=99 // pred_check_branch
          %2842 = sbr.rel (%p2840) target = $region108
        $region107: #{tpu_custom_call.1} parent=99 // pred_region
          %2844 = vsyncadd %s2819, 0
          %s2845 = smul.addr %s39, 2
          %s2846 = smul.addr %s2845, 8
          %s2847 = scalar_lea.hbm %s21, %s2846
          %s2848 = sshll.u32 %s2822, 4
          %s2849 = int_to_ptr.vmem [resolvable:$true] %s2848
          %s2850 = sshll.u32 %s2847, 4
          %s2851 = int_to_ptr.hbm [resolvable:$true] %s2850
          %2856 = dma.vmem_to_hbm [thread:$0]  %s2849, 256, %s2851, %s2819, 128, 128, 8
        $region108: #{tpu_custom_call.1} parent=99 // pred_fallthru
          _
      $region100: #{tpu_custom_call.1} parent=5 // pred_fallthru
        _
      %p2857 = scmp.le.s32.totalorder 2, %s34
      // Predicated region
      $region109: #{tpu_custom_call.1} parent=5 // pred_check
        %p2858 = pneg %p2857
      $region110: #{tpu_custom_call.1} parent=5 // pred_check_branch
        %2860 = sbr.rel (%p2858) target = $region112
      $region111: #{tpu_custom_call.1} parent=5 // pred_region
        %s2861 = ssub.s32 %s34, 2
        // Predicated region
        $region113: #{tpu_custom_call.1} parent=111 // pred_check
          %p2862 = pneg %p523
        $region114: #{tpu_custom_call.1} parent=111 // pred_check_branch
          %2864 = sbr.rel (%p2862) target = $region116
        $region115: #{tpu_custom_call.1} parent=111 // pred_region
          %s2865 = sand.u32 %s508, 1
          %s2866 = scalar_lea.sflag [#allocation4], %s2865
          %s2867 = sand.u32 %s508, 1
          %s2868 = smul.addr %s2867, 16
          %s2869 = scalar_lea.vmem [#allocation3], %s2868
          %2871 = dma.done %s2866, 256
        $region116: #{tpu_custom_call.1} parent=111 // pred_fallthru
          _
        // Predicated region
        $region117: #{tpu_custom_call.1} parent=111 // pred_check
          %p2872 = pneg %p549
        $region118: #{tpu_custom_call.1} parent=111 // pred_check_branch
          %2874 = sbr.rel (%p2872) target = $region120
        $region119: #{tpu_custom_call.1} parent=111 // pred_region
          %s2875 = sand.u32 %s534, 1
          %s2876 = scalar_lea.sflag [#allocation6], %s2875
          %s2877 = sand.u32 %s534, 1
          %s2878 = smul.addr %s2877, 16
          %s2879 = scalar_lea.vmem [#allocation5], %s2878
          %2881 = dma.done %s2876, 256
        $region120: #{tpu_custom_call.1} parent=111 // pred_fallthru
          _
      $region112: #{tpu_custom_call.1} parent=5 // pred_fallthru
        _
    $region6: #{tpu_custom_call.1} parent=1 // loop_footer
      %s38 = sadd.s32 1, %s34
    $region7: #{tpu_custom_call.1} parent=1 // loop_footer_branch
      %33 = sbr.rel target = $region3
    $region8: #{tpu_custom_call.1} parent=1 // loop_exit
      _
    %2882 = vsyncpa [#allocation4], 1
    %s2883 = scalar_lea.sflag [#allocation4], 1
    %2884 = vsyncpa %s2883, 1
    %2885 = vsyncpa [#allocation6], 1
    %s2886 = scalar_lea.sflag [#allocation6], 1
    %2887 = vsyncpa %s2886, 1

</llo_original>
